<compile_context>
chip_gen: v6e
topology: v6e:2x2x1
jax: 0.10.0
libtpu: 0.0.40
codegen_flags: <defaults>
</compile_context>

<pallas_src>
import functools

import jax
import jax.numpy as jnp
from jax.experimental import pallas as pl
from jax.experimental.pallas import tpu as pltpu

LATENT_DIM = 400
INPUT_SIZE = 256
LAYERS = (256, 512, 1024)
OUTPUT_SIZE = 512
BN_EPS = 0.8
LRELU_SLOPE = 0.2

# Packed per-feature parameter vector layout (all offsets are multiples of 128).
_VEC_SEGS = (
    ("b1", INPUT_SIZE),
    ("g2", LAYERS[0]), ("bt2", LAYERS[0]),
    ("g3", LAYERS[1]), ("bt3", LAYERS[1]),
    ("g4", LAYERS[2]), ("bt4", LAYERS[2]),
    ("b5", OUTPUT_SIZE),
)
_VEC_OFF = {}
_off = 0
for _name, _n in _VEC_SEGS:
    _VEC_OFF[_name] = (_off, _off + _n)
    _off += _n
VEC_TOTAL = _off  # 4352 = 34 * 128


def _leaky_relu(x):
    return jnp.where(x > 0, x, LRELU_SLOPE * x)


def _bn_train(x, gamma, beta):
    # Training-mode BatchNorm1d (biased variance, eps=0.8).  Single-pass stats
    # (var = E[x^2] - E[x]^2 — safe here, eps=0.8 dominates) fused into one
    # per-feature scale/shift so the (B, N) apply is one mul + one add.
    mu = jnp.mean(x, axis=0, keepdims=True)
    ex2 = jnp.mean(x * x, axis=0, keepdims=True)
    var = ex2 - mu * mu
    s = gamma * jax.lax.rsqrt(var + BN_EPS)   # rsqrt -> EUP (free slot)
    t = beta - mu * s
    return x * s + t


def wgan_generator_kernel(
    z_ref, w1_ref, w2_ref, w3_ref, w4_ref, w5_ref, vec_ref,  # inputs
    out_ref,                                                 # output
):
    def seg(name):
        lo, hi = _VEC_OFF[name]
        return vec_ref[:, lo:hi]          # (1, n) per-feature slice, f32

    x = z_ref[...]                        # bf16 (B, 400)

    # block(400 -> 256, normalize=False): Linear + bias + LeakyReLU
    x = jnp.dot(x, w1_ref[...], preferred_element_type=jnp.float32) + seg("b1")
    x = _leaky_relu(x)

    # block(256 -> 256): Linear (bias cancels under training-mode BN) + BN + LeakyReLU
    x = jnp.dot(x.astype(jnp.bfloat16), w2_ref[...],
                preferred_element_type=jnp.float32)
    x = _leaky_relu(_bn_train(x, seg("g2"), seg("bt2")))

    # block(256 -> 512)
    x = jnp.dot(x.astype(jnp.bfloat16), w3_ref[...],
                preferred_element_type=jnp.float32)
    x = _leaky_relu(_bn_train(x, seg("g3"), seg("bt3")))

    # block(512 -> 1024)
    x = jnp.dot(x.astype(jnp.bfloat16), w4_ref[...],
                preferred_element_type=jnp.float32)
    x = _leaky_relu(_bn_train(x, seg("g4"), seg("bt4")))

    # Linear(1024 -> 512) + bias + LeakyReLU
    x = jnp.dot(x.astype(jnp.bfloat16), w5_ref[...],
                preferred_element_type=jnp.float32) + seg("b5")
    x = _leaky_relu(x)

    out_ref[...] = x.astype(out_ref.dtype)


@functools.partial(jax.jit, static_argnames=("out_dtype",))
def wgan_generator_forward(z, params, out_dtype=jnp.float32):
    """Forward pass.

    z: (B, 400) — one batch, exactly the PyTorch module's forward; or
       (G, B, 400) — G independent batches processed in one pallas_call with
       the weights kept resident in VMEM across the grid (BatchNorm statistics
       are computed per batch group, i.e. each group == one module forward).
    Returns (B, 512) or (G, B, 512) in `out_dtype` (f32 default; bf16 halves
    the output writeback at large B).
    """
    squeeze = z.ndim == 2
    if squeeze:
        z = z[None]
    G, B, _ = z.shape
    zb = z.astype(jnp.bfloat16)           # halves the z HBM->VMEM stream

    def const2(shape):
        return pl.BlockSpec(shape, lambda i: (0, 0))

    in_specs = [
        # z: walk the batch-group axis (leading dim squeezed out in the kernel).
        pl.BlockSpec((None, B, LATENT_DIM), lambda i: (i, 0, 0)),
        # Weights + packed per-feature params: constant block index -> fetched
        # once and kept resident across all grid steps.
        const2((LATENT_DIM, INPUT_SIZE)),     # w1 (bf16)
        const2((INPUT_SIZE, LAYERS[0])),      # w2 (bf16)
        const2((LAYERS[0], LAYERS[1])),       # w3 (bf16)
        const2((LAYERS[1], LAYERS[2])),       # w4 (bf16)
        const2((LAYERS[2], OUTPUT_SIZE)),     # w5 (bf16)
        const2((1, VEC_TOTAL)),               # packed biases / BN params (f32)
    ]

    out = pl.pallas_call(
        wgan_generator_kernel,
        out_shape=jax.ShapeDtypeStruct((G, B, OUTPUT_SIZE), out_dtype),
        grid_spec=pltpu.PrefetchScalarGridSpec(
            num_scalar_prefetch=0,
            grid=(G,),
            in_specs=in_specs,
            out_specs=pl.BlockSpec((None, B, OUTPUT_SIZE), lambda i: (i, 0, 0)),
        ),
        compiler_params=pltpu.CompilerParams(
            # Batch groups are independent -> shard across TCs on v7x.
            dimension_semantics=("parallel",),
            # Footprint at demo sizes is a few MiB; keep B per group modest
            # (<~2k) so the live (B, 1024) f32 activation stays within budget.
            vmem_limit_bytes=32 * 1024 * 1024,
        ),
    )(zb, params["w1"], params["w2"], params["w3"], params["w4"],
      params["w5"], params["vec"])

    return out[0] if squeeze else out


def init_params(key):
    dims = [LATENT_DIM, INPUT_SIZE, LAYERS[0], LAYERS[1], LAYERS[2], OUTPUT_SIZE]
    params = {}
    for li in range(5):
        fan_in, fan_out = dims[li], dims[li + 1]
        key, kw, kb = jax.random.split(key, 3)
        bound = 1.0 / float(fan_in) ** 0.5
        # Weights stored (in, out) so the kernel does x @ W; bf16 halves the
        # dominant HBM weight-streaming cost and hits the MXU's native path.
        params[f"w{li + 1}"] = jax.random.uniform(
            kw, (fan_in, fan_out), jnp.float32, -bound, bound).astype(jnp.bfloat16)
        params[f"b{li + 1}"] = jax.random.uniform(
            kb, (1, fan_out), jnp.float32, -bound, bound)
    # BatchNorm affine params for layers 2, 3, 4 (gamma=1, beta=0 like PyTorch).
    for li, feat in zip((2, 3, 4), LAYERS):
        params[f"g{li}"] = jnp.ones((1, feat), jnp.float32)
        params[f"bt{li}"] = jnp.zeros((1, feat), jnp.float32)
    # Pre-pack all small per-feature vectors ONCE (hoisted out of the call
    # path): one lane-aligned (1, 4352) f32 array -> one DMA in the kernel.
    params["vec"] = jnp.concatenate(
        [params[name].astype(jnp.float32) for name, _ in _VEC_SEGS], axis=1)
    return params


def reference_forward(z, params):
    """Pure-JAX reference with the same math (bf16 dots, f32 accumulation).

    Keeps the b2/b3/b4 bias adds of the PyTorch module and two-pass BN stats;
    the kernel omits the biases (they cancel exactly under training-mode BN)
    and uses single-pass stats.
    """
    def lrelu(x):
        return jnp.where(x > 0, x, LRELU_SLOPE * x)

    def bn(x, g, b):
        mu = jnp.mean(x, axis=0, keepdims=True)
        var = jnp.mean((x - mu) ** 2, axis=0, keepdims=True)
        return (x - mu) / jnp.sqrt(var + BN_EPS) * g + b

    def lin(x, w, b):
        return jnp.dot(x.astype(jnp.bfloat16), w,
                       preferred_element_type=jnp.float32) + b

    x = lrelu(lin(z, params["w1"], params["b1"]))
    x = lrelu(bn(lin(x, params["w2"], params["b2"]), params["g2"], params["bt2"]))
    x = lrelu(bn(lin(x, params["w3"], params["b3"]), params["g3"], params["bt3"]))
    x = lrelu(bn(lin(x, params["w4"], params["b4"]), params["g4"], params["bt4"]))
    x = lrelu(lin(x, params["w5"], params["b5"]))
    return x


if __name__ == "__main__":
    key = jax.random.PRNGKey(0)
    key, kz, kp = jax.random.split(key, 3)

    # Small demo: G=2 independent batches of B=8 (>= 2 so training-mode
    # BatchNorm is well defined) processed in a single weight-resident call.
    G, B = 2, 8
    z = jax.random.normal(kz, (G, B, LATENT_DIM), jnp.float32)
    params = init_params(kp)

    out = jax.block_until_ready(wgan_generator_forward(z, params))
    assert out.shape == (G, B, OUTPUT_SIZE), out.shape

    ref = jnp.stack([reference_forward(z[g], params) for g in range(G)])
    # bf16 matmuls -> looser tolerance than pure f32.
    assert jnp.allclose(out, ref, atol=3e-2, rtol=3e-2), (
        float(jnp.max(jnp.abs(out - ref))))

    # 2-D path (single batch), matching the PyTorch module's forward signature.
    out0 = jax.block_until_ready(wgan_generator_forward(z[0], params))
    assert out0.shape == (B, OUTPUT_SIZE), out0.shape
    assert jnp.allclose(out0, ref[0], atol=3e-2, rtol=3e-2), (
        float(jnp.max(jnp.abs(out0 - ref[0]))))

    print("KERNEL_OK")
</pallas_src>

<mosaic_0001>
module attributes {stable_mosaic.version = 11 : i64} {
  func.func @wgan_generator_kernel(%arg0: i32, %arg1: memref<1x8x400xbf16, #tpu.memory_space<vmem>>, %arg2: memref<400x256xbf16, #tpu.memory_space<vmem>>, %arg3: memref<256x256xbf16, #tpu.memory_space<vmem>>, %arg4: memref<256x512xbf16, #tpu.memory_space<vmem>>, %arg5: memref<512x1024xbf16, #tpu.memory_space<vmem>>, %arg6: memref<1024x512xbf16, #tpu.memory_space<vmem>>, %arg7: memref<1x4352xf32, #tpu.memory_space<vmem>>, %arg8: memref<1x8x512xf32, #tpu.memory_space<vmem>>) attributes {dimension_semantics = [#tpu.dimension_semantics<parallel>], iteration_bounds = array<i64: 2>, scalar_prefetch = 0 : i64, scratch_operands = 0 : i64, tpu.core_type = #tpu.core_type<tc>, window_params = [{transform_indices = @transform_0, window_bounds = array<i64: 1, 8, 400>}, {pipeline_mode = #tpu.pipeline_mode<synchronous>, transform_indices = @transform_1, window_bounds = array<i64: 400, 256>}, {pipeline_mode = #tpu.pipeline_mode<synchronous>, transform_indices = @transform_2, window_bounds = array<i64: 256, 256>}, {pipeline_mode = #tpu.pipeline_mode<synchronous>, transform_indices = @transform_3, window_bounds = array<i64: 256, 512>}, {pipeline_mode = #tpu.pipeline_mode<synchronous>, transform_indices = @transform_4, window_bounds = array<i64: 512, 1024>}, {pipeline_mode = #tpu.pipeline_mode<synchronous>, transform_indices = @transform_5, window_bounds = array<i64: 1024, 512>}, {pipeline_mode = #tpu.pipeline_mode<synchronous>, transform_indices = @transform_6, window_bounds = array<i64: 1, 4352>}, {transform_indices = @transform_7, window_bounds = array<i64: 1, 8, 512>}]} {
    %c0 = arith.constant 0 : index
    %c0_0 = arith.constant 0 : index
    %c0_1 = arith.constant 0 : index
    %0 = vector.load %arg1[%c0, %c0_0, %c0_1] : memref<1x8x400xbf16, #tpu.memory_space<vmem>>, vector<1x8x400xbf16>
    %1 = vector.shape_cast %0 : vector<1x8x400xbf16> to vector<8x400xbf16>
    %c0_2 = arith.constant 0 : index
    %c0_3 = arith.constant 0 : index
    %2 = vector.load %arg2[%c0_2, %c0_3] : memref<400x256xbf16, #tpu.memory_space<vmem>>, vector<400x256xbf16>
    %cst = arith.constant dense<0.000000e+00> : vector<8x256xf32>
    %3 = tpu.matmul %1, %2, %cst {dimension_numbers = #tpu.dot_dimension_numbers<[1], [0], [0], [1], [0, 0, 1, 1], [], []>} : vector<8x400xbf16>, vector<400x256xbf16>, vector<8x256xf32> -> vector<8x256xf32>
    %c0_4 = arith.constant 0 : index
    %c0_5 = arith.constant 0 : index
    %4 = vector.load %arg7[%c0_4, %c0_5] : memref<1x4352xf32, #tpu.memory_space<vmem>>, vector<1x256xf32>
    %5 = vector.broadcast %4 : vector<1x256xf32> to vector<8x256xf32>
    %6 = arith.addf %3, %5 : vector<8x256xf32>
    %cst_6 = arith.constant 0.000000e+00 : f32
    %7 = vector.broadcast %cst_6 : f32 to vector<8x256xf32>
    %8 = arith.cmpf ogt, %6, %7 : vector<8x256xf32>
    %cst_7 = arith.constant 2.000000e-01 : f32
    %9 = vector.broadcast %cst_7 : f32 to vector<8x256xf32>
    %10 = arith.mulf %9, %6 : vector<8x256xf32>
    %11 = arith.select %8, %6, %10 : vector<8x256xi1>, vector<8x256xf32>
    %12 = arith.truncf %11 : vector<8x256xf32> to vector<8x256xbf16>
    %c0_8 = arith.constant 0 : index
    %c0_9 = arith.constant 0 : index
    %13 = vector.load %arg3[%c0_8, %c0_9] : memref<256x256xbf16, #tpu.memory_space<vmem>>, vector<256x256xbf16>
    %cst_10 = arith.constant dense<0.000000e+00> : vector<8x256xf32>
    %14 = tpu.matmul %12, %13, %cst_10 {dimension_numbers = #tpu.dot_dimension_numbers<[1], [0], [0], [1], [0, 0, 1, 1], [], []>} : vector<8x256xbf16>, vector<256x256xbf16>, vector<8x256xf32> -> vector<8x256xf32>
    %c0_11 = arith.constant 0 : index
    %c256 = arith.constant 256 : index
    %15 = vector.load %arg7[%c0_11, %c256] : memref<1x4352xf32, #tpu.memory_space<vmem>>, vector<1x256xf32>
    %c0_12 = arith.constant 0 : index
    %c512 = arith.constant 512 : index
    %16 = vector.load %arg7[%c0_12, %c512] : memref<1x4352xf32, #tpu.memory_space<vmem>>, vector<1x256xf32>
    %cst_13 = arith.constant dense<0.000000e+00> : vector<256xf32>
    %17 = vector.multi_reduction <add>, %14, %cst_13 [0] : vector<8x256xf32> to vector<256xf32>
    %18 = vector.shape_cast %17 : vector<256xf32> to vector<1x256xf32>
    %cst_14 = arith.constant 8.000000e+00 : f32
    %19 = vector.broadcast %cst_14 : f32 to vector<1x256xf32>
    %20 = arith.divf %18, %19 : vector<1x256xf32>
    %21 = arith.mulf %14, %14 : vector<8x256xf32>
    %cst_15 = arith.constant dense<0.000000e+00> : vector<256xf32>
    %22 = vector.multi_reduction <add>, %21, %cst_15 [0] : vector<8x256xf32> to vector<256xf32>
    %23 = vector.shape_cast %22 : vector<256xf32> to vector<1x256xf32>
    %cst_16 = arith.constant 8.000000e+00 : f32
    %24 = vector.broadcast %cst_16 : f32 to vector<1x256xf32>
    %25 = arith.divf %23, %24 : vector<1x256xf32>
    %26 = arith.mulf %20, %20 : vector<1x256xf32>
    %27 = arith.subf %25, %26 : vector<1x256xf32>
    %cst_17 = arith.constant 8.000000e-01 : f32
    %28 = vector.broadcast %cst_17 : f32 to vector<1x256xf32>
    %29 = arith.addf %27, %28 : vector<1x256xf32>
    %30 = math.rsqrt %29 : vector<1x256xf32>
    %31 = arith.mulf %15, %30 : vector<1x256xf32>
    %32 = arith.mulf %20, %31 : vector<1x256xf32>
    %33 = arith.subf %16, %32 : vector<1x256xf32>
    %34 = vector.broadcast %31 : vector<1x256xf32> to vector<8x256xf32>
    %35 = arith.mulf %14, %34 : vector<8x256xf32>
    %36 = vector.broadcast %33 : vector<1x256xf32> to vector<8x256xf32>
    %37 = arith.addf %35, %36 : vector<8x256xf32>
    %cst_18 = arith.constant 0.000000e+00 : f32
    %38 = vector.broadcast %cst_18 : f32 to vector<8x256xf32>
    %39 = arith.cmpf ogt, %37, %38 : vector<8x256xf32>
    %cst_19 = arith.constant 2.000000e-01 : f32
    %40 = vector.broadcast %cst_19 : f32 to vector<8x256xf32>
    %41 = arith.mulf %40, %37 : vector<8x256xf32>
    %42 = arith.select %39, %37, %41 : vector<8x256xi1>, vector<8x256xf32>
    %43 = arith.truncf %42 : vector<8x256xf32> to vector<8x256xbf16>
    %c0_20 = arith.constant 0 : index
    %c0_21 = arith.constant 0 : index
    %44 = vector.load %arg4[%c0_20, %c0_21] : memref<256x512xbf16, #tpu.memory_space<vmem>>, vector<256x512xbf16>
    %cst_22 = arith.constant dense<0.000000e+00> : vector<8x512xf32>
    %45 = tpu.matmul %43, %44, %cst_22 {dimension_numbers = #tpu.dot_dimension_numbers<[1], [0], [0], [1], [0, 0, 1, 1], [], []>} : vector<8x256xbf16>, vector<256x512xbf16>, vector<8x512xf32> -> vector<8x512xf32>
    %c0_23 = arith.constant 0 : index
    %c768 = arith.constant 768 : index
    %46 = vector.load %arg7[%c0_23, %c768] : memref<1x4352xf32, #tpu.memory_space<vmem>>, vector<1x512xf32>
    %c0_24 = arith.constant 0 : index
    %c1280 = arith.constant 1280 : index
    %47 = vector.load %arg7[%c0_24, %c1280] : memref<1x4352xf32, #tpu.memory_space<vmem>>, vector<1x512xf32>
    %cst_25 = arith.constant dense<0.000000e+00> : vector<512xf32>
    %48 = vector.multi_reduction <add>, %45, %cst_25 [0] : vector<8x512xf32> to vector<512xf32>
    %49 = vector.shape_cast %48 : vector<512xf32> to vector<1x512xf32>
    %cst_26 = arith.constant 8.000000e+00 : f32
    %50 = vector.broadcast %cst_26 : f32 to vector<1x512xf32>
    %51 = arith.divf %49, %50 : vector<1x512xf32>
    %52 = arith.mulf %45, %45 : vector<8x512xf32>
    %cst_27 = arith.constant dense<0.000000e+00> : vector<512xf32>
    %53 = vector.multi_reduction <add>, %52, %cst_27 [0] : vector<8x512xf32> to vector<512xf32>
    %54 = vector.shape_cast %53 : vector<512xf32> to vector<1x512xf32>
    %cst_28 = arith.constant 8.000000e+00 : f32
    %55 = vector.broadcast %cst_28 : f32 to vector<1x512xf32>
    %56 = arith.divf %54, %55 : vector<1x512xf32>
    %57 = arith.mulf %51, %51 : vector<1x512xf32>
    %58 = arith.subf %56, %57 : vector<1x512xf32>
    %cst_29 = arith.constant 8.000000e-01 : f32
    %59 = vector.broadcast %cst_29 : f32 to vector<1x512xf32>
    %60 = arith.addf %58, %59 : vector<1x512xf32>
    %61 = math.rsqrt %60 : vector<1x512xf32>
    %62 = arith.mulf %46, %61 : vector<1x512xf32>
    %63 = arith.mulf %51, %62 : vector<1x512xf32>
    %64 = arith.subf %47, %63 : vector<1x512xf32>
    %65 = vector.broadcast %62 : vector<1x512xf32> to vector<8x512xf32>
    %66 = arith.mulf %45, %65 : vector<8x512xf32>
    %67 = vector.broadcast %64 : vector<1x512xf32> to vector<8x512xf32>
    %68 = arith.addf %66, %67 : vector<8x512xf32>
    %cst_30 = arith.constant 0.000000e+00 : f32
    %69 = vector.broadcast %cst_30 : f32 to vector<8x512xf32>
    %70 = arith.cmpf ogt, %68, %69 : vector<8x512xf32>
    %cst_31 = arith.constant 2.000000e-01 : f32
    %71 = vector.broadcast %cst_31 : f32 to vector<8x512xf32>
    %72 = arith.mulf %71, %68 : vector<8x512xf32>
    %73 = arith.select %70, %68, %72 : vector<8x512xi1>, vector<8x512xf32>
    %74 = arith.truncf %73 : vector<8x512xf32> to vector<8x512xbf16>
    %c0_32 = arith.constant 0 : index
    %c0_33 = arith.constant 0 : index
    %75 = vector.load %arg5[%c0_32, %c0_33] : memref<512x1024xbf16, #tpu.memory_space<vmem>>, vector<512x1024xbf16>
    %cst_34 = arith.constant dense<0.000000e+00> : vector<8x1024xf32>
    %76 = tpu.matmul %74, %75, %cst_34 {dimension_numbers = #tpu.dot_dimension_numbers<[1], [0], [0], [1], [0, 0, 1, 1], [], []>} : vector<8x512xbf16>, vector<512x1024xbf16>, vector<8x1024xf32> -> vector<8x1024xf32>
    %c0_35 = arith.constant 0 : index
    %c1792 = arith.constant 1792 : index
    %77 = vector.load %arg7[%c0_35, %c1792] : memref<1x4352xf32, #tpu.memory_space<vmem>>, vector<1x1024xf32>
    %c0_36 = arith.constant 0 : index
    %c2816 = arith.constant 2816 : index
    %78 = vector.load %arg7[%c0_36, %c2816] : memref<1x4352xf32, #tpu.memory_space<vmem>>, vector<1x1024xf32>
    %cst_37 = arith.constant dense<0.000000e+00> : vector<1024xf32>
    %79 = vector.multi_reduction <add>, %76, %cst_37 [0] : vector<8x1024xf32> to vector<1024xf32>
    %80 = vector.shape_cast %79 : vector<1024xf32> to vector<1x1024xf32>
    %cst_38 = arith.constant 8.000000e+00 : f32
    %81 = vector.broadcast %cst_38 : f32 to vector<1x1024xf32>
    %82 = arith.divf %80, %81 : vector<1x1024xf32>
    %83 = arith.mulf %76, %76 : vector<8x1024xf32>
    %cst_39 = arith.constant dense<0.000000e+00> : vector<1024xf32>
    %84 = vector.multi_reduction <add>, %83, %cst_39 [0] : vector<8x1024xf32> to vector<1024xf32>
    %85 = vector.shape_cast %84 : vector<1024xf32> to vector<1x1024xf32>
    %cst_40 = arith.constant 8.000000e+00 : f32
    %86 = vector.broadcast %cst_40 : f32 to vector<1x1024xf32>
    %87 = arith.divf %85, %86 : vector<1x1024xf32>
    %88 = arith.mulf %82, %82 : vector<1x1024xf32>
    %89 = arith.subf %87, %88 : vector<1x1024xf32>
    %cst_41 = arith.constant 8.000000e-01 : f32
    %90 = vector.broadcast %cst_41 : f32 to vector<1x1024xf32>
    %91 = arith.addf %89, %90 : vector<1x1024xf32>
    %92 = math.rsqrt %91 : vector<1x1024xf32>
    %93 = arith.mulf %77, %92 : vector<1x1024xf32>
    %94 = arith.mulf %82, %93 : vector<1x1024xf32>
    %95 = arith.subf %78, %94 : vector<1x1024xf32>
    %96 = vector.broadcast %93 : vector<1x1024xf32> to vector<8x1024xf32>
    %97 = arith.mulf %76, %96 : vector<8x1024xf32>
    %98 = vector.broadcast %95 : vector<1x1024xf32> to vector<8x1024xf32>
    %99 = arith.addf %97, %98 : vector<8x1024xf32>
    %cst_42 = arith.constant 0.000000e+00 : f32
    %100 = vector.broadcast %cst_42 : f32 to vector<8x1024xf32>
    %101 = arith.cmpf ogt, %99, %100 : vector<8x1024xf32>
    %cst_43 = arith.constant 2.000000e-01 : f32
    %102 = vector.broadcast %cst_43 : f32 to vector<8x1024xf32>
    %103 = arith.mulf %102, %99 : vector<8x1024xf32>
    %104 = arith.select %101, %99, %103 : vector<8x1024xi1>, vector<8x1024xf32>
    %105 = arith.truncf %104 : vector<8x1024xf32> to vector<8x1024xbf16>
    %c0_44 = arith.constant 0 : index
    %c0_45 = arith.constant 0 : index
    %106 = vector.load %arg6[%c0_44, %c0_45] : memref<1024x512xbf16, #tpu.memory_space<vmem>>, vector<1024x512xbf16>
    %cst_46 = arith.constant dense<0.000000e+00> : vector<8x512xf32>
    %107 = tpu.matmul %105, %106, %cst_46 {dimension_numbers = #tpu.dot_dimension_numbers<[1], [0], [0], [1], [0, 0, 1, 1], [], []>} : vector<8x1024xbf16>, vector<1024x512xbf16>, vector<8x512xf32> -> vector<8x512xf32>
    %c0_47 = arith.constant 0 : index
    %c3840 = arith.constant 3840 : index
    %108 = vector.load %arg7[%c0_47, %c3840] : memref<1x4352xf32, #tpu.memory_space<vmem>>, vector<1x512xf32>
    %109 = vector.broadcast %108 : vector<1x512xf32> to vector<8x512xf32>
    %110 = arith.addf %107, %109 : vector<8x512xf32>
    %cst_48 = arith.constant 0.000000e+00 : f32
    %111 = vector.broadcast %cst_48 : f32 to vector<8x512xf32>
    %112 = arith.cmpf ogt, %110, %111 : vector<8x512xf32>
    %cst_49 = arith.constant 2.000000e-01 : f32
    %113 = vector.broadcast %cst_49 : f32 to vector<8x512xf32>
    %114 = arith.mulf %113, %110 : vector<8x512xf32>
    %115 = arith.select %112, %110, %114 : vector<8x512xi1>, vector<8x512xf32>
    %c0_50 = arith.constant 0 : index
    %c0_51 = arith.constant 0 : index
    %c0_52 = arith.constant 0 : index
    %116 = vector.load %arg8[%c0_50, %c0_51, %c0_52] : memref<1x8x512xf32, #tpu.memory_space<vmem>>, vector<1x8x512xf32>
    %117 = vector.shape_cast %116 : vector<1x8x512xf32> to vector<8x512xf32>
    %118 = vector.shape_cast %115 : vector<8x512xf32> to vector<1x8x512xf32>
    tpu.vector_store %arg8[%c0_50, %c0_51, %c0_52], %118 {strides = array<i32>} : memref<1x8x512xf32, #tpu.memory_space<vmem>>, vector<1x8x512xf32>,
    return
  }
  func.func @transform_0(%arg0: i32) -> (i32, i32, i32) {
    %c0_i32 = arith.constant 0 : i32
    %c0_i32_0 = arith.constant 0 : i32
    %c0_i32_1 = arith.constant 0 : i32
    return %arg0, %c0_i32, %c0_i32_0 : i32, i32, i32
  }
  func.func @transform_1(%arg0: i32) -> (i32, i32) {
    %c0_i32 = arith.constant 0 : i32
    %c0_i32_0 = arith.constant 0 : i32
    %c0_i32_1 = arith.constant 0 : i32
    return %c0_i32, %c0_i32_0 : i32, i32
  }
  func.func @transform_2(%arg0: i32) -> (i32, i32) {
    %c0_i32 = arith.constant 0 : i32
    %c0_i32_0 = arith.constant 0 : i32
    %c0_i32_1 = arith.constant 0 : i32
    return %c0_i32, %c0_i32_0 : i32, i32
  }
  func.func @transform_3(%arg0: i32) -> (i32, i32) {
    %c0_i32 = arith.constant 0 : i32
    %c0_i32_0 = arith.constant 0 : i32
    %c0_i32_1 = arith.constant 0 : i32
    return %c0_i32, %c0_i32_0 : i32, i32
  }
  func.func @transform_4(%arg0: i32) -> (i32, i32) {
    %c0_i32 = arith.constant 0 : i32
    %c0_i32_0 = arith.constant 0 : i32
    %c0_i32_1 = arith.constant 0 : i32
    return %c0_i32, %c0_i32_0 : i32, i32
  }
  func.func @transform_5(%arg0: i32) -> (i32, i32) {
    %c0_i32 = arith.constant 0 : i32
    %c0_i32_0 = arith.constant 0 : i32
    %c0_i32_1 = arith.constant 0 : i32
    return %c0_i32, %c0_i32_0 : i32, i32
  }
  func.func @transform_6(%arg0: i32) -> (i32, i32) {
    %c0_i32 = arith.constant 0 : i32
    %c0_i32_0 = arith.constant 0 : i32
    %c0_i32_1 = arith.constant 0 : i32
    return %c0_i32, %c0_i32_0 : i32, i32
  }
  func.func @transform_7(%arg0: i32) -> (i32, i32, i32) {
    %c0_i32 = arith.constant 0 : i32
    %c0_i32_0 = arith.constant 0 : i32
    %c0_i32_1 = arith.constant 0 : i32
    return %arg0, %c0_i32, %c0_i32_0 : i32, i32, i32
  }
}

</mosaic_0001>

<llo_original>
// kernel: wgan_generator_forward.1
$region0: #{wgan_generator_forward.1}
  #allocation0 [shape = 'u32[]', space=smem, size = 0x4, offset = 0x4, fixed_abs, tag = 'smem constant byte address 0x4 - core index']
  #allocation1 [shape = 'u32[144,128]{1,0:T(1,128)}', space=vmem, size = 0x12000, scoped, tag = 'internal scratch']
  %s0 = inlined_call_operand.vmem [shape: bf16[2,8,400], index: 0, kind: input, shape index: {}]
  %s1 = inlined_call_operand.hbm [shape: bf16[400,256], index: 1, kind: input, shape index: {}]
  %s2 = inlined_call_operand.hbm [shape: bf16[256,256], index: 2, kind: input, shape index: {}]
  %s3 = inlined_call_operand.hbm [shape: bf16[256,512], index: 3, kind: input, shape index: {}]
  %s4 = inlined_call_operand.hbm [shape: bf16[512,1024], index: 4, kind: input, shape index: {}]
  %s5 = inlined_call_operand.hbm [shape: bf16[1024,512], index: 5, kind: input, shape index: {}]
  %s6 = inlined_call_operand.vmem [shape: f32[1,4352], index: 6, kind: input, shape index: {}]
  %s7 = inlined_call_operand.hbm [shape: f32[2,8,512], index: 7, kind: output, shape index: {}]
  %s8 = sld [smem:[#allocation0]]
  $region81: #{wgan_generator_forward.1} parent=0
    _
  %s10 = ssub.s32 1, %s8
  %s11 = scalar_select 0, %s10, %s8
  $region1: #{wgan_generator_forward.1} parent=0
    #allocation2 [shape = 'u8[204800]{0}', space=vmem, size = 0x32000, scoped, tag = 'input window, operand 1, single buffered']
    #allocation3 [shape = 's32[2]{0}', space=sflag, size = 0x8, scoped, tag = 'scoped memory for wgan_generator_forward.1']
    #allocation4 [shape = 's32[2]{0}', space=sflag, size = 0x8, scoped, tag = 'scoped memory for wgan_generator_forward.1']
    #allocation5 [shape = 'u8[131072]{0}', space=vmem, size = 0x20000, scoped, tag = 'input window, operand 2, single buffered']
    #allocation6 [shape = 's32[1]{0}', space=sflag, size = 0x4, scoped, tag = 'scoped memory for wgan_generator_forward.1']
    #allocation7 [shape = 'u8[262144]{0}', space=vmem, size = 0x40000, scoped, tag = 'input window, operand 3, single buffered']
    #allocation8 [shape = 'u8[1048576]{0}', space=vmem, size = 0x100000, scoped, tag = 'input window, operand 4, single buffered']
    #allocation9 [shape = 's32[1]{0}', space=sflag, size = 0x4, scoped, tag = 'scoped memory for wgan_generator_forward.1']
    #allocation10 [shape = 'u8[1048576]{0}', space=vmem, size = 0x100000, scoped, tag = 'input window, operand 5, single buffered']
    #allocation11 [shape = 'u8[32768]{0}', space=vmem, size = 0x8000, scoped, tag = 'output window, operand 0']
    %12 = vsyncpa [#allocation3], 0
    %13 = vsyncpa [#allocation6], 0
    %14 = vsyncpa [#allocation9], 0
    %15 = vsyncpa [#allocation4], 0
    %s16 = scalar_lea.sflag [#allocation4], 1
    %17 = vsyncpa %s16, 0
    loop: start=0, step=1, limit=4
    $region2: #{wgan_generator_forward.1} parent=1 // loop_pre_header
      _
    $region3: #{wgan_generator_forward.1} parent=1 // loop_header
      %s19 = sphi 0, %s23
      %p20 = scmp.ge.s32.totalorder %s19, 4
      %s29 = sphi 0, %s31
      %s32 = sphi 0, %s29
      %s33 = sphi 0, %s32
      %s49 = sphi 0, %s33
      %s53 = sphi 0, %s53
      %s55 = sphi 0, %s53
      %s56 = sphi 0, %s55
      %s70 = sphi 0, %s56
      %s74 = sphi 0, %s74
      %s76 = sphi 0, %s74
      %s77 = sphi 0, %s76
      %s91 = sphi 0, %s77
      %s95 = sphi 0, %s95
      %s97 = sphi 0, %s95
      %s98 = sphi 0, %s97
      %s112 = sphi 0, %s98
      %s116 = sphi 0, %s116
      %s118 = sphi 0, %s116
      %s119 = sphi 0, %s118
      %s133 = sphi 0, %s119
      %s137 = sphi 0, %s137
      %s139 = sphi 0, %s137
      %s140 = sphi 0, %s139
      %s154 = sphi 0, %s140
      %s158 = sphi 0, %s158
      %s160 = sphi 0, %s158
      %s161 = sphi 0, %s160
      %s175 = sphi 0, %s161
      %s181 = sphi 0, %s183
      %s184 = sphi 0, %s181
      %s185 = sphi 0, %s184
      %s201 = sphi 0, %s185
    $region4: #{wgan_generator_forward.1} parent=1 // loop_header_branch
      %22 = sbr.rel (%p20) target = $region8
    $region5: #{wgan_generator_forward.1} parent=1 // loop_body
      %s24 = ssub.s32 %s19, 1
      %s25 = ssub.s32 %s19, 2
      %s26 = sadd.s32 %s19, 1
      %s27 = ssub.s32 %s19, %s26
      %p28 = scmp.eq.s32.totalorder %s27, 0
      %s30 = sadd.s32 %s29, 1
      %s31 = scalar_select %p28, %s29, %s30
      %p34 = pneg %p28
      %p35 = scmp.eq.s32.totalorder %s19, 1
      %p36 = por %p34, %p35
      %p37 = scmp.ne.s32.totalorder %s29, %s32
      %p38 = scmp.eq.s32.totalorder %s19, 0
      %p39 = por %p37, %p38
      %p40 = scmp.ne.s32.totalorder %s29, %s32
      %p41 = scmp.eq.s32.totalorder %s24, 1
      %p42 = por %p40, %p41
      %p43 = scmp.ne.s32.totalorder %s32, %s33
      %p44 = scmp.eq.s32.totalorder %s24, 0
      %p45 = por %p43, %p44
      %p46 = scmp.ne.s32.totalorder %s32, %s33
      %p47 = scmp.eq.s32.totalorder %s25, 1
      %p48 = por %p46, %p47
      %p50 = scmp.ne.s32.totalorder %s33, %s49
      %p51 = scmp.eq.s32.totalorder %s25, 0
      %p52 = por %p50, %p51
      %s54 = sadd.s32 %s53, 1
      %p57 = scmp.eq.s32.totalorder %s19, 1
      %p58 = scmp.ne.s32.totalorder %s53, %s55
      %p59 = scmp.eq.s32.totalorder %s19, 0
      %p60 = por %p58, %p59
      %p61 = scmp.ne.s32.totalorder %s53, %s55
      %p62 = scmp.eq.s32.totalorder %s24, 1
      %p63 = por %p61, %p62
      %p64 = scmp.ne.s32.totalorder %s55, %s56
      %p65 = scmp.eq.s32.totalorder %s24, 0
      %p66 = por %p64, %p65
      %p67 = scmp.ne.s32.totalorder %s55, %s56
      %p68 = scmp.eq.s32.totalorder %s25, 1
      %p69 = por %p67, %p68
      %p71 = scmp.ne.s32.totalorder %s56, %s70
      %p72 = scmp.eq.s32.totalorder %s25, 0
      %p73 = por %p71, %p72
      %s75 = sadd.s32 %s74, 1
      %p78 = scmp.eq.s32.totalorder %s19, 1
      %p79 = scmp.ne.s32.totalorder %s74, %s76
      %p80 = scmp.eq.s32.totalorder %s19, 0
      %p81 = por %p79, %p80
      %p82 = scmp.ne.s32.totalorder %s74, %s76
      %p83 = scmp.eq.s32.totalorder %s24, 1
      %p84 = por %p82, %p83
      %p85 = scmp.ne.s32.totalorder %s76, %s77
      %p86 = scmp.eq.s32.totalorder %s24, 0
      %p87 = por %p85, %p86
      %p88 = scmp.ne.s32.totalorder %s76, %s77
      %p89 = scmp.eq.s32.totalorder %s25, 1
      %p90 = por %p88, %p89
      %p92 = scmp.ne.s32.totalorder %s77, %s91
      %p93 = scmp.eq.s32.totalorder %s25, 0
      %p94 = por %p92, %p93
      %s96 = sadd.s32 %s95, 1
      %p99 = scmp.eq.s32.totalorder %s19, 1
      %p100 = scmp.ne.s32.totalorder %s95, %s97
      %p101 = scmp.eq.s32.totalorder %s19, 0
      %p102 = por %p100, %p101
      %p103 = scmp.ne.s32.totalorder %s95, %s97
      %p104 = scmp.eq.s32.totalorder %s24, 1
      %p105 = por %p103, %p104
      %p106 = scmp.ne.s32.totalorder %s97, %s98
      %p107 = scmp.eq.s32.totalorder %s24, 0
      %p108 = por %p106, %p107
      %p109 = scmp.ne.s32.totalorder %s97, %s98
      %p110 = scmp.eq.s32.totalorder %s25, 1
      %p111 = por %p109, %p110
      %p113 = scmp.ne.s32.totalorder %s98, %s112
      %p114 = scmp.eq.s32.totalorder %s25, 0
      %p115 = por %p113, %p114
      %s117 = sadd.s32 %s116, 1
      %p120 = scmp.eq.s32.totalorder %s19, 1
      %p121 = scmp.ne.s32.totalorder %s116, %s118
      %p122 = scmp.eq.s32.totalorder %s19, 0
      %p123 = por %p121, %p122
      %p124 = scmp.ne.s32.totalorder %s116, %s118
      %p125 = scmp.eq.s32.totalorder %s24, 1
      %p126 = por %p124, %p125
      %p127 = scmp.ne.s32.totalorder %s118, %s119
      %p128 = scmp.eq.s32.totalorder %s24, 0
      %p129 = por %p127, %p128
      %p130 = scmp.ne.s32.totalorder %s118, %s119
      %p131 = scmp.eq.s32.totalorder %s25, 1
      %p132 = por %p130, %p131
      %p134 = scmp.ne.s32.totalorder %s119, %s133
      %p135 = scmp.eq.s32.totalorder %s25, 0
      %p136 = por %p134, %p135
      %s138 = sadd.s32 %s137, 1
      %p141 = scmp.eq.s32.totalorder %s19, 1
      %p142 = scmp.ne.s32.totalorder %s137, %s139
      %p143 = scmp.eq.s32.totalorder %s19, 0
      %p144 = por %p142, %p143
      %p145 = scmp.ne.s32.totalorder %s137, %s139
      %p146 = scmp.eq.s32.totalorder %s24, 1
      %p147 = por %p145, %p146
      %p148 = scmp.ne.s32.totalorder %s139, %s140
      %p149 = scmp.eq.s32.totalorder %s24, 0
      %p150 = por %p148, %p149
      %p151 = scmp.ne.s32.totalorder %s139, %s140
      %p152 = scmp.eq.s32.totalorder %s25, 1
      %p153 = por %p151, %p152
      %p155 = scmp.ne.s32.totalorder %s140, %s154
      %p156 = scmp.eq.s32.totalorder %s25, 0
      %p157 = por %p155, %p156
      %s159 = sadd.s32 %s158, 1
      %p162 = scmp.eq.s32.totalorder %s19, 1
      %p163 = scmp.ne.s32.totalorder %s158, %s160
      %p164 = scmp.eq.s32.totalorder %s19, 0
      %p165 = por %p163, %p164
      %p166 = scmp.ne.s32.totalorder %s158, %s160
      %p167 = scmp.eq.s32.totalorder %s24, 1
      %p168 = por %p166, %p167
      %p169 = scmp.ne.s32.totalorder %s160, %s161
      %p170 = scmp.eq.s32.totalorder %s24, 0
      %p171 = por %p169, %p170
      %p172 = scmp.ne.s32.totalorder %s160, %s161
      %p173 = scmp.eq.s32.totalorder %s25, 1
      %p174 = por %p172, %p173
      %p176 = scmp.ne.s32.totalorder %s161, %s175
      %p177 = scmp.eq.s32.totalorder %s25, 0
      %p178 = por %p176, %p177
      %s179 = ssub.s32 %s19, %s26
      %p180 = scmp.eq.s32.totalorder %s179, 0
      %s182 = sadd.s32 %s181, 1
      %s183 = scalar_select %p180, %s181, %s182
      %p186 = pneg %p180
      %p187 = scmp.eq.s32.totalorder %s19, 1
      %p188 = por %p186, %p187
      %p189 = scmp.ne.s32.totalorder %s181, %s184
      %p190 = scmp.eq.s32.totalorder %s19, 0
      %p191 = por %p189, %p190
      %p192 = scmp.ne.s32.totalorder %s181, %s184
      %p193 = scmp.eq.s32.totalorder %s24, 1
      %p194 = por %p192, %p193
      %p195 = scmp.ne.s32.totalorder %s184, %s185
      %p196 = scmp.eq.s32.totalorder %s24, 0
      %p197 = por %p195, %p196
      %p198 = scmp.ne.s32.totalorder %s184, %s185
      %p199 = scmp.eq.s32.totalorder %s25, 1
      %p200 = por %p198, %p199
      %p202 = scmp.ne.s32.totalorder %s185, %s201
      %p203 = scmp.eq.s32.totalorder %s25, 0
      %p204 = por %p202, %p203
      %p205 = scmp.le.s32.totalorder 1, %s19
      %p206 = scmp.lt.s32.totalorder %s19, 3
      %p207 = pnand %p205, %p206
      %p208 = pneg %p207
      // Predicated region
      $region9: #{wgan_generator_forward.1} parent=5 // pred_check
        _
      $region10: #{wgan_generator_forward.1} parent=5 // pred_check_branch
        %210 = sbr.rel (%p207) target = $region12
      $region11: #{wgan_generator_forward.1} parent=5 // pred_region
        %s211 = ssub.s32 %s19, 1
        // Predicated region
        $region13: #{wgan_generator_forward.1} parent=11 // pred_check
          %p212 = pneg %p66
        $region14: #{wgan_generator_forward.1} parent=11 // pred_check_branch
          %214 = sbr.rel (%p212) target = $region16
        $region15: #{wgan_generator_forward.1} parent=11 // pred_region
          %s216 = ssub.s32 6400, 6400
          %217 = vsyncadd [#allocation3], %s216
          %s218 = sshll.u32 [#allocation2], 4
          %s219 = int_to_ptr.vmem [resolvable:$true] %s218
          %224 = dma.hbm_to_vmem [thread:$0]  %s1, 6400, %s219, [#allocation3], 128, 128, 8
        $region16: #{wgan_generator_forward.1} parent=11 // pred_fallthru
          _
        // Predicated region
        $region17: #{wgan_generator_forward.1} parent=11 // pred_check
          %p225 = pneg %p87
        $region18: #{wgan_generator_forward.1} parent=11 // pred_check_branch
          %227 = sbr.rel (%p225) target = $region20
        $region19: #{wgan_generator_forward.1} parent=11 // pred_region
          %s229 = ssub.s32 4096, 4096
          %230 = vsyncadd [#allocation6], %s229
          %s231 = sshll.u32 [#allocation5], 4
          %s232 = int_to_ptr.vmem [resolvable:$true] %s231
          %237 = dma.hbm_to_vmem [thread:$0]  %s2, 4096, %s232, [#allocation6], 128, 128, 8
        $region20: #{wgan_generator_forward.1} parent=11 // pred_fallthru
          _
        // Predicated region
        $region21: #{wgan_generator_forward.1} parent=11 // pred_check
          %p238 = pneg %p108
        $region22: #{wgan_generator_forward.1} parent=11 // pred_check_branch
          %240 = sbr.rel (%p238) target = $region24
        $region23: #{wgan_generator_forward.1} parent=11 // pred_region
          %s242 = ssub.s32 8192, 8192
          %243 = vsyncadd [#allocation6], %s242
          %s244 = sshll.u32 [#allocation7], 4
          %s245 = int_to_ptr.vmem [resolvable:$true] %s244
          %250 = dma.hbm_to_vmem [thread:$0]  %s3, 8192, %s245, [#allocation6], 256, 256, 16
        $region24: #{wgan_generator_forward.1} parent=11 // pred_fallthru
          _
        // Predicated region
        $region25: #{wgan_generator_forward.1} parent=11 // pred_check
          %p251 = pneg %p129
        $region26: #{wgan_generator_forward.1} parent=11 // pred_check_branch
          %253 = sbr.rel (%p251) target = $region28
        $region27: #{wgan_generator_forward.1} parent=11 // pred_region
          %s255 = ssub.s32 32768, 32768
          %256 = vsyncadd [#allocation9], %s255
          %s257 = sshll.u32 [#allocation8], 4
          %s258 = int_to_ptr.vmem [resolvable:$true] %s257
          %263 = dma.hbm_to_vmem [thread:$0]  %s4, 32768, %s258, [#allocation9], 512, 512, 32
        $region28: #{wgan_generator_forward.1} parent=11 // pred_fallthru
          _
        // Predicated region
        $region29: #{wgan_generator_forward.1} parent=11 // pred_check
          %p264 = pneg %p150
        $region30: #{wgan_generator_forward.1} parent=11 // pred_check_branch
          %266 = sbr.rel (%p264) target = $region32
        $region31: #{wgan_generator_forward.1} parent=11 // pred_region
          %s268 = ssub.s32 32768, 32768
          %269 = vsyncadd [#allocation9], %s268
          %s270 = sshll.u32 [#allocation10], 4
          %s271 = int_to_ptr.vmem [resolvable:$true] %s270
          %276 = dma.hbm_to_vmem [thread:$0]  %s5, 32768, %s271, [#allocation9], 256, 256, 16
        $region32: #{wgan_generator_forward.1} parent=11 // pred_fallthru
          _
        // Predicated region
        $region33: #{wgan_generator_forward.1} parent=11 // pred_check
          %p277 = pneg %p171
        $region34: #{wgan_generator_forward.1} parent=11 // pred_check_branch
          %279 = sbr.rel (%p277) target = $region36
        $region35: #{wgan_generator_forward.1} parent=11 // pred_region
          _
        $region36: #{wgan_generator_forward.1} parent=11 // pred_fallthru
          _
      $region12: #{wgan_generator_forward.1} parent=5 // pred_fallthru
        _
      %p280 = scmp.lt.s32.totalorder %s19, 2
      // Predicated region
      $region37: #{wgan_generator_forward.1} parent=5 // pred_check
        %p281 = pneg %p280
      $region38: #{wgan_generator_forward.1} parent=5 // pred_check_branch
        %283 = sbr.rel (%p281) target = $region40
      $region39: #{wgan_generator_forward.1} parent=5 // pred_region
        // Predicated region
        $region41: #{wgan_generator_forward.1} parent=39 // pred_check
          %p284 = pneg %p39
        $region42: #{wgan_generator_forward.1} parent=39 // pred_check_branch
          %286 = sbr.rel (%p284) target = $region44
        $region43: #{wgan_generator_forward.1} parent=39 // pred_region
          %p287 = scmp.lt.s32.totalorder %s19, 1
          %s288 = scalar_select %p287, %s19, 1
          %s289 = smul.addr %s288, 4
          %s290 = smul.addr %s289, 4
          %s291 = scalar_lea.vmem %s0, %s290
        $region44: #{wgan_generator_forward.1} parent=39 // pred_fallthru
          _
      $region40: #{wgan_generator_forward.1} parent=5 // pred_fallthru
        _
      %p292 = scmp.le.s32.totalorder 1, %s19
      %p293 = scmp.lt.s32.totalorder %s19, 3
      %p294 = pnand %p292, %p293
      %p295 = pneg %p294
      // Predicated region
      $region45: #{wgan_generator_forward.1} parent=5 // pred_check
        _
      $region46: #{wgan_generator_forward.1} parent=5 // pred_check_branch
        %297 = sbr.rel (%p294) target = $region48
      $region47: #{wgan_generator_forward.1} parent=5 // pred_region
        %s298 = ssub.s32 %s19, 1
        // Predicated region
        $region49: #{wgan_generator_forward.1} parent=47 // pred_check
          %p299 = pneg %p66
        $region50: #{wgan_generator_forward.1} parent=47 // pred_check_branch
          %301 = sbr.rel (%p299) target = $region52
        $region51: #{wgan_generator_forward.1} parent=47 // pred_region
          %302 = dma.done [#allocation3], 6400
        $region52: #{wgan_generator_forward.1} parent=47 // pred_fallthru
          _
        // Predicated region
        $region53: #{wgan_generator_forward.1} parent=47 // pred_check
          %p303 = pneg %p87
        $region54: #{wgan_generator_forward.1} parent=47 // pred_check_branch
          %305 = sbr.rel (%p303) target = $region56
        $region55: #{wgan_generator_forward.1} parent=47 // pred_region
          %306 = dma.done [#allocation6], 4096
        $region56: #{wgan_generator_forward.1} parent=47 // pred_fallthru
          _
        // Predicated region
        $region57: #{wgan_generator_forward.1} parent=47 // pred_check
          %p307 = pneg %p108
        $region58: #{wgan_generator_forward.1} parent=47 // pred_check_branch
          %309 = sbr.rel (%p307) target = $region60
        $region59: #{wgan_generator_forward.1} parent=47 // pred_region
          %310 = dma.done [#allocation6], 8192
        $region60: #{wgan_generator_forward.1} parent=47 // pred_fallthru
          _
        // Predicated region
        $region61: #{wgan_generator_forward.1} parent=47 // pred_check
          %p311 = pneg %p129
        $region62: #{wgan_generator_forward.1} parent=47 // pred_check_branch
          %313 = sbr.rel (%p311) target = $region64
        $region63: #{wgan_generator_forward.1} parent=47 // pred_region
          %314 = dma.done [#allocation9], 32768
        $region64: #{wgan_generator_forward.1} parent=47 // pred_fallthru
          _
        // Predicated region
        $region65: #{wgan_generator_forward.1} parent=47 // pred_check
          %p315 = pneg %p150
        $region66: #{wgan_generator_forward.1} parent=47 // pred_check_branch
          %317 = sbr.rel (%p315) target = $region68
        $region67: #{wgan_generator_forward.1} parent=47 // pred_region
          %318 = dma.done [#allocation9], 32768
        $region68: #{wgan_generator_forward.1} parent=47 // pred_fallthru
          _
        %p319 = scmp.lt.s32.totalorder %s24, 1
        %s320 = scalar_select %p319, %s24, 1
        %s321 = smul.addr %s320, 4
        %s322 = smul.addr %s321, 4
        %s323 = scalar_lea.vmem %s0, %s322
        %p324 = pneg %p45
        %p325 = pneg %p42
        %p326 = pneg %p66
        %p327 = pneg %p63
        %p328 = pneg %p87
        %p329 = pneg %p84
        %p330 = pneg %p108
        %p331 = pneg %p105
        %p332 = pneg %p129
        %p333 = pneg %p126
        %p334 = pneg %p150
        %p335 = pneg %p147
        %p336 = pneg %p171
        %p337 = pneg %p168
        %p338 = pneg %p197
        %p339 = pneg %p194
        %s340 = sand.u32 %s184, 1
        %s341 = scalar_lea.sflag [#allocation4], %s340
        %s342 = sand.u32 %s184, 1
        %s343 = smul.addr %s342, 32
        %s344 = scalar_lea.vmem [#allocation11], %s343
        %p345 = scmp.lt.s32.totalorder %s24, 1
        %s346 = scalar_select %p345, %s24, 1
        %s347 = smul.addr %s346, 4
        %s348 = smul.addr %s347, 4
        %s349 = scalar_lea.vmem %s0, %s348
        %v351 = vld [vmem:[%s349] sm:$0xff]
        %v352 = vld [vmem:[%s349 + $0x8] sm:$0xff]
        %v353 = vld [vmem:[#allocation2] sm:$0xff]
        %v354 = vld [vmem:[#allocation2 + $0x8] sm:$0xff]
        %v355 = vld [vmem:[#allocation2 + $0x10] sm:$0xff]
        %v356 = vld [vmem:[#allocation2 + $0x18] sm:$0xff]
        %v357 = vld [vmem:[#allocation2 + $0x20] sm:$0xff]
        %v358 = vld [vmem:[#allocation2 + $0x28] sm:$0xff]
        %v359 = vld [vmem:[#allocation2 + $0x30] sm:$0xff]
        %v360 = vld [vmem:[#allocation2 + $0x38] sm:$0xff]
        %v361 = vld [vmem:[#allocation2 + $0x40] sm:$0xff]
        %v362 = vld [vmem:[#allocation2 + $0x48] sm:$0xff]
        %v363 = vld [vmem:[#allocation2 + $0x50] sm:$0xff]
        %v364 = vld [vmem:[#allocation2 + $0x58] sm:$0xff]
        %v365 = vld [vmem:[#allocation2 + $0x60] sm:$0xff]
        %v366 = vld [vmem:[#allocation2 + $0x68] sm:$0xff]
        %v367 = vld [vmem:[#allocation2 + $0x70] sm:$0xff]
        %v368 = vld [vmem:[#allocation2 + $0x78] sm:$0xff]
        %v369 = vld [vmem:[#allocation2 + $0x80] sm:$0xff]
        %v370 = vld [vmem:[#allocation2 + $0x88] sm:$0xff]
        %v371 = vld [vmem:[#allocation2 + $0x90] sm:$0xff]
        %v372 = vld [vmem:[#allocation2 + $0x98] sm:$0xff]
        %v373 = vld [vmem:[#allocation2 + $0xa0] sm:$0xff]
        %v374 = vld [vmem:[#allocation2 + $0xa8] sm:$0xff]
        %v375 = vld [vmem:[#allocation2 + $0xb0] sm:$0xff]
        %v376 = vld [vmem:[#allocation2 + $0xb8] sm:$0xff]
        %v377 = vld [vmem:[#allocation2 + $0xc0] sm:$0xff]
        %v378 = vld [vmem:[#allocation2 + $0xc8] sm:$0xff]
        %v379 = vld [vmem:[#allocation2 + $0xd0] sm:$0xff]
        %v380 = vld [vmem:[#allocation2 + $0xd8] sm:$0xff]
        %v381 = vld [vmem:[#allocation2 + $0xe0] sm:$0xff]
        %v382 = vld [vmem:[#allocation2 + $0xe8] sm:$0xff]
        %v383 = vld [vmem:[#allocation2 + $0xf0] sm:$0xff]
        %v384 = vld [vmem:[#allocation2 + $0xf8] sm:$0xff]
        %v385 = vld [vmem:[#allocation2 + $0x100] sm:$0xff]
        %v386 = vld [vmem:[#allocation2 + $0x108] sm:$0xff]
        %v387 = vld [vmem:[#allocation2 + $0x110] sm:$0xff]
        %v388 = vld [vmem:[#allocation2 + $0x118] sm:$0xff]
        %v389 = vld [vmem:[#allocation2 + $0x120] sm:$0xff]
        %v390 = vld [vmem:[#allocation2 + $0x128] sm:$0xff]
        %v391 = vld [vmem:[#allocation2 + $0x130] sm:$0xff]
        %v392 = vld [vmem:[#allocation2 + $0x138] sm:$0xff]
        %v393 = vld [vmem:[#allocation2 + $0x140] sm:$0xff]
        %v394 = vld [vmem:[#allocation2 + $0x148] sm:$0xff]
        %v395 = vld [vmem:[#allocation2 + $0x150] sm:$0xff]
        %v396 = vld [vmem:[#allocation2 + $0x158] sm:$0xff]
        %v397 = vld [vmem:[#allocation2 + $0x160] sm:$0xff]
        %v398 = vld [vmem:[#allocation2 + $0x168] sm:$0xff]
        %v399 = vld [vmem:[#allocation2 + $0x170] sm:$0xff]
        %v400 = vld [vmem:[#allocation2 + $0x178] sm:$0xff]
        %v401 = vld [vmem:[#allocation2 + $0x180] sm:$0xff]
        %v402 = vld [vmem:[#allocation2 + $0x188] sm:$0xff]
        %v403 = vld [vmem:[%s6] sm:$0x3]
        %v405 = vlaneseq
        %v406 = vshrl.u32 %v405, 7
        %v407 = vsub.s32 0, %v406
        %v408 = vrot.slane %v403, %v407
        %v409 = vlaneseq
        %v410 = vshrl.u32 %v409, 7
        %v411 = vsub.s32 1, %v410
        %v412 = vrot.slane %v403, %v411
        %v417 = vunpack.c.l.b16 %v351
        %v418 = vunpack.c.h.b16 %v351
        %v419 = vunpack.c.l.b16 %v352
        %v420 = vunpack.c.h.b16 %v352
        %v421 = vpack.c.b16 %v417, %v417
        %v422 = vpack.c.b16 %v418, %v418
        %v423 = vpack.c.b16 %v419, %v419
        %v424 = vpack.c.b16 %v420, %v420
        %v478 = vunpack.c.l.b16 %v353
        %v479 = vunpack.c.h.b16 %v353
        %v480 = vunpack.c.l.b16 %v354
        %v481 = vunpack.c.h.b16 %v354
        %v482 = vunpack.c.l.b16 %v355
        %v483 = vunpack.c.h.b16 %v355
        %v484 = vunpack.c.l.b16 %v356
        %v485 = vunpack.c.h.b16 %v356
        %v486 = vunpack.c.l.b16 %v357
        %v487 = vunpack.c.h.b16 %v357
        %v488 = vunpack.c.l.b16 %v358
        %v489 = vunpack.c.h.b16 %v358
        %v490 = vunpack.c.l.b16 %v359
        %v491 = vunpack.c.h.b16 %v359
        %v492 = vunpack.c.l.b16 %v360
        %v493 = vunpack.c.h.b16 %v360
        %v494 = vunpack.c.l.b16 %v361
        %v495 = vunpack.c.h.b16 %v361
        %v496 = vunpack.c.l.b16 %v362
        %v497 = vunpack.c.h.b16 %v362
        %v498 = vunpack.c.l.b16 %v363
        %v499 = vunpack.c.h.b16 %v363
        %v500 = vunpack.c.l.b16 %v364
        %v501 = vunpack.c.h.b16 %v364
        %v502 = vunpack.c.l.b16 %v365
        %v503 = vunpack.c.h.b16 %v365
        %v504 = vunpack.c.l.b16 %v366
        %v505 = vunpack.c.h.b16 %v366
        %v506 = vunpack.c.l.b16 %v367
        %v507 = vunpack.c.h.b16 %v367
        %v508 = vunpack.c.l.b16 %v368
        %v509 = vunpack.c.h.b16 %v368
        %v510 = vunpack.c.l.b16 %v369
        %v511 = vunpack.c.h.b16 %v369
        %v512 = vunpack.c.l.b16 %v370
        %v513 = vunpack.c.h.b16 %v370
        %v514 = vunpack.c.l.b16 %v371
        %v515 = vunpack.c.h.b16 %v371
        %v516 = vunpack.c.l.b16 %v372
        %v517 = vunpack.c.h.b16 %v372
        %v518 = vunpack.c.l.b16 %v373
        %v519 = vunpack.c.h.b16 %v373
        %v520 = vunpack.c.l.b16 %v374
        %v521 = vunpack.c.h.b16 %v374
        %v522 = vunpack.c.l.b16 %v375
        %v523 = vunpack.c.h.b16 %v375
        %v524 = vunpack.c.l.b16 %v376
        %v525 = vunpack.c.h.b16 %v376
        %v526 = vunpack.c.l.b16 %v377
        %v527 = vunpack.c.h.b16 %v377
        %v528 = vunpack.c.l.b16 %v378
        %v529 = vunpack.c.h.b16 %v378
        %v530 = vunpack.c.l.b16 %v379
        %v531 = vunpack.c.h.b16 %v379
        %v532 = vunpack.c.l.b16 %v380
        %v533 = vunpack.c.h.b16 %v380
        %v534 = vunpack.c.l.b16 %v381
        %v535 = vunpack.c.h.b16 %v381
        %v536 = vunpack.c.l.b16 %v382
        %v537 = vunpack.c.h.b16 %v382
        %v538 = vunpack.c.l.b16 %v383
        %v539 = vunpack.c.h.b16 %v383
        %v540 = vunpack.c.l.b16 %v384
        %v541 = vunpack.c.h.b16 %v384
        %v542 = vunpack.c.l.b16 %v385
        %v543 = vunpack.c.h.b16 %v385
        %v544 = vunpack.c.l.b16 %v386
        %v545 = vunpack.c.h.b16 %v386
        %v546 = vunpack.c.l.b16 %v387
        %v547 = vunpack.c.h.b16 %v387
        %v548 = vunpack.c.l.b16 %v388
        %v549 = vunpack.c.h.b16 %v388
        %v550 = vunpack.c.l.b16 %v389
        %v551 = vunpack.c.h.b16 %v389
        %v552 = vunpack.c.l.b16 %v390
        %v553 = vunpack.c.h.b16 %v390
        %v554 = vunpack.c.l.b16 %v391
        %v555 = vunpack.c.h.b16 %v391
        %v556 = vunpack.c.l.b16 %v392
        %v557 = vunpack.c.h.b16 %v392
        %v558 = vunpack.c.l.b16 %v393
        %v559 = vunpack.c.h.b16 %v393
        %v560 = vunpack.c.l.b16 %v394
        %v561 = vunpack.c.h.b16 %v394
        %v562 = vunpack.c.l.b16 %v395
        %v563 = vunpack.c.h.b16 %v395
        %v564 = vunpack.c.l.b16 %v396
        %v565 = vunpack.c.h.b16 %v396
        %v566 = vunpack.c.l.b16 %v397
        %v567 = vunpack.c.h.b16 %v397
        %v568 = vunpack.c.l.b16 %v398
        %v569 = vunpack.c.h.b16 %v398
        %v570 = vunpack.c.l.b16 %v399
        %v571 = vunpack.c.h.b16 %v399
        %v572 = vunpack.c.l.b16 %v400
        %v573 = vunpack.c.h.b16 %v400
        %v574 = vunpack.c.l.b16 %v401
        %v575 = vunpack.c.h.b16 %v401
        %v576 = vunpack.c.l.b16 %v402
        %v577 = vunpack.c.h.b16 %v402
        %v578 = vpack.c.b16 %v480, %v478
        %v579 = vpack.c.b16 %v481, %v479
        %v580 = vpack.c.b16 %v484, %v482
        %v581 = vpack.c.b16 %v485, %v483
        %v582 = vpack.c.b16 %v488, %v486
        %v583 = vpack.c.b16 %v489, %v487
        %v584 = vpack.c.b16 %v492, %v490
        %v585 = vpack.c.b16 %v493, %v491
        %v586 = vpack.c.b16 %v496, %v494
        %v587 = vpack.c.b16 %v497, %v495
        %v588 = vpack.c.b16 %v500, %v498
        %v589 = vpack.c.b16 %v501, %v499
        %v590 = vpack.c.b16 %v504, %v502
        %v591 = vpack.c.b16 %v505, %v503
        %v592 = vpack.c.b16 %v508, %v506
        %v593 = vpack.c.b16 %v509, %v507
        %v594 = vpack.c.b16 %v512, %v510
        %v595 = vpack.c.b16 %v513, %v511
        %v596 = vpack.c.b16 %v516, %v514
        %v597 = vpack.c.b16 %v517, %v515
        %v598 = vpack.c.b16 %v520, %v518
        %v599 = vpack.c.b16 %v521, %v519
        %v600 = vpack.c.b16 %v524, %v522
        %v601 = vpack.c.b16 %v525, %v523
        %v602 = vpack.c.b16 %v528, %v526
        %v603 = vpack.c.b16 %v529, %v527
        %v604 = vpack.c.b16 %v532, %v530
        %v605 = vpack.c.b16 %v533, %v531
        %v606 = vpack.c.b16 %v536, %v534
        %v607 = vpack.c.b16 %v537, %v535
        %v608 = vpack.c.b16 %v540, %v538
        %v609 = vpack.c.b16 %v541, %v539
        %v610 = vpack.c.b16 %v544, %v542
        %v611 = vpack.c.b16 %v545, %v543
        %v612 = vpack.c.b16 %v548, %v546
        %v613 = vpack.c.b16 %v549, %v547
        %v614 = vpack.c.b16 %v552, %v550
        %v615 = vpack.c.b16 %v553, %v551
        %v616 = vpack.c.b16 %v556, %v554
        %v617 = vpack.c.b16 %v557, %v555
        %v618 = vpack.c.b16 %v560, %v558
        %v619 = vpack.c.b16 %v561, %v559
        %v620 = vpack.c.b16 %v564, %v562
        %v621 = vpack.c.b16 %v565, %v563
        %v622 = vpack.c.b16 %v568, %v566
        %v623 = vpack.c.b16 %v569, %v567
        %v624 = vpack.c.b16 %v572, %v570
        %v625 = vpack.c.b16 %v573, %v571
        %v626 = vpack.c.b16 %v576, %v574
        %v627 = vpack.c.b16 %v577, %v575
        %vm678 = vcmask 130048
        %v680 = vsel %vm678, %v424, 0
        %682 = vmatprep.subr.bf16.mxu0 %v593
        %683 = vmatpush1.bf16.msra.mxu0 %v592
        %684 = vmatprep.subr.bf16.mxu0 %v591
        %685 = vmatpush1.bf16.msra.mxu0 %v590
        %686 = vmatprep.subr.bf16.mxu0 %v589
        %687 = vmatpush1.bf16.msra.mxu0 %v588
        %688 = vmatprep.subr.bf16.mxu0 %v587
        %689 = vmatpush1.bf16.msra.mxu0 %v586
        %690 = vmatprep.subr.bf16.mxu0 %v585
        %691 = vmatpush1.bf16.msra.mxu0 %v584
        %692 = vmatprep.subr.bf16.mxu0 %v583
        %693 = vmatpush1.bf16.msra.mxu0 %v582
        %694 = vmatprep.subr.bf16.mxu0 %v581
        %695 = vmatpush1.bf16.msra.mxu0 %v580
        %696 = vmatprep.subr.bf16.mxu0 %v579
        %697 = vmatpush1.bf16.msra.mxu0 %v578
        %698 = vmatprep.subr.bf16.mxu0 %v609
        %699 = vmatpush2.bf16.msra.mxu0 %v608
        %700 = vmatprep.subr.bf16.mxu0 %v607
        %701 = vmatpush2.bf16.msra.mxu0 %v606
        %702 = vmatprep.subr.bf16.mxu0 %v605
        %703 = vmatpush2.bf16.msra.mxu0 %v604
        %704 = vmatprep.subr.bf16.mxu0 %v603
        %705 = vmatpush2.bf16.msra.mxu0 %v602
        %706 = vmatprep.subr.bf16.mxu0 %v601
        %707 = vmatpush2.bf16.msra.mxu0 %v600
        %708 = vmatprep.subr.bf16.mxu0 %v599
        %709 = vmatpush2.bf16.msra.mxu0 %v598
        %710 = vmatprep.subr.bf16.mxu0 %v597
        %711 = vmatpush2.bf16.msra.mxu0 %v596
        %712 = vmatprep.subr.bf16.mxu0 %v595
        %713 = vmatpush2.bf16.msra.mxu0 %v594
        %714 = vmatprep.mubr.bf16.mxu0 %v422
        %715 = vmatmul.mubr.bf16.gmra.mxu0 %v421
        %v716 = vpop.f32.mrf.mxu0
        %v717 = vadd.f32 %v408, %v716
        %v718 = vpop.f32.mrf.mxu0
        %v719 = vadd.f32 %v412, %v718
        %v720 = vpop.f32.mrf.mxu0
        %v721 = vpop.f32.mrf.mxu0
        %722 = vdwg.mxu0
        %723 = vmatprep.subr.bf16.mxu0 %v625
        %724 = vmatpush1.bf16.msra.mxu0 %v624
        %725 = vmatprep.subr.bf16.mxu0 %v623
        %726 = vmatpush1.bf16.msra.mxu0 %v622
        %727 = vmatprep.subr.bf16.mxu0 %v621
        %728 = vmatpush1.bf16.msra.mxu0 %v620
        %729 = vmatprep.subr.bf16.mxu0 %v619
        %730 = vmatpush1.bf16.msra.mxu0 %v618
        %731 = vmatprep.subr.bf16.mxu0 %v617
        %732 = vmatpush1.bf16.msra.mxu0 %v616
        %733 = vmatprep.subr.bf16.mxu0 %v615
        %734 = vmatpush1.bf16.msra.mxu0 %v614
        %735 = vmatprep.subr.bf16.mxu0 %v613
        %736 = vmatpush1.bf16.msra.mxu0 %v612
        %737 = vmatprep.subr.bf16.mxu0 %v611
        %738 = vmatpush1.bf16.msra.mxu0 %v610
        %739 = vmatprep.subr.bf16.mxu0 0
        %740 = vmatpush2.bf16.msra.mxu0 0
        %741 = vmatprep.subr.bf16.mxu0 0
        %742 = vmatpush2.bf16.msra.mxu0 0
        %743 = vmatprep.subr.bf16.mxu0 0
        %744 = vmatpush2.bf16.msra.mxu0 0
        %745 = vmatprep.subr.bf16.mxu0 0
        %746 = vmatpush2.bf16.msra.mxu0 0
        %747 = vmatprep.subr.bf16.mxu0 0
        %748 = vmatpush2.bf16.msra.mxu0 0
        %749 = vmatprep.subr.bf16.mxu0 0
        %750 = vmatpush2.bf16.msra.mxu0 0
        %751 = vmatprep.subr.bf16.mxu0 0
        %752 = vmatpush2.bf16.msra.mxu0 0
        %753 = vmatprep.subr.bf16.mxu0 %v627
        %754 = vmatpush2.bf16.msra.mxu0 %v626
        %755 = vmatprep.mubr.bf16.mxu0 %v680
        %756 = vmatmul.mubr.bf16.gmra.mxu0 %v423
        %v757 = vpop.f32.mrf.mxu0
        %v758 = vadd.f32 %v717, %v757
        %v759 = vpop.f32.mrf.mxu0
        %v760 = vadd.f32 %v719, %v759
        %v761 = vpop.f32.mrf.mxu0
        %v762 = vpop.f32.mrf.mxu0
        %763 = vdwg.mxu0
        %vm764 = vcmp.gt.f32.partialorder %v758, 0.0
        %vm765 = vcmp.gt.f32.partialorder %v760, 0.0
        %v766 = vmul.f32 %v758, 0.2
        %v767 = vmul.f32 %v760, 0.2
        %v768 = vsel %vm764, %v758, %v766
        %v769 = vsel %vm765, %v760, %v767
        %v770 = vpack.c.bf16 %v768, %v768
        %v771 = vpack.c.bf16 %v769, %v769
        %v772 = vld [vmem:[#allocation5] sm:$0xff]
        %v773 = vld [vmem:[#allocation5 + $0x8] sm:$0xff]
        %v774 = vld [vmem:[#allocation5 + $0x10] sm:$0xff]
        %v775 = vld [vmem:[#allocation5 + $0x18] sm:$0xff]
        %v776 = vld [vmem:[#allocation5 + $0x20] sm:$0xff]
        %v777 = vld [vmem:[#allocation5 + $0x28] sm:$0xff]
        %v778 = vld [vmem:[#allocation5 + $0x30] sm:$0xff]
        %v779 = vld [vmem:[#allocation5 + $0x38] sm:$0xff]
        %v780 = vld [vmem:[#allocation5 + $0x40] sm:$0xff]
        %v781 = vld [vmem:[#allocation5 + $0x48] sm:$0xff]
        %v782 = vld [vmem:[#allocation5 + $0x50] sm:$0xff]
        %v783 = vld [vmem:[#allocation5 + $0x58] sm:$0xff]
        %v784 = vld [vmem:[#allocation5 + $0x60] sm:$0xff]
        %v785 = vld [vmem:[#allocation5 + $0x68] sm:$0xff]
        %v786 = vld [vmem:[#allocation5 + $0x70] sm:$0xff]
        %v787 = vld [vmem:[#allocation5 + $0x78] sm:$0xff]
        %v788 = vld [vmem:[#allocation5 + $0x80] sm:$0xff]
        %v789 = vld [vmem:[#allocation5 + $0x88] sm:$0xff]
        %v790 = vld [vmem:[#allocation5 + $0x90] sm:$0xff]
        %v791 = vld [vmem:[#allocation5 + $0x98] sm:$0xff]
        %v792 = vld [vmem:[#allocation5 + $0xa0] sm:$0xff]
        %v793 = vld [vmem:[#allocation5 + $0xa8] sm:$0xff]
        %v794 = vld [vmem:[#allocation5 + $0xb0] sm:$0xff]
        %v795 = vld [vmem:[#allocation5 + $0xb8] sm:$0xff]
        %v796 = vld [vmem:[#allocation5 + $0xc0] sm:$0xff]
        %v797 = vld [vmem:[#allocation5 + $0xc8] sm:$0xff]
        %v798 = vld [vmem:[#allocation5 + $0xd0] sm:$0xff]
        %v799 = vld [vmem:[#allocation5 + $0xd8] sm:$0xff]
        %v800 = vld [vmem:[#allocation5 + $0xe0] sm:$0xff]
        %v801 = vld [vmem:[#allocation5 + $0xe8] sm:$0xff]
        %v802 = vld [vmem:[#allocation5 + $0xf0] sm:$0xff]
        %v803 = vld [vmem:[#allocation5 + $0xf8] sm:$0xff]
        %v836 = vunpack.c.l.b16 %v772
        %v837 = vunpack.c.h.b16 %v772
        %v838 = vunpack.c.l.b16 %v773
        %v839 = vunpack.c.h.b16 %v773
        %v840 = vunpack.c.l.b16 %v774
        %v841 = vunpack.c.h.b16 %v774
        %v842 = vunpack.c.l.b16 %v775
        %v843 = vunpack.c.h.b16 %v775
        %v844 = vunpack.c.l.b16 %v776
        %v845 = vunpack.c.h.b16 %v776
        %v846 = vunpack.c.l.b16 %v777
        %v847 = vunpack.c.h.b16 %v777
        %v848 = vunpack.c.l.b16 %v778
        %v849 = vunpack.c.h.b16 %v778
        %v850 = vunpack.c.l.b16 %v779
        %v851 = vunpack.c.h.b16 %v779
        %v852 = vunpack.c.l.b16 %v780
        %v853 = vunpack.c.h.b16 %v780
        %v854 = vunpack.c.l.b16 %v781
        %v855 = vunpack.c.h.b16 %v781
        %v856 = vunpack.c.l.b16 %v782
        %v857 = vunpack.c.h.b16 %v782
        %v858 = vunpack.c.l.b16 %v783
        %v859 = vunpack.c.h.b16 %v783
        %v860 = vunpack.c.l.b16 %v784
        %v861 = vunpack.c.h.b16 %v784
        %v862 = vunpack.c.l.b16 %v785
        %v863 = vunpack.c.h.b16 %v785
        %v864 = vunpack.c.l.b16 %v786
        %v865 = vunpack.c.h.b16 %v786
        %v866 = vunpack.c.l.b16 %v787
        %v867 = vunpack.c.h.b16 %v787
        %v868 = vunpack.c.l.b16 %v788
        %v869 = vunpack.c.h.b16 %v788
        %v870 = vunpack.c.l.b16 %v789
        %v871 = vunpack.c.h.b16 %v789
        %v872 = vunpack.c.l.b16 %v790
        %v873 = vunpack.c.h.b16 %v790
        %v874 = vunpack.c.l.b16 %v791
        %v875 = vunpack.c.h.b16 %v791
        %v876 = vunpack.c.l.b16 %v792
        %v877 = vunpack.c.h.b16 %v792
        %v878 = vunpack.c.l.b16 %v793
        %v879 = vunpack.c.h.b16 %v793
        %v880 = vunpack.c.l.b16 %v794
        %v881 = vunpack.c.h.b16 %v794
        %v882 = vunpack.c.l.b16 %v795
        %v883 = vunpack.c.h.b16 %v795
        %v884 = vunpack.c.l.b16 %v796
        %v885 = vunpack.c.h.b16 %v796
        %v886 = vunpack.c.l.b16 %v797
        %v887 = vunpack.c.h.b16 %v797
        %v888 = vunpack.c.l.b16 %v798
        %v889 = vunpack.c.h.b16 %v798
        %v890 = vunpack.c.l.b16 %v799
        %v891 = vunpack.c.h.b16 %v799
        %v892 = vunpack.c.l.b16 %v800
        %v893 = vunpack.c.h.b16 %v800
        %v894 = vunpack.c.l.b16 %v801
        %v895 = vunpack.c.h.b16 %v801
        %v896 = vunpack.c.l.b16 %v802
        %v897 = vunpack.c.h.b16 %v802
        %v898 = vunpack.c.l.b16 %v803
        %v899 = vunpack.c.h.b16 %v803
        %v900 = vpack.c.b16 %v838, %v836
        %v901 = vpack.c.b16 %v839, %v837
        %v902 = vpack.c.b16 %v842, %v840
        %v903 = vpack.c.b16 %v843, %v841
        %v904 = vpack.c.b16 %v846, %v844
        %v905 = vpack.c.b16 %v847, %v845
        %v906 = vpack.c.b16 %v850, %v848
        %v907 = vpack.c.b16 %v851, %v849
        %v908 = vpack.c.b16 %v854, %v852
        %v909 = vpack.c.b16 %v855, %v853
        %v910 = vpack.c.b16 %v858, %v856
        %v911 = vpack.c.b16 %v859, %v857
        %v912 = vpack.c.b16 %v862, %v860
        %v913 = vpack.c.b16 %v863, %v861
        %v914 = vpack.c.b16 %v866, %v864
        %v915 = vpack.c.b16 %v867, %v865
        %v916 = vpack.c.b16 %v870, %v868
        %v917 = vpack.c.b16 %v871, %v869
        %v918 = vpack.c.b16 %v874, %v872
        %v919 = vpack.c.b16 %v875, %v873
        %v920 = vpack.c.b16 %v878, %v876
        %v921 = vpack.c.b16 %v879, %v877
        %v922 = vpack.c.b16 %v882, %v880
        %v923 = vpack.c.b16 %v883, %v881
        %v924 = vpack.c.b16 %v886, %v884
        %v925 = vpack.c.b16 %v887, %v885
        %v926 = vpack.c.b16 %v890, %v888
        %v927 = vpack.c.b16 %v891, %v889
        %v928 = vpack.c.b16 %v894, %v892
        %v929 = vpack.c.b16 %v895, %v893
        %v930 = vpack.c.b16 %v898, %v896
        %v931 = vpack.c.b16 %v899, %v897
        %964 = vmatprep.subr.bf16.mxu0 %v915
        %965 = vmatpush1.bf16.msra.mxu0 %v914
        %966 = vmatprep.subr.bf16.mxu0 %v913
        %967 = vmatpush1.bf16.msra.mxu0 %v912
        %968 = vmatprep.subr.bf16.mxu0 %v911
        %969 = vmatpush1.bf16.msra.mxu0 %v910
        %970 = vmatprep.subr.bf16.mxu0 %v909
        %971 = vmatpush1.bf16.msra.mxu0 %v908
        %972 = vmatprep.subr.bf16.mxu0 %v907
        %973 = vmatpush1.bf16.msra.mxu0 %v906
        %974 = vmatprep.subr.bf16.mxu0 %v905
        %975 = vmatpush1.bf16.msra.mxu0 %v904
        %976 = vmatprep.subr.bf16.mxu0 %v903
        %977 = vmatpush1.bf16.msra.mxu0 %v902
        %978 = vmatprep.subr.bf16.mxu0 %v901
        %979 = vmatpush1.bf16.msra.mxu0 %v900
        %980 = vmatprep.subr.bf16.mxu0 %v931
        %981 = vmatpush2.bf16.msra.mxu0 %v930
        %982 = vmatprep.subr.bf16.mxu0 %v929
        %983 = vmatpush2.bf16.msra.mxu0 %v928
        %984 = vmatprep.subr.bf16.mxu0 %v927
        %985 = vmatpush2.bf16.msra.mxu0 %v926
        %986 = vmatprep.subr.bf16.mxu0 %v925
        %987 = vmatpush2.bf16.msra.mxu0 %v924
        %988 = vmatprep.subr.bf16.mxu0 %v923
        %989 = vmatpush2.bf16.msra.mxu0 %v922
        %990 = vmatprep.subr.bf16.mxu0 %v921
        %991 = vmatpush2.bf16.msra.mxu0 %v920
        %992 = vmatprep.subr.bf16.mxu0 %v919
        %993 = vmatpush2.bf16.msra.mxu0 %v918
        %994 = vmatprep.subr.bf16.mxu0 %v917
        %995 = vmatpush2.bf16.msra.mxu0 %v916
        %996 = vmatprep.mubr.bf16.mxu0 %v771
        %997 = vmatmul.mubr.bf16.gmra.mxu0 %v770
        %v998 = vpop.f32.mrf.mxu0
        %v999 = vadd.f32 0.0, %v998
        %v1000 = vpop.f32.mrf.mxu0
        %v1001 = vadd.f32 0.0, %v1000
        %v1002 = vpop.f32.mrf.mxu0
        %v1003 = vpop.f32.mrf.mxu0
        %1004 = vdwg.mxu0
        %v1005 = vld [vmem:[%s6 + $0x2] sm:$0x3]
        %v1006 = vld [vmem:[%s6 + $0x4] sm:$0x3]
        %v1007 = vrot.slane %v999, 4
        %v1008 = vadd.f32 %v999, %v1007
        %v1009 = vrot.slane %v1008, 2
        %v1010 = vadd.f32 %v1008, %v1009
        %v1011 = vrot.slane %v1010, 1
        %v1012 = vadd.f32 %v1010, %v1011
        %v1013 = vrot.slane %v1001, 4
        %v1014 = vadd.f32 %v1001, %v1013
        %v1015 = vrot.slane %v1014, 2
        %v1016 = vadd.f32 %v1014, %v1015
        %v1017 = vrot.slane %v1016, 1
        %v1018 = vadd.f32 %v1016, %v1017
        %v1019 = vrcp.pop 8.0
        %v1020 = vmul.f32 %v1012, %v1019
        %v1021 = vmul.f32 %v1018, %v1019
        %v1022 = vmul.f32 %v999, %v999
        %v1023 = vmul.f32 %v1001, %v1001
        %v1024 = vrot.slane %v1022, 4
        %v1025 = vadd.f32 %v1022, %v1024
        %v1026 = vrot.slane %v1025, 2
        %v1027 = vadd.f32 %v1025, %v1026
        %v1028 = vrot.slane %v1027, 1
        %v1029 = vadd.f32 %v1027, %v1028
        %v1030 = vrot.slane %v1023, 4
        %v1031 = vadd.f32 %v1023, %v1030
        %v1032 = vrot.slane %v1031, 2
        %v1033 = vadd.f32 %v1031, %v1032
        %v1034 = vrot.slane %v1033, 1
        %v1035 = vadd.f32 %v1033, %v1034
        %v1036 = vmul.f32 %v1029, %v1019
        %v1037 = vmul.f32 %v1035, %v1019
        %v1038 = vmul.f32 %v1020, %v1020
        %v1039 = vmul.f32 %v1021, %v1021
        %v1040 = vsub.f32 %v1036, %v1038
        %v1041 = vsub.f32 %v1037, %v1039
        %v1042 = vadd.f32 %v1040, 0.8
        %v1043 = vadd.f32 %v1041, 0.8
        %v1044 = vrsqrt.pop %v1042
        %v1045 = vrsqrt.pop %v1043
        %v1048 = vcombine.low %v1044, %v1045
        %v1050 = vunpack.c.l.s4 1966171168
        %v1051 = vunpack.c.0.s8 %v1050
        %v1052 = vlaneseq
        %v1053 = vshrl.u32 %v1052, 7
        %v1054 = vsub.s32 %v1051, %v1053
        %v1055 = vrot.slane %v1048, %v1054
        %v1057 = vunpack.c.l.s4 1966171168
        %v1058 = vunpack.c.0.s8 %v1057
        %v1059 = vlaneseq
        %v1060 = vshrl.u32 %v1059, 7
        %v1061 = vsub.s32 %v1058, %v1060
        %v1062 = vrot.slane %v1055, %v1061
        %v1064 = vmul.f32 %v1005, %v1062
        %v1066 = vlaneseq
        %v1067 = vshrl.u32 %v1066, 7
        %v1068 = vsub.s32 0, %v1067
        %v1069 = vrot.slane %v1064, %v1068
        %v1070 = vlaneseq
        %v1071 = vshrl.u32 %v1070, 7
        %v1072 = vsub.s32 1, %v1071
        %v1073 = vrot.slane %v1064, %v1072
        %v1076 = vmul.f32 %v1020, %v1069
        %v1077 = vmul.f32 %v1021, %v1073
        %v1080 = vcombine.low %v1076, %v1077
        %v1082 = vunpack.c.l.s4 1966171168
        %v1083 = vunpack.c.0.s8 %v1082
        %v1084 = vlaneseq
        %v1085 = vshrl.u32 %v1084, 7
        %v1086 = vsub.s32 %v1083, %v1085
        %v1087 = vrot.slane %v1080, %v1086
        %v1089 = vunpack.c.l.s4 1966171168
        %v1090 = vunpack.c.0.s8 %v1089
        %v1091 = vlaneseq
        %v1092 = vshrl.u32 %v1091, 7
        %v1093 = vsub.s32 %v1090, %v1092
        %v1094 = vrot.slane %v1087, %v1093
        %v1096 = vsub.f32 %v1006, %v1094
        %v1097 = vmul.f32 %v999, %v1069
        %v1098 = vmul.f32 %v1001, %v1073
        %v1100 = vlaneseq
        %v1101 = vshrl.u32 %v1100, 7
        %v1102 = vsub.s32 0, %v1101
        %v1103 = vrot.slane %v1096, %v1102
        %v1104 = vlaneseq
        %v1105 = vshrl.u32 %v1104, 7
        %v1106 = vsub.s32 1, %v1105
        %v1107 = vrot.slane %v1096, %v1106
        %v1110 = vadd.f32 %v1097, %v1103
        %v1111 = vadd.f32 %v1098, %v1107
        %vm1112 = vcmp.gt.f32.partialorder %v1110, 0.0
        %vm1113 = vcmp.gt.f32.partialorder %v1111, 0.0
        %v1114 = vmul.f32 %v1110, 0.2
        %v1115 = vmul.f32 %v1111, 0.2
        %v1116 = vsel %vm1112, %v1110, %v1114
        %v1117 = vsel %vm1113, %v1111, %v1115
        %v1118 = vpack.c.bf16 %v1116, %v1116
        %v1119 = vpack.c.bf16 %v1117, %v1117
        %v1120 = vld [vmem:[#allocation7] sm:$0xff]
        %v1121 = vld [vmem:[#allocation7 + $0x8] sm:$0xff]
        %v1122 = vld [vmem:[#allocation7 + $0x10] sm:$0xff]
        %v1123 = vld [vmem:[#allocation7 + $0x18] sm:$0xff]
        %v1124 = vld [vmem:[#allocation7 + $0x20] sm:$0xff]
        %v1125 = vld [vmem:[#allocation7 + $0x28] sm:$0xff]
        %v1126 = vld [vmem:[#allocation7 + $0x30] sm:$0xff]
        %v1127 = vld [vmem:[#allocation7 + $0x38] sm:$0xff]
        %v1128 = vld [vmem:[#allocation7 + $0x40] sm:$0xff]
        %v1129 = vld [vmem:[#allocation7 + $0x48] sm:$0xff]
        %v1130 = vld [vmem:[#allocation7 + $0x50] sm:$0xff]
        %v1131 = vld [vmem:[#allocation7 + $0x58] sm:$0xff]
        %v1132 = vld [vmem:[#allocation7 + $0x60] sm:$0xff]
        %v1133 = vld [vmem:[#allocation7 + $0x68] sm:$0xff]
        %v1134 = vld [vmem:[#allocation7 + $0x70] sm:$0xff]
        %v1135 = vld [vmem:[#allocation7 + $0x78] sm:$0xff]
        %v1136 = vld [vmem:[#allocation7 + $0x80] sm:$0xff]
        %v1137 = vld [vmem:[#allocation7 + $0x88] sm:$0xff]
        %v1138 = vld [vmem:[#allocation7 + $0x90] sm:$0xff]
        %v1139 = vld [vmem:[#allocation7 + $0x98] sm:$0xff]
        %v1140 = vld [vmem:[#allocation7 + $0xa0] sm:$0xff]
        %v1141 = vld [vmem:[#allocation7 + $0xa8] sm:$0xff]
        %v1142 = vld [vmem:[#allocation7 + $0xb0] sm:$0xff]
        %v1143 = vld [vmem:[#allocation7 + $0xb8] sm:$0xff]
        %v1144 = vld [vmem:[#allocation7 + $0xc0] sm:$0xff]
        %v1145 = vld [vmem:[#allocation7 + $0xc8] sm:$0xff]
        %v1146 = vld [vmem:[#allocation7 + $0xd0] sm:$0xff]
        %v1147 = vld [vmem:[#allocation7 + $0xd8] sm:$0xff]
        %v1148 = vld [vmem:[#allocation7 + $0xe0] sm:$0xff]
        %v1149 = vld [vmem:[#allocation7 + $0xe8] sm:$0xff]
        %v1150 = vld [vmem:[#allocation7 + $0xf0] sm:$0xff]
        %v1151 = vld [vmem:[#allocation7 + $0xf8] sm:$0xff]
        %v1152 = vld [vmem:[#allocation7 + $0x100] sm:$0xff]
        %v1153 = vld [vmem:[#allocation7 + $0x108] sm:$0xff]
        %v1154 = vld [vmem:[#allocation7 + $0x110] sm:$0xff]
        %v1155 = vld [vmem:[#allocation7 + $0x118] sm:$0xff]
        %v1156 = vld [vmem:[#allocation7 + $0x120] sm:$0xff]
        %v1157 = vld [vmem:[#allocation7 + $0x128] sm:$0xff]
        %v1158 = vld [vmem:[#allocation7 + $0x130] sm:$0xff]
        %v1159 = vld [vmem:[#allocation7 + $0x138] sm:$0xff]
        %v1160 = vld [vmem:[#allocation7 + $0x140] sm:$0xff]
        %v1161 = vld [vmem:[#allocation7 + $0x148] sm:$0xff]
        %v1162 = vld [vmem:[#allocation7 + $0x150] sm:$0xff]
        %v1163 = vld [vmem:[#allocation7 + $0x158] sm:$0xff]
        %v1164 = vld [vmem:[#allocation7 + $0x160] sm:$0xff]
        %v1165 = vld [vmem:[#allocation7 + $0x168] sm:$0xff]
        %v1166 = vld [vmem:[#allocation7 + $0x170] sm:$0xff]
        %v1167 = vld [vmem:[#allocation7 + $0x178] sm:$0xff]
        %v1168 = vld [vmem:[#allocation7 + $0x180] sm:$0xff]
        %v1169 = vld [vmem:[#allocation7 + $0x188] sm:$0xff]
        %v1170 = vld [vmem:[#allocation7 + $0x190] sm:$0xff]
        %v1171 = vld [vmem:[#allocation7 + $0x198] sm:$0xff]
        %v1172 = vld [vmem:[#allocation7 + $0x1a0] sm:$0xff]
        %v1173 = vld [vmem:[#allocation7 + $0x1a8] sm:$0xff]
        %v1174 = vld [vmem:[#allocation7 + $0x1b0] sm:$0xff]
        %v1175 = vld [vmem:[#allocation7 + $0x1b8] sm:$0xff]
        %v1176 = vld [vmem:[#allocation7 + $0x1c0] sm:$0xff]
        %v1177 = vld [vmem:[#allocation7 + $0x1c8] sm:$0xff]
        %v1178 = vld [vmem:[#allocation7 + $0x1d0] sm:$0xff]
        %v1179 = vld [vmem:[#allocation7 + $0x1d8] sm:$0xff]
        %v1180 = vld [vmem:[#allocation7 + $0x1e0] sm:$0xff]
        %v1181 = vld [vmem:[#allocation7 + $0x1e8] sm:$0xff]
        %v1182 = vld [vmem:[#allocation7 + $0x1f0] sm:$0xff]
        %v1183 = vld [vmem:[#allocation7 + $0x1f8] sm:$0xff]
        %v1248 = vunpack.c.l.b16 %v1120
        %v1249 = vunpack.c.h.b16 %v1120
        %v1250 = vunpack.c.l.b16 %v1121
        %v1251 = vunpack.c.h.b16 %v1121
        %v1252 = vunpack.c.l.b16 %v1122
        %v1253 = vunpack.c.h.b16 %v1122
        %v1254 = vunpack.c.l.b16 %v1123
        %v1255 = vunpack.c.h.b16 %v1123
        %v1256 = vunpack.c.l.b16 %v1124
        %v1257 = vunpack.c.h.b16 %v1124
        %v1258 = vunpack.c.l.b16 %v1125
        %v1259 = vunpack.c.h.b16 %v1125
        %v1260 = vunpack.c.l.b16 %v1126
        %v1261 = vunpack.c.h.b16 %v1126
        %v1262 = vunpack.c.l.b16 %v1127
        %v1263 = vunpack.c.h.b16 %v1127
        %v1264 = vunpack.c.l.b16 %v1128
        %v1265 = vunpack.c.h.b16 %v1128
        %v1266 = vunpack.c.l.b16 %v1129
        %v1267 = vunpack.c.h.b16 %v1129
        %v1268 = vunpack.c.l.b16 %v1130
        %v1269 = vunpack.c.h.b16 %v1130
        %v1270 = vunpack.c.l.b16 %v1131
        %v1271 = vunpack.c.h.b16 %v1131
        %v1272 = vunpack.c.l.b16 %v1132
        %v1273 = vunpack.c.h.b16 %v1132
        %v1274 = vunpack.c.l.b16 %v1133
        %v1275 = vunpack.c.h.b16 %v1133
        %v1276 = vunpack.c.l.b16 %v1134
        %v1277 = vunpack.c.h.b16 %v1134
        %v1278 = vunpack.c.l.b16 %v1135
        %v1279 = vunpack.c.h.b16 %v1135
        %v1280 = vunpack.c.l.b16 %v1136
        %v1281 = vunpack.c.h.b16 %v1136
        %v1282 = vunpack.c.l.b16 %v1137
        %v1283 = vunpack.c.h.b16 %v1137
        %v1284 = vunpack.c.l.b16 %v1138
        %v1285 = vunpack.c.h.b16 %v1138
        %v1286 = vunpack.c.l.b16 %v1139
        %v1287 = vunpack.c.h.b16 %v1139
        %v1288 = vunpack.c.l.b16 %v1140
        %v1289 = vunpack.c.h.b16 %v1140
        %v1290 = vunpack.c.l.b16 %v1141
        %v1291 = vunpack.c.h.b16 %v1141
        %v1292 = vunpack.c.l.b16 %v1142
        %v1293 = vunpack.c.h.b16 %v1142
        %v1294 = vunpack.c.l.b16 %v1143
        %v1295 = vunpack.c.h.b16 %v1143
        %v1296 = vunpack.c.l.b16 %v1144
        %v1297 = vunpack.c.h.b16 %v1144
        %v1298 = vunpack.c.l.b16 %v1145
        %v1299 = vunpack.c.h.b16 %v1145
        %v1300 = vunpack.c.l.b16 %v1146
        %v1301 = vunpack.c.h.b16 %v1146
        %v1302 = vunpack.c.l.b16 %v1147
        %v1303 = vunpack.c.h.b16 %v1147
        %v1304 = vunpack.c.l.b16 %v1148
        %v1305 = vunpack.c.h.b16 %v1148
        %v1306 = vunpack.c.l.b16 %v1149
        %v1307 = vunpack.c.h.b16 %v1149
        %v1308 = vunpack.c.l.b16 %v1150
        %v1309 = vunpack.c.h.b16 %v1150
        %v1310 = vunpack.c.l.b16 %v1151
        %v1311 = vunpack.c.h.b16 %v1151
        %v1312 = vunpack.c.l.b16 %v1152
        %v1313 = vunpack.c.h.b16 %v1152
        %v1314 = vunpack.c.l.b16 %v1153
        %v1315 = vunpack.c.h.b16 %v1153
        %v1316 = vunpack.c.l.b16 %v1154
        %v1317 = vunpack.c.h.b16 %v1154
        %v1318 = vunpack.c.l.b16 %v1155
        %v1319 = vunpack.c.h.b16 %v1155
        %v1320 = vunpack.c.l.b16 %v1156
        %v1321 = vunpack.c.h.b16 %v1156
        %v1322 = vunpack.c.l.b16 %v1157
        %v1323 = vunpack.c.h.b16 %v1157
        %v1324 = vunpack.c.l.b16 %v1158
        %v1325 = vunpack.c.h.b16 %v1158
        %v1326 = vunpack.c.l.b16 %v1159
        %v1327 = vunpack.c.h.b16 %v1159
        %v1328 = vunpack.c.l.b16 %v1160
        %v1329 = vunpack.c.h.b16 %v1160
        %v1330 = vunpack.c.l.b16 %v1161
        %v1331 = vunpack.c.h.b16 %v1161
        %v1332 = vunpack.c.l.b16 %v1162
        %v1333 = vunpack.c.h.b16 %v1162
        %v1334 = vunpack.c.l.b16 %v1163
        %v1335 = vunpack.c.h.b16 %v1163
        %v1336 = vunpack.c.l.b16 %v1164
        %v1337 = vunpack.c.h.b16 %v1164
        %v1338 = vunpack.c.l.b16 %v1165
        %v1339 = vunpack.c.h.b16 %v1165
        %v1340 = vunpack.c.l.b16 %v1166
        %v1341 = vunpack.c.h.b16 %v1166
        %v1342 = vunpack.c.l.b16 %v1167
        %v1343 = vunpack.c.h.b16 %v1167
        %v1344 = vunpack.c.l.b16 %v1168
        %v1345 = vunpack.c.h.b16 %v1168
        %v1346 = vunpack.c.l.b16 %v1169
        %v1347 = vunpack.c.h.b16 %v1169
        %v1348 = vunpack.c.l.b16 %v1170
        %v1349 = vunpack.c.h.b16 %v1170
        %v1350 = vunpack.c.l.b16 %v1171
        %v1351 = vunpack.c.h.b16 %v1171
        %v1352 = vunpack.c.l.b16 %v1172
        %v1353 = vunpack.c.h.b16 %v1172
        %v1354 = vunpack.c.l.b16 %v1173
        %v1355 = vunpack.c.h.b16 %v1173
        %v1356 = vunpack.c.l.b16 %v1174
        %v1357 = vunpack.c.h.b16 %v1174
        %v1358 = vunpack.c.l.b16 %v1175
        %v1359 = vunpack.c.h.b16 %v1175
        %v1360 = vunpack.c.l.b16 %v1176
        %v1361 = vunpack.c.h.b16 %v1176
        %v1362 = vunpack.c.l.b16 %v1177
        %v1363 = vunpack.c.h.b16 %v1177
        %v1364 = vunpack.c.l.b16 %v1178
        %v1365 = vunpack.c.h.b16 %v1178
        %v1366 = vunpack.c.l.b16 %v1179
        %v1367 = vunpack.c.h.b16 %v1179
        %v1368 = vunpack.c.l.b16 %v1180
        %v1369 = vunpack.c.h.b16 %v1180
        %v1370 = vunpack.c.l.b16 %v1181
        %v1371 = vunpack.c.h.b16 %v1181
        %v1372 = vunpack.c.l.b16 %v1182
        %v1373 = vunpack.c.h.b16 %v1182
        %v1374 = vunpack.c.l.b16 %v1183
        %v1375 = vunpack.c.h.b16 %v1183
        %v1376 = vpack.c.b16 %v1252, %v1248
        %v1377 = vpack.c.b16 %v1253, %v1249
        %v1378 = vpack.c.b16 %v1254, %v1250
        %v1379 = vpack.c.b16 %v1255, %v1251
        %v1380 = vpack.c.b16 %v1260, %v1256
        %v1381 = vpack.c.b16 %v1261, %v1257
        %v1382 = vpack.c.b16 %v1262, %v1258
        %v1383 = vpack.c.b16 %v1263, %v1259
        %v1384 = vpack.c.b16 %v1268, %v1264
        %v1385 = vpack.c.b16 %v1269, %v1265
        %v1386 = vpack.c.b16 %v1270, %v1266
        %v1387 = vpack.c.b16 %v1271, %v1267
        %v1388 = vpack.c.b16 %v1276, %v1272
        %v1389 = vpack.c.b16 %v1277, %v1273
        %v1390 = vpack.c.b16 %v1278, %v1274
        %v1391 = vpack.c.b16 %v1279, %v1275
        %v1392 = vpack.c.b16 %v1284, %v1280
        %v1393 = vpack.c.b16 %v1285, %v1281
        %v1394 = vpack.c.b16 %v1286, %v1282
        %v1395 = vpack.c.b16 %v1287, %v1283
        %v1396 = vpack.c.b16 %v1292, %v1288
        %v1397 = vpack.c.b16 %v1293, %v1289
        %v1398 = vpack.c.b16 %v1294, %v1290
        %v1399 = vpack.c.b16 %v1295, %v1291
        %v1400 = vpack.c.b16 %v1300, %v1296
        %v1401 = vpack.c.b16 %v1301, %v1297
        %v1402 = vpack.c.b16 %v1302, %v1298
        %v1403 = vpack.c.b16 %v1303, %v1299
        %v1404 = vpack.c.b16 %v1308, %v1304
        %v1405 = vpack.c.b16 %v1309, %v1305
        %v1406 = vpack.c.b16 %v1310, %v1306
        %v1407 = vpack.c.b16 %v1311, %v1307
        %v1408 = vpack.c.b16 %v1316, %v1312
        %v1409 = vpack.c.b16 %v1317, %v1313
        %v1410 = vpack.c.b16 %v1318, %v1314
        %v1411 = vpack.c.b16 %v1319, %v1315
        %v1412 = vpack.c.b16 %v1324, %v1320
        %v1413 = vpack.c.b16 %v1325, %v1321
        %v1414 = vpack.c.b16 %v1326, %v1322
        %v1415 = vpack.c.b16 %v1327, %v1323
        %v1416 = vpack.c.b16 %v1332, %v1328
        %v1417 = vpack.c.b16 %v1333, %v1329
        %v1418 = vpack.c.b16 %v1334, %v1330
        %v1419 = vpack.c.b16 %v1335, %v1331
        %v1420 = vpack.c.b16 %v1340, %v1336
        %v1421 = vpack.c.b16 %v1341, %v1337
        %v1422 = vpack.c.b16 %v1342, %v1338
        %v1423 = vpack.c.b16 %v1343, %v1339
        %v1424 = vpack.c.b16 %v1348, %v1344
        %v1425 = vpack.c.b16 %v1349, %v1345
        %v1426 = vpack.c.b16 %v1350, %v1346
        %v1427 = vpack.c.b16 %v1351, %v1347
        %v1428 = vpack.c.b16 %v1356, %v1352
        %v1429 = vpack.c.b16 %v1357, %v1353
        %v1430 = vpack.c.b16 %v1358, %v1354
        %v1431 = vpack.c.b16 %v1359, %v1355
        %v1432 = vpack.c.b16 %v1364, %v1360
        %v1433 = vpack.c.b16 %v1365, %v1361
        %v1434 = vpack.c.b16 %v1366, %v1362
        %v1435 = vpack.c.b16 %v1367, %v1363
        %v1436 = vpack.c.b16 %v1372, %v1368
        %v1437 = vpack.c.b16 %v1373, %v1369
        %v1438 = vpack.c.b16 %v1374, %v1370
        %v1439 = vpack.c.b16 %v1375, %v1371
        %1504 = vmatprep.subr.bf16.mxu0 %v1405
        %1505 = vmatpush1.bf16.msra.mxu0 %v1404
        %1506 = vmatprep.subr.bf16.mxu0 %v1401
        %1507 = vmatpush1.bf16.msra.mxu0 %v1400
        %1508 = vmatprep.subr.bf16.mxu0 %v1397
        %1509 = vmatpush1.bf16.msra.mxu0 %v1396
        %1510 = vmatprep.subr.bf16.mxu0 %v1393
        %1511 = vmatpush1.bf16.msra.mxu0 %v1392
        %1512 = vmatprep.subr.bf16.mxu0 %v1389
        %1513 = vmatpush1.bf16.msra.mxu0 %v1388
        %1514 = vmatprep.subr.bf16.mxu0 %v1385
        %1515 = vmatpush1.bf16.msra.mxu0 %v1384
        %1516 = vmatprep.subr.bf16.mxu0 %v1381
        %1517 = vmatpush1.bf16.msra.mxu0 %v1380
        %1518 = vmatprep.subr.bf16.mxu0 %v1377
        %1519 = vmatpush1.bf16.msra.mxu0 %v1376
        %1520 = vmatprep.subr.bf16.mxu0 %v1437
        %1521 = vmatpush2.bf16.msra.mxu0 %v1436
        %1522 = vmatprep.subr.bf16.mxu0 %v1433
        %1523 = vmatpush2.bf16.msra.mxu0 %v1432
        %1524 = vmatprep.subr.bf16.mxu0 %v1429
        %1525 = vmatpush2.bf16.msra.mxu0 %v1428
        %1526 = vmatprep.subr.bf16.mxu0 %v1425
        %1527 = vmatpush2.bf16.msra.mxu0 %v1424
        %1528 = vmatprep.subr.bf16.mxu0 %v1421
        %1529 = vmatpush2.bf16.msra.mxu0 %v1420
        %1530 = vmatprep.subr.bf16.mxu0 %v1417
        %1531 = vmatpush2.bf16.msra.mxu0 %v1416
        %1532 = vmatprep.subr.bf16.mxu0 %v1413
        %1533 = vmatpush2.bf16.msra.mxu0 %v1412
        %1534 = vmatprep.subr.bf16.mxu0 %v1409
        %1535 = vmatpush2.bf16.msra.mxu0 %v1408
        %1536 = vmatprep.mubr.bf16.mxu0 %v1119
        %1537 = vmatmul.mubr.bf16.gmra.mxu0 %v1118
        %v1538 = vpop.f32.mrf.mxu0
        %v1539 = vadd.f32 0.0, %v1538
        %v1540 = vpop.f32.mrf.mxu0
        %v1541 = vadd.f32 0.0, %v1540
        %v1542 = vpop.f32.mrf.mxu0
        %v1543 = vpop.f32.mrf.mxu0
        %1544 = vdwg.mxu0
        %1545 = vmatprep.subr.bf16.mxu0 %v1407
        %1546 = vmatpush1.bf16.msra.mxu0 %v1406
        %1547 = vmatprep.subr.bf16.mxu0 %v1403
        %1548 = vmatpush1.bf16.msra.mxu0 %v1402
        %1549 = vmatprep.subr.bf16.mxu0 %v1399
        %1550 = vmatpush1.bf16.msra.mxu0 %v1398
        %1551 = vmatprep.subr.bf16.mxu0 %v1395
        %1552 = vmatpush1.bf16.msra.mxu0 %v1394
        %1553 = vmatprep.subr.bf16.mxu0 %v1391
        %1554 = vmatpush1.bf16.msra.mxu0 %v1390
        %1555 = vmatprep.subr.bf16.mxu0 %v1387
        %1556 = vmatpush1.bf16.msra.mxu0 %v1386
        %1557 = vmatprep.subr.bf16.mxu0 %v1383
        %1558 = vmatpush1.bf16.msra.mxu0 %v1382
        %1559 = vmatprep.subr.bf16.mxu0 %v1379
        %1560 = vmatpush1.bf16.msra.mxu0 %v1378
        %1561 = vmatprep.subr.bf16.mxu0 %v1439
        %1562 = vmatpush2.bf16.msra.mxu0 %v1438
        %1563 = vmatprep.subr.bf16.mxu0 %v1435
        %1564 = vmatpush2.bf16.msra.mxu0 %v1434
        %1565 = vmatprep.subr.bf16.mxu0 %v1431
        %1566 = vmatpush2.bf16.msra.mxu0 %v1430
        %1567 = vmatprep.subr.bf16.mxu0 %v1427
        %1568 = vmatpush2.bf16.msra.mxu0 %v1426
        %1569 = vmatprep.subr.bf16.mxu0 %v1423
        %1570 = vmatpush2.bf16.msra.mxu0 %v1422
        %1571 = vmatprep.subr.bf16.mxu0 %v1419
        %1572 = vmatpush2.bf16.msra.mxu0 %v1418
        %1573 = vmatprep.subr.bf16.mxu0 %v1415
        %1574 = vmatpush2.bf16.msra.mxu0 %v1414
        %1575 = vmatprep.subr.bf16.mxu0 %v1411
        %1576 = vmatpush2.bf16.msra.mxu0 %v1410
        %1577 = vmatprep.mubr.bf16.mxu0 %v1119
        %1578 = vmatmul.mubr.bf16.gmra.mxu0 %v1118
        %v1579 = vpop.f32.mrf.mxu0
        %v1580 = vadd.f32 0.0, %v1579
        %v1581 = vpop.f32.mrf.mxu0
        %v1582 = vadd.f32 0.0, %v1581
        %v1583 = vpop.f32.mrf.mxu0
        %v1584 = vpop.f32.mrf.mxu0
        %1585 = vdwg.mxu0
        %v1586 = vld [vmem:[%s6 + $0x6] sm:$0xf]
        %v1587 = vld [vmem:[%s6 + $0xa] sm:$0xf]
        %v1588 = vrot.slane %v1539, 4
        %v1589 = vadd.f32 %v1539, %v1588
        %v1590 = vrot.slane %v1589, 2
        %v1591 = vadd.f32 %v1589, %v1590
        %v1592 = vrot.slane %v1591, 1
        %v1593 = vadd.f32 %v1591, %v1592
        %v1594 = vrot.slane %v1541, 4
        %v1595 = vadd.f32 %v1541, %v1594
        %v1596 = vrot.slane %v1595, 2
        %v1597 = vadd.f32 %v1595, %v1596
        %v1598 = vrot.slane %v1597, 1
        %v1599 = vadd.f32 %v1597, %v1598
        %v1600 = vrot.slane %v1580, 4
        %v1601 = vadd.f32 %v1580, %v1600
        %v1602 = vrot.slane %v1601, 2
        %v1603 = vadd.f32 %v1601, %v1602
        %v1604 = vrot.slane %v1603, 1
        %v1605 = vadd.f32 %v1603, %v1604
        %v1606 = vrot.slane %v1582, 4
        %v1607 = vadd.f32 %v1582, %v1606
        %v1608 = vrot.slane %v1607, 2
        %v1609 = vadd.f32 %v1607, %v1608
        %v1610 = vrot.slane %v1609, 1
        %v1611 = vadd.f32 %v1609, %v1610
        %v1612 = vmul.f32 %v1593, %v1019
        %v1613 = vmul.f32 %v1599, %v1019
        %v1614 = vmul.f32 %v1605, %v1019
        %v1615 = vmul.f32 %v1611, %v1019
        %v1616 = vmul.f32 %v1539, %v1539
        %v1617 = vmul.f32 %v1541, %v1541
        %v1618 = vmul.f32 %v1580, %v1580
        %v1619 = vmul.f32 %v1582, %v1582
        %v1620 = vrot.slane %v1616, 4
        %v1621 = vadd.f32 %v1616, %v1620
        %v1622 = vrot.slane %v1621, 2
        %v1623 = vadd.f32 %v1621, %v1622
        %v1624 = vrot.slane %v1623, 1
        %v1625 = vadd.f32 %v1623, %v1624
        %v1626 = vrot.slane %v1617, 4
        %v1627 = vadd.f32 %v1617, %v1626
        %v1628 = vrot.slane %v1627, 2
        %v1629 = vadd.f32 %v1627, %v1628
        %v1630 = vrot.slane %v1629, 1
        %v1631 = vadd.f32 %v1629, %v1630
        %v1632 = vrot.slane %v1618, 4
        %v1633 = vadd.f32 %v1618, %v1632
        %v1634 = vrot.slane %v1633, 2
        %v1635 = vadd.f32 %v1633, %v1634
        %v1636 = vrot.slane %v1635, 1
        %v1637 = vadd.f32 %v1635, %v1636
        %v1638 = vrot.slane %v1619, 4
        %v1639 = vadd.f32 %v1619, %v1638
        %v1640 = vrot.slane %v1639, 2
        %v1641 = vadd.f32 %v1639, %v1640
        %v1642 = vrot.slane %v1641, 1
        %v1643 = vadd.f32 %v1641, %v1642
        %v1644 = vmul.f32 %v1625, %v1019
        %v1645 = vmul.f32 %v1631, %v1019
        %v1646 = vmul.f32 %v1637, %v1019
        %v1647 = vmul.f32 %v1643, %v1019
        %v1648 = vmul.f32 %v1612, %v1612
        %v1649 = vmul.f32 %v1613, %v1613
        %v1650 = vmul.f32 %v1614, %v1614
        %v1651 = vmul.f32 %v1615, %v1615
        %v1652 = vsub.f32 %v1644, %v1648
        %v1653 = vsub.f32 %v1645, %v1649
        %v1654 = vsub.f32 %v1646, %v1650
        %v1655 = vsub.f32 %v1647, %v1651
        %v1656 = vadd.f32 %v1652, 0.8
        %v1657 = vadd.f32 %v1653, 0.8
        %v1658 = vadd.f32 %v1654, 0.8
        %v1659 = vadd.f32 %v1655, 0.8
        %v1660 = vrsqrt.pop %v1656
        %v1661 = vrsqrt.pop %v1657
        %v1662 = vrsqrt.pop %v1658
        %v1663 = vrsqrt.pop %v1659
        %v1668 = vcombine.low %v1660, %v1661
        %v1669 = vcombine.low %v1662, %v1663
        %v1671 = vunpack.c.l.s4 1966171168
        %v1672 = vunpack.c.0.s8 %v1671
        %v1673 = vlaneseq
        %v1674 = vshrl.u32 %v1673, 7
        %v1675 = vsub.s32 %v1672, %v1674
        %v1676 = vrot.slane %v1668, %v1675
        %v1678 = vunpack.c.l.s4 1966171168
        %v1679 = vunpack.c.0.s8 %v1678
        %v1680 = vlaneseq
        %v1681 = vshrl.u32 %v1680, 7
        %v1682 = vsub.s32 %v1679, %v1681
        %v1683 = vrot.slane %v1669, %v1682
        %v1684 = vcombine.low %v1676, %v1683
        %v1686 = vunpack.c.l.s4 1966171168
        %v1687 = vunpack.c.0.s8 %v1686
        %v1688 = vlaneseq
        %v1689 = vshrl.u32 %v1688, 7
        %v1690 = vsub.s32 %v1687, %v1689
        %v1691 = vrot.slane %v1684, %v1690
        %v1693 = vmul.f32 %v1586, %v1691
        %v1695 = vlaneseq
        %v1696 = vshrl.u32 %v1695, 7
        %v1697 = vsub.s32 0, %v1696
        %v1698 = vrot.slane %v1693, %v1697
        %v1699 = vlaneseq
        %v1700 = vshrl.u32 %v1699, 7
        %v1701 = vsub.s32 1, %v1700
        %v1702 = vrot.slane %v1693, %v1701
        %v1703 = vlaneseq
        %v1704 = vshrl.u32 %v1703, 7
        %v1705 = vsub.s32 2, %v1704
        %v1706 = vrot.slane %v1693, %v1705
        %v1707 = vlaneseq
        %v1708 = vshrl.u32 %v1707, 7
        %v1709 = vsub.s32 3, %v1708
        %v1710 = vrot.slane %v1693, %v1709
        %v1715 = vmul.f32 %v1612, %v1698
        %v1716 = vmul.f32 %v1613, %v1702
        %v1717 = vmul.f32 %v1614, %v1706
        %v1718 = vmul.f32 %v1615, %v1710
        %v1723 = vcombine.low %v1715, %v1716
        %v1724 = vcombine.low %v1717, %v1718
        %v1726 = vunpack.c.l.s4 1966171168
        %v1727 = vunpack.c.0.s8 %v1726
        %v1728 = vlaneseq
        %v1729 = vshrl.u32 %v1728, 7
        %v1730 = vsub.s32 %v1727, %v1729
        %v1731 = vrot.slane %v1723, %v1730
        %v1733 = vunpack.c.l.s4 1966171168
        %v1734 = vunpack.c.0.s8 %v1733
        %v1735 = vlaneseq
        %v1736 = vshrl.u32 %v1735, 7
        %v1737 = vsub.s32 %v1734, %v1736
        %v1738 = vrot.slane %v1724, %v1737
        %v1739 = vcombine.low %v1731, %v1738
        %v1741 = vunpack.c.l.s4 1966171168
        %v1742 = vunpack.c.0.s8 %v1741
        %v1743 = vlaneseq
        %v1744 = vshrl.u32 %v1743, 7
        %v1745 = vsub.s32 %v1742, %v1744
        %v1746 = vrot.slane %v1739, %v1745
        %v1748 = vsub.f32 %v1587, %v1746
        %v1749 = vmul.f32 %v1539, %v1698
        %v1750 = vmul.f32 %v1541, %v1702
        %v1751 = vmul.f32 %v1580, %v1706
        %v1752 = vmul.f32 %v1582, %v1710
        %v1754 = vlaneseq
        %v1755 = vshrl.u32 %v1754, 7
        %v1756 = vsub.s32 0, %v1755
        %v1757 = vrot.slane %v1748, %v1756
        %v1758 = vlaneseq
        %v1759 = vshrl.u32 %v1758, 7
        %v1760 = vsub.s32 1, %v1759
        %v1761 = vrot.slane %v1748, %v1760
        %v1762 = vlaneseq
        %v1763 = vshrl.u32 %v1762, 7
        %v1764 = vsub.s32 2, %v1763
        %v1765 = vrot.slane %v1748, %v1764
        %v1766 = vlaneseq
        %v1767 = vshrl.u32 %v1766, 7
        %v1768 = vsub.s32 3, %v1767
        %v1769 = vrot.slane %v1748, %v1768
        %v1774 = vadd.f32 %v1749, %v1757
        %v1775 = vadd.f32 %v1750, %v1761
        %v1776 = vadd.f32 %v1751, %v1765
        %v1777 = vadd.f32 %v1752, %v1769
        %vm1778 = vcmp.gt.f32.partialorder %v1774, 0.0
        %vm1779 = vcmp.gt.f32.partialorder %v1775, 0.0
        %vm1780 = vcmp.gt.f32.partialorder %v1776, 0.0
        %vm1781 = vcmp.gt.f32.partialorder %v1777, 0.0
        %v1782 = vmul.f32 %v1774, 0.2
        %v1783 = vmul.f32 %v1775, 0.2
        %v1784 = vmul.f32 %v1776, 0.2
        %v1785 = vmul.f32 %v1777, 0.2
        %v1786 = vsel %vm1778, %v1774, %v1782
        %v1787 = vsel %vm1779, %v1775, %v1783
        %v1788 = vsel %vm1780, %v1776, %v1784
        %v1789 = vsel %vm1781, %v1777, %v1785
        %v1790 = vpack.c.bf16 %v1786, %v1786
        %v1791 = vpack.c.bf16 %v1787, %v1787
        %v1792 = vpack.c.bf16 %v1788, %v1788
        %v1793 = vpack.c.bf16 %v1789, %v1789
        %v1794 = vld [vmem:[#allocation8] sm:$0xff]
        %v1795 = vld [vmem:[#allocation8 + $0x8] sm:$0xff]
        %v1796 = vld [vmem:[#allocation8 + $0x10] sm:$0xff]
        %v1797 = vld [vmem:[#allocation8 + $0x18] sm:$0xff]
        %v1798 = vld [vmem:[#allocation8 + $0x20] sm:$0xff]
        %v1799 = vld [vmem:[#allocation8 + $0x28] sm:$0xff]
        %v1800 = vld [vmem:[#allocation8 + $0x30] sm:$0xff]
        %v1801 = vld [vmem:[#allocation8 + $0x38] sm:$0xff]
        %v1802 = vld [vmem:[#allocation8 + $0x40] sm:$0xff]
        %v1803 = vld [vmem:[#allocation8 + $0x48] sm:$0xff]
        %v1804 = vld [vmem:[#allocation8 + $0x50] sm:$0xff]
        %v1805 = vld [vmem:[#allocation8 + $0x58] sm:$0xff]
        %v1806 = vld [vmem:[#allocation8 + $0x60] sm:$0xff]
        %v1807 = vld [vmem:[#allocation8 + $0x68] sm:$0xff]
        %v1808 = vld [vmem:[#allocation8 + $0x70] sm:$0xff]
        %v1809 = vld [vmem:[#allocation8 + $0x78] sm:$0xff]
        %v1810 = vld [vmem:[#allocation8 + $0x80] sm:$0xff]
        %v1811 = vld [vmem:[#allocation8 + $0x88] sm:$0xff]
        %v1812 = vld [vmem:[#allocation8 + $0x90] sm:$0xff]
        %v1813 = vld [vmem:[#allocation8 + $0x98] sm:$0xff]
        %v1814 = vld [vmem:[#allocation8 + $0xa0] sm:$0xff]
        %v1815 = vld [vmem:[#allocation8 + $0xa8] sm:$0xff]
        %v1816 = vld [vmem:[#allocation8 + $0xb0] sm:$0xff]
        %v1817 = vld [vmem:[#allocation8 + $0xb8] sm:$0xff]
        %v1818 = vld [vmem:[#allocation8 + $0xc0] sm:$0xff]
        %v1819 = vld [vmem:[#allocation8 + $0xc8] sm:$0xff]
        %v1820 = vld [vmem:[#allocation8 + $0xd0] sm:$0xff]
        %v1821 = vld [vmem:[#allocation8 + $0xd8] sm:$0xff]
        %v1822 = vld [vmem:[#allocation8 + $0xe0] sm:$0xff]
        %v1823 = vld [vmem:[#allocation8 + $0xe8] sm:$0xff]
        %v1824 = vld [vmem:[#allocation8 + $0xf0] sm:$0xff]
        %v1825 = vld [vmem:[#allocation8 + $0xf8] sm:$0xff]
        %v1826 = vld [vmem:[#allocation8 + $0x100] sm:$0xff]
        %v1827 = vld [vmem:[#allocation8 + $0x108] sm:$0xff]
        %v1828 = vld [vmem:[#allocation8 + $0x110] sm:$0xff]
        %v1829 = vld [vmem:[#allocation8 + $0x118] sm:$0xff]
        %v1830 = vld [vmem:[#allocation8 + $0x120] sm:$0xff]
        %v1831 = vld [vmem:[#allocation8 + $0x128] sm:$0xff]
        %v1832 = vld [vmem:[#allocation8 + $0x130] sm:$0xff]
        %v1833 = vld [vmem:[#allocation8 + $0x138] sm:$0xff]
        %v1834 = vld [vmem:[#allocation8 + $0x140] sm:$0xff]
        %v1835 = vld [vmem:[#allocation8 + $0x148] sm:$0xff]
        %v1836 = vld [vmem:[#allocation8 + $0x150] sm:$0xff]
        %v1837 = vld [vmem:[#allocation8 + $0x158] sm:$0xff]
        %v1838 = vld [vmem:[#allocation8 + $0x160] sm:$0xff]
        %v1839 = vld [vmem:[#allocation8 + $0x168] sm:$0xff]
        %v1840 = vld [vmem:[#allocation8 + $0x170] sm:$0xff]
        %v1841 = vld [vmem:[#allocation8 + $0x178] sm:$0xff]
        %v1842 = vld [vmem:[#allocation8 + $0x180] sm:$0xff]
        %v1843 = vld [vmem:[#allocation8 + $0x188] sm:$0xff]
        %v1844 = vld [vmem:[#allocation8 + $0x190] sm:$0xff]
        %v1845 = vld [vmem:[#allocation8 + $0x198] sm:$0xff]
        %v1846 = vld [vmem:[#allocation8 + $0x1a0] sm:$0xff]
        %v1847 = vld [vmem:[#allocation8 + $0x1a8] sm:$0xff]
        %v1848 = vld [vmem:[#allocation8 + $0x1b0] sm:$0xff]
        %v1849 = vld [vmem:[#allocation8 + $0x1b8] sm:$0xff]
        %v1850 = vld [vmem:[#allocation8 + $0x1c0] sm:$0xff]
        %v1851 = vld [vmem:[#allocation8 + $0x1c8] sm:$0xff]
        %v1852 = vld [vmem:[#allocation8 + $0x1d0] sm:$0xff]
        %v1853 = vld [vmem:[#allocation8 + $0x1d8] sm:$0xff]
        %v1854 = vld [vmem:[#allocation8 + $0x1e0] sm:$0xff]
        %v1855 = vld [vmem:[#allocation8 + $0x1e8] sm:$0xff]
        %v1856 = vld [vmem:[#allocation8 + $0x1f0] sm:$0xff]
        %v1857 = vld [vmem:[#allocation8 + $0x1f8] sm:$0xff]
        %v1858 = vld [vmem:[#allocation8 + $0x200] sm:$0xff]
        %v1859 = vld [vmem:[#allocation8 + $0x208] sm:$0xff]
        %v1860 = vld [vmem:[#allocation8 + $0x210] sm:$0xff]
        %v1861 = vld [vmem:[#allocation8 + $0x218] sm:$0xff]
        %v1862 = vld [vmem:[#allocation8 + $0x220] sm:$0xff]
        %v1863 = vld [vmem:[#allocation8 + $0x228] sm:$0xff]
        %v1864 = vld [vmem:[#allocation8 + $0x230] sm:$0xff]
        %v1865 = vld [vmem:[#allocation8 + $0x238] sm:$0xff]
        %v1866 = vld [vmem:[#allocation8 + $0x240] sm:$0xff]
        %v1867 = vld [vmem:[#allocation8 + $0x248] sm:$0xff]
        %v1868 = vld [vmem:[#allocation8 + $0x250] sm:$0xff]
        %v1869 = vld [vmem:[#allocation8 + $0x258] sm:$0xff]
        %v1870 = vld [vmem:[#allocation8 + $0x260] sm:$0xff]
        %v1871 = vld [vmem:[#allocation8 + $0x268] sm:$0xff]
        %v1872 = vld [vmem:[#allocation8 + $0x270] sm:$0xff]
        %v1873 = vld [vmem:[#allocation8 + $0x278] sm:$0xff]
        %v1874 = vld [vmem:[#allocation8 + $0x280] sm:$0xff]
        %v1875 = vld [vmem:[#allocation8 + $0x288] sm:$0xff]
        %v1876 = vld [vmem:[#allocation8 + $0x290] sm:$0xff]
        %v1877 = vld [vmem:[#allocation8 + $0x298] sm:$0xff]
        %v1878 = vld [vmem:[#allocation8 + $0x2a0] sm:$0xff]
        %v1879 = vld [vmem:[#allocation8 + $0x2a8] sm:$0xff]
        %v1880 = vld [vmem:[#allocation8 + $0x2b0] sm:$0xff]
        %v1881 = vld [vmem:[#allocation8 + $0x2b8] sm:$0xff]
        %v1882 = vld [vmem:[#allocation8 + $0x2c0] sm:$0xff]
        %v1883 = vld [vmem:[#allocation8 + $0x2c8] sm:$0xff]
        %v1884 = vld [vmem:[#allocation8 + $0x2d0] sm:$0xff]
        %v1885 = vld [vmem:[#allocation8 + $0x2d8] sm:$0xff]
        %v1886 = vld [vmem:[#allocation8 + $0x2e0] sm:$0xff]
        %v1887 = vld [vmem:[#allocation8 + $0x2e8] sm:$0xff]
        %v1888 = vld [vmem:[#allocation8 + $0x2f0] sm:$0xff]
        %v1889 = vld [vmem:[#allocation8 + $0x2f8] sm:$0xff]
        %v1890 = vld [vmem:[#allocation8 + $0x300] sm:$0xff]
        %v1891 = vld [vmem:[#allocation8 + $0x308] sm:$0xff]
        %v1892 = vld [vmem:[#allocation8 + $0x310] sm:$0xff]
        %v1893 = vld [vmem:[#allocation8 + $0x318] sm:$0xff]
        %v1894 = vld [vmem:[#allocation8 + $0x320] sm:$0xff]
        %v1895 = vld [vmem:[#allocation8 + $0x328] sm:$0xff]
        %v1896 = vld [vmem:[#allocation8 + $0x330] sm:$0xff]
        %v1897 = vld [vmem:[#allocation8 + $0x338] sm:$0xff]
        %v1898 = vld [vmem:[#allocation8 + $0x340] sm:$0xff]
        %v1899 = vld [vmem:[#allocation8 + $0x348] sm:$0xff]
        %v1900 = vld [vmem:[#allocation8 + $0x350] sm:$0xff]
        %v1901 = vld [vmem:[#allocation8 + $0x358] sm:$0xff]
        %v1902 = vld [vmem:[#allocation8 + $0x360] sm:$0xff]
        %v1903 = vld [vmem:[#allocation8 + $0x368] sm:$0xff]
        %v1904 = vld [vmem:[#allocation8 + $0x370] sm:$0xff]
        %v1905 = vld [vmem:[#allocation8 + $0x378] sm:$0xff]
        %v1906 = vld [vmem:[#allocation8 + $0x380] sm:$0xff]
        %v1907 = vld [vmem:[#allocation8 + $0x388] sm:$0xff]
        %v1908 = vld [vmem:[#allocation8 + $0x390] sm:$0xff]
        %v1909 = vld [vmem:[#allocation8 + $0x398] sm:$0xff]
        %v1910 = vld [vmem:[#allocation8 + $0x3a0] sm:$0xff]
        %v1911 = vld [vmem:[#allocation8 + $0x3a8] sm:$0xff]
        %v1912 = vld [vmem:[#allocation8 + $0x3b0] sm:$0xff]
        %v1913 = vld [vmem:[#allocation8 + $0x3b8] sm:$0xff]
        %v1914 = vld [vmem:[#allocation8 + $0x3c0] sm:$0xff]
        %v1915 = vld [vmem:[#allocation8 + $0x3c8] sm:$0xff]
        %v1916 = vld [vmem:[#allocation8 + $0x3d0] sm:$0xff]
        %v1917 = vld [vmem:[#allocation8 + $0x3d8] sm:$0xff]
        %v1918 = vld [vmem:[#allocation8 + $0x3e0] sm:$0xff]
        %v1919 = vld [vmem:[#allocation8 + $0x3e8] sm:$0xff]
        %v1920 = vld [vmem:[#allocation8 + $0x3f0] sm:$0xff]
        %v1921 = vld [vmem:[#allocation8 + $0x3f8] sm:$0xff]
        %v1922 = vld [vmem:[#allocation8 + $0x400] sm:$0xff]
        %v1923 = vld [vmem:[#allocation8 + $0x408] sm:$0xff]
        %v1924 = vld [vmem:[#allocation8 + $0x410] sm:$0xff]
        %v1925 = vld [vmem:[#allocation8 + $0x418] sm:$0xff]
        %v1926 = vld [vmem:[#allocation8 + $0x420] sm:$0xff]
        %v1927 = vld [vmem:[#allocation8 + $0x428] sm:$0xff]
        %v1928 = vld [vmem:[#allocation8 + $0x430] sm:$0xff]
        %v1929 = vld [vmem:[#allocation8 + $0x438] sm:$0xff]
        %v1930 = vld [vmem:[#allocation8 + $0x440] sm:$0xff]
        %v1931 = vld [vmem:[#allocation8 + $0x448] sm:$0xff]
        %v1932 = vld [vmem:[#allocation8 + $0x450] sm:$0xff]
        %v1933 = vld [vmem:[#allocation8 + $0x458] sm:$0xff]
        %v1934 = vld [vmem:[#allocation8 + $0x460] sm:$0xff]
        %v1935 = vld [vmem:[#allocation8 + $0x468] sm:$0xff]
        %v1936 = vld [vmem:[#allocation8 + $0x470] sm:$0xff]
        %v1937 = vld [vmem:[#allocation8 + $0x478] sm:$0xff]
        %v1938 = vld [vmem:[#allocation8 + $0x480] sm:$0xff]
        %v1939 = vld [vmem:[#allocation8 + $0x488] sm:$0xff]
        %v1940 = vld [vmem:[#allocation8 + $0x490] sm:$0xff]
        %v1941 = vld [vmem:[#allocation8 + $0x498] sm:$0xff]
        %v1942 = vld [vmem:[#allocation8 + $0x4a0] sm:$0xff]
        %v1943 = vld [vmem:[#allocation8 + $0x4a8] sm:$0xff]
        %v1944 = vld [vmem:[#allocation8 + $0x4b0] sm:$0xff]
        %v1945 = vld [vmem:[#allocation8 + $0x4b8] sm:$0xff]
        %v1946 = vld [vmem:[#allocation8 + $0x4c0] sm:$0xff]
        %v1947 = vld [vmem:[#allocation8 + $0x4c8] sm:$0xff]
        %v1948 = vld [vmem:[#allocation8 + $0x4d0] sm:$0xff]
        %v1949 = vld [vmem:[#allocation8 + $0x4d8] sm:$0xff]
        %v1950 = vld [vmem:[#allocation8 + $0x4e0] sm:$0xff]
        %v1951 = vld [vmem:[#allocation8 + $0x4e8] sm:$0xff]
        %v1952 = vld [vmem:[#allocation8 + $0x4f0] sm:$0xff]
        %v1953 = vld [vmem:[#allocation8 + $0x4f8] sm:$0xff]
        %v1954 = vld [vmem:[#allocation8 + $0x500] sm:$0xff]
        %v1955 = vld [vmem:[#allocation8 + $0x508] sm:$0xff]
        %v1956 = vld [vmem:[#allocation8 + $0x510] sm:$0xff]
        %v1957 = vld [vmem:[#allocation8 + $0x518] sm:$0xff]
        %v1958 = vld [vmem:[#allocation8 + $0x520] sm:$0xff]
        %v1959 = vld [vmem:[#allocation8 + $0x528] sm:$0xff]
        %v1960 = vld [vmem:[#allocation8 + $0x530] sm:$0xff]
        %v1961 = vld [vmem:[#allocation8 + $0x538] sm:$0xff]
        %v1962 = vld [vmem:[#allocation8 + $0x540] sm:$0xff]
        %v1963 = vld [vmem:[#allocation8 + $0x548] sm:$0xff]
        %v1964 = vld [vmem:[#allocation8 + $0x550] sm:$0xff]
        %v1965 = vld [vmem:[#allocation8 + $0x558] sm:$0xff]
        %v1966 = vld [vmem:[#allocation8 + $0x560] sm:$0xff]
        %v1967 = vld [vmem:[#allocation8 + $0x568] sm:$0xff]
        %v1968 = vld [vmem:[#allocation8 + $0x570] sm:$0xff]
        %v1969 = vld [vmem:[#allocation8 + $0x578] sm:$0xff]
        %v1970 = vld [vmem:[#allocation8 + $0x580] sm:$0xff]
        %v1971 = vld [vmem:[#allocation8 + $0x588] sm:$0xff]
        %v1972 = vld [vmem:[#allocation8 + $0x590] sm:$0xff]
        %v1973 = vld [vmem:[#allocation8 + $0x598] sm:$0xff]
        %v1974 = vld [vmem:[#allocation8 + $0x5a0] sm:$0xff]
        %v1975 = vld [vmem:[#allocation8 + $0x5a8] sm:$0xff]
        %v1976 = vld [vmem:[#allocation8 + $0x5b0] sm:$0xff]
        %v1977 = vld [vmem:[#allocation8 + $0x5b8] sm:$0xff]
        %v1978 = vld [vmem:[#allocation8 + $0x5c0] sm:$0xff]
        %v1979 = vld [vmem:[#allocation8 + $0x5c8] sm:$0xff]
        %v1980 = vld [vmem:[#allocation8 + $0x5d0] sm:$0xff]
        %v1981 = vld [vmem:[#allocation8 + $0x5d8] sm:$0xff]
        %v1982 = vld [vmem:[#allocation8 + $0x5e0] sm:$0xff]
        %v1983 = vld [vmem:[#allocation8 + $0x5e8] sm:$0xff]
        %v1984 = vld [vmem:[#allocation8 + $0x5f0] sm:$0xff]
        %v1985 = vld [vmem:[#allocation8 + $0x5f8] sm:$0xff]
        %v1986 = vld [vmem:[#allocation8 + $0x600] sm:$0xff]
        %v1987 = vld [vmem:[#allocation8 + $0x608] sm:$0xff]
        %v1988 = vld [vmem:[#allocation8 + $0x610] sm:$0xff]
        %v1989 = vld [vmem:[#allocation8 + $0x618] sm:$0xff]
        %v1990 = vld [vmem:[#allocation8 + $0x620] sm:$0xff]
        %v1991 = vld [vmem:[#allocation8 + $0x628] sm:$0xff]
        %v1992 = vld [vmem:[#allocation8 + $0x630] sm:$0xff]
        %v1993 = vld [vmem:[#allocation8 + $0x638] sm:$0xff]
        %v1994 = vld [vmem:[#allocation8 + $0x640] sm:$0xff]
        %v1995 = vld [vmem:[#allocation8 + $0x648] sm:$0xff]
        %v1996 = vld [vmem:[#allocation8 + $0x650] sm:$0xff]
        %v1997 = vld [vmem:[#allocation8 + $0x658] sm:$0xff]
        %v1998 = vld [vmem:[#allocation8 + $0x660] sm:$0xff]
        %v1999 = vld [vmem:[#allocation8 + $0x668] sm:$0xff]
        %v2000 = vld [vmem:[#allocation8 + $0x670] sm:$0xff]
        %v2001 = vld [vmem:[#allocation8 + $0x678] sm:$0xff]
        %v2002 = vld [vmem:[#allocation8 + $0x680] sm:$0xff]
        %v2003 = vld [vmem:[#allocation8 + $0x688] sm:$0xff]
        %v2004 = vld [vmem:[#allocation8 + $0x690] sm:$0xff]
        %v2005 = vld [vmem:[#allocation8 + $0x698] sm:$0xff]
        %v2006 = vld [vmem:[#allocation8 + $0x6a0] sm:$0xff]
        %v2007 = vld [vmem:[#allocation8 + $0x6a8] sm:$0xff]
        %v2008 = vld [vmem:[#allocation8 + $0x6b0] sm:$0xff]
        %v2009 = vld [vmem:[#allocation8 + $0x6b8] sm:$0xff]
        %v2010 = vld [vmem:[#allocation8 + $0x6c0] sm:$0xff]
        %v2011 = vld [vmem:[#allocation8 + $0x6c8] sm:$0xff]
        %v2012 = vld [vmem:[#allocation8 + $0x6d0] sm:$0xff]
        %v2013 = vld [vmem:[#allocation8 + $0x6d8] sm:$0xff]
        %v2014 = vld [vmem:[#allocation8 + $0x6e0] sm:$0xff]
        %v2015 = vld [vmem:[#allocation8 + $0x6e8] sm:$0xff]
        %v2016 = vld [vmem:[#allocation8 + $0x6f0] sm:$0xff]
        %v2017 = vld [vmem:[#allocation8 + $0x6f8] sm:$0xff]
        %v2018 = vld [vmem:[#allocation8 + $0x700] sm:$0xff]
        %v2019 = vld [vmem:[#allocation8 + $0x708] sm:$0xff]
        %v2020 = vld [vmem:[#allocation8 + $0x710] sm:$0xff]
        %v2021 = vld [vmem:[#allocation8 + $0x718] sm:$0xff]
        %v2022 = vld [vmem:[#allocation8 + $0x720] sm:$0xff]
        %v2023 = vld [vmem:[#allocation8 + $0x728] sm:$0xff]
        %v2024 = vld [vmem:[#allocation8 + $0x730] sm:$0xff]
        %v2025 = vld [vmem:[#allocation8 + $0x738] sm:$0xff]
        %v2026 = vld [vmem:[#allocation8 + $0x740] sm:$0xff]
        %v2027 = vld [vmem:[#allocation8 + $0x748] sm:$0xff]
        %v2028 = vld [vmem:[#allocation8 + $0x750] sm:$0xff]
        %v2029 = vld [vmem:[#allocation8 + $0x758] sm:$0xff]
        %v2030 = vld [vmem:[#allocation8 + $0x760] sm:$0xff]
        %v2031 = vld [vmem:[#allocation8 + $0x768] sm:$0xff]
        %v2032 = vld [vmem:[#allocation8 + $0x770] sm:$0xff]
        %v2033 = vld [vmem:[#allocation8 + $0x778] sm:$0xff]
        %v2034 = vld [vmem:[#allocation8 + $0x780] sm:$0xff]
        %v2035 = vld [vmem:[#allocation8 + $0x788] sm:$0xff]
        %v2036 = vld [vmem:[#allocation8 + $0x790] sm:$0xff]
        %v2037 = vld [vmem:[#allocation8 + $0x798] sm:$0xff]
        %v2038 = vld [vmem:[#allocation8 + $0x7a0] sm:$0xff]
        %v2039 = vld [vmem:[#allocation8 + $0x7a8] sm:$0xff]
        %v2040 = vld [vmem:[#allocation8 + $0x7b0] sm:$0xff]
        %v2041 = vld [vmem:[#allocation8 + $0x7b8] sm:$0xff]
        %v2042 = vld [vmem:[#allocation8 + $0x7c0] sm:$0xff]
        %v2043 = vld [vmem:[#allocation8 + $0x7c8] sm:$0xff]
        %v2044 = vld [vmem:[#allocation8 + $0x7d0] sm:$0xff]
        %v2045 = vld [vmem:[#allocation8 + $0x7d8] sm:$0xff]
        %v2046 = vld [vmem:[#allocation8 + $0x7e0] sm:$0xff]
        %v2047 = vld [vmem:[#allocation8 + $0x7e8] sm:$0xff]
        %v2048 = vld [vmem:[#allocation8 + $0x7f0] sm:$0xff]
        %v2049 = vld [vmem:[#allocation8 + $0x7f8] sm:$0xff]
        %v2306 = vunpack.c.l.b16 %v1794
        %v2307 = vunpack.c.h.b16 %v1794
        %v2308 = vunpack.c.l.b16 %v1795
        %v2309 = vunpack.c.h.b16 %v1795
        %v2310 = vunpack.c.l.b16 %v1796
        %v2311 = vunpack.c.h.b16 %v1796
        %v2312 = vunpack.c.l.b16 %v1797
        %v2313 = vunpack.c.h.b16 %v1797
        %v2314 = vunpack.c.l.b16 %v1798
        %v2315 = vunpack.c.h.b16 %v1798
        %v2316 = vunpack.c.l.b16 %v1799
        %v2317 = vunpack.c.h.b16 %v1799
        %v2318 = vunpack.c.l.b16 %v1800
        %v2319 = vunpack.c.h.b16 %v1800
        %v2320 = vunpack.c.l.b16 %v1801
        %v2321 = vunpack.c.h.b16 %v1801
        %v2322 = vunpack.c.l.b16 %v1802
        %v2323 = vunpack.c.h.b16 %v1802
        %v2324 = vunpack.c.l.b16 %v1803
        %v2325 = vunpack.c.h.b16 %v1803
        %v2326 = vunpack.c.l.b16 %v1804
        %v2327 = vunpack.c.h.b16 %v1804
        %v2328 = vunpack.c.l.b16 %v1805
        %v2329 = vunpack.c.h.b16 %v1805
        %v2330 = vunpack.c.l.b16 %v1806
        %v2331 = vunpack.c.h.b16 %v1806
        %v2332 = vunpack.c.l.b16 %v1807
        %v2333 = vunpack.c.h.b16 %v1807
        %v2334 = vunpack.c.l.b16 %v1808
        %v2335 = vunpack.c.h.b16 %v1808
        %v2336 = vunpack.c.l.b16 %v1809
        %v2337 = vunpack.c.h.b16 %v1809
        %v2338 = vunpack.c.l.b16 %v1810
        %v2339 = vunpack.c.h.b16 %v1810
        %v2340 = vunpack.c.l.b16 %v1811
        %v2341 = vunpack.c.h.b16 %v1811
        %v2342 = vunpack.c.l.b16 %v1812
        %v2343 = vunpack.c.h.b16 %v1812
        %v2344 = vunpack.c.l.b16 %v1813
        %v2345 = vunpack.c.h.b16 %v1813
        %v2346 = vunpack.c.l.b16 %v1814
        %v2347 = vunpack.c.h.b16 %v1814
        %v2348 = vunpack.c.l.b16 %v1815
        %v2349 = vunpack.c.h.b16 %v1815
        %v2350 = vunpack.c.l.b16 %v1816
        %v2351 = vunpack.c.h.b16 %v1816
        %v2352 = vunpack.c.l.b16 %v1817
        %v2353 = vunpack.c.h.b16 %v1817
        %v2354 = vunpack.c.l.b16 %v1818
        %v2355 = vunpack.c.h.b16 %v1818
        %v2356 = vunpack.c.l.b16 %v1819
        %v2357 = vunpack.c.h.b16 %v1819
        %v2358 = vunpack.c.l.b16 %v1820
        %v2359 = vunpack.c.h.b16 %v1820
        %v2360 = vunpack.c.l.b16 %v1821
        %v2361 = vunpack.c.h.b16 %v1821
        %v2362 = vunpack.c.l.b16 %v1822
        %v2363 = vunpack.c.h.b16 %v1822
        %v2364 = vunpack.c.l.b16 %v1823
        %v2365 = vunpack.c.h.b16 %v1823
        %v2366 = vunpack.c.l.b16 %v1824
        %v2367 = vunpack.c.h.b16 %v1824
        %v2368 = vunpack.c.l.b16 %v1825
        %v2369 = vunpack.c.h.b16 %v1825
        %v2370 = vunpack.c.l.b16 %v1826
        %v2371 = vunpack.c.h.b16 %v1826
        %v2372 = vunpack.c.l.b16 %v1827
        %v2373 = vunpack.c.h.b16 %v1827
        %v2374 = vunpack.c.l.b16 %v1828
        %v2375 = vunpack.c.h.b16 %v1828
        %v2376 = vunpack.c.l.b16 %v1829
        %v2377 = vunpack.c.h.b16 %v1829
        %v2378 = vunpack.c.l.b16 %v1830
        %v2379 = vunpack.c.h.b16 %v1830
        %v2380 = vunpack.c.l.b16 %v1831
        %v2381 = vunpack.c.h.b16 %v1831
        %v2382 = vunpack.c.l.b16 %v1832
        %v2383 = vunpack.c.h.b16 %v1832
        %v2384 = vunpack.c.l.b16 %v1833
        %v2385 = vunpack.c.h.b16 %v1833
        %v2386 = vunpack.c.l.b16 %v1834
        %v2387 = vunpack.c.h.b16 %v1834
        %v2388 = vunpack.c.l.b16 %v1835
        %v2389 = vunpack.c.h.b16 %v1835
        %v2390 = vunpack.c.l.b16 %v1836
        %v2391 = vunpack.c.h.b16 %v1836
        %v2392 = vunpack.c.l.b16 %v1837
        %v2393 = vunpack.c.h.b16 %v1837
        %v2394 = vunpack.c.l.b16 %v1838
        %v2395 = vunpack.c.h.b16 %v1838
        %v2396 = vunpack.c.l.b16 %v1839
        %v2397 = vunpack.c.h.b16 %v1839
        %v2398 = vunpack.c.l.b16 %v1840
        %v2399 = vunpack.c.h.b16 %v1840
        %v2400 = vunpack.c.l.b16 %v1841
        %v2401 = vunpack.c.h.b16 %v1841
        %v2402 = vunpack.c.l.b16 %v1842
        %v2403 = vunpack.c.h.b16 %v1842
        %v2404 = vunpack.c.l.b16 %v1843
        %v2405 = vunpack.c.h.b16 %v1843
        %v2406 = vunpack.c.l.b16 %v1844
        %v2407 = vunpack.c.h.b16 %v1844
        %v2408 = vunpack.c.l.b16 %v1845
        %v2409 = vunpack.c.h.b16 %v1845
        %v2410 = vunpack.c.l.b16 %v1846
        %v2411 = vunpack.c.h.b16 %v1846
        %v2412 = vunpack.c.l.b16 %v1847
        %v2413 = vunpack.c.h.b16 %v1847
        %v2414 = vunpack.c.l.b16 %v1848
        %v2415 = vunpack.c.h.b16 %v1848
        %v2416 = vunpack.c.l.b16 %v1849
        %v2417 = vunpack.c.h.b16 %v1849
        %v2418 = vunpack.c.l.b16 %v1850
        %v2419 = vunpack.c.h.b16 %v1850
        %v2420 = vunpack.c.l.b16 %v1851
        %v2421 = vunpack.c.h.b16 %v1851
        %v2422 = vunpack.c.l.b16 %v1852
        %v2423 = vunpack.c.h.b16 %v1852
        %v2424 = vunpack.c.l.b16 %v1853
        %v2425 = vunpack.c.h.b16 %v1853
        %v2426 = vunpack.c.l.b16 %v1854
        %v2427 = vunpack.c.h.b16 %v1854
        %v2428 = vunpack.c.l.b16 %v1855
        %v2429 = vunpack.c.h.b16 %v1855
        %v2430 = vunpack.c.l.b16 %v1856
        %v2431 = vunpack.c.h.b16 %v1856
        %v2432 = vunpack.c.l.b16 %v1857
        %v2433 = vunpack.c.h.b16 %v1857
        %v2434 = vunpack.c.l.b16 %v1858
        %v2435 = vunpack.c.h.b16 %v1858
        %v2436 = vunpack.c.l.b16 %v1859
        %v2437 = vunpack.c.h.b16 %v1859
        %v2438 = vunpack.c.l.b16 %v1860
        %v2439 = vunpack.c.h.b16 %v1860
        %v2440 = vunpack.c.l.b16 %v1861
        %v2441 = vunpack.c.h.b16 %v1861
        %v2442 = vunpack.c.l.b16 %v1862
        %v2443 = vunpack.c.h.b16 %v1862
        %v2444 = vunpack.c.l.b16 %v1863
        %v2445 = vunpack.c.h.b16 %v1863
        %v2446 = vunpack.c.l.b16 %v1864
        %v2447 = vunpack.c.h.b16 %v1864
        %v2448 = vunpack.c.l.b16 %v1865
        %v2449 = vunpack.c.h.b16 %v1865
        %v2450 = vunpack.c.l.b16 %v1866
        %v2451 = vunpack.c.h.b16 %v1866
        %v2452 = vunpack.c.l.b16 %v1867
        %v2453 = vunpack.c.h.b16 %v1867
        %v2454 = vunpack.c.l.b16 %v1868
        %v2455 = vunpack.c.h.b16 %v1868
        %v2456 = vunpack.c.l.b16 %v1869
        %v2457 = vunpack.c.h.b16 %v1869
        %v2458 = vunpack.c.l.b16 %v1870
        %v2459 = vunpack.c.h.b16 %v1870
        %v2460 = vunpack.c.l.b16 %v1871
        %v2461 = vunpack.c.h.b16 %v1871
        %v2462 = vunpack.c.l.b16 %v1872
        %v2463 = vunpack.c.h.b16 %v1872
        %v2464 = vunpack.c.l.b16 %v1873
        %v2465 = vunpack.c.h.b16 %v1873
        %v2466 = vunpack.c.l.b16 %v1874
        %v2467 = vunpack.c.h.b16 %v1874
        %v2468 = vunpack.c.l.b16 %v1875
        %v2469 = vunpack.c.h.b16 %v1875
        %v2470 = vunpack.c.l.b16 %v1876
        %v2471 = vunpack.c.h.b16 %v1876
        %v2472 = vunpack.c.l.b16 %v1877
        %v2473 = vunpack.c.h.b16 %v1877
        %v2474 = vunpack.c.l.b16 %v1878
        %v2475 = vunpack.c.h.b16 %v1878
        %v2476 = vunpack.c.l.b16 %v1879
        %v2477 = vunpack.c.h.b16 %v1879
        %v2478 = vunpack.c.l.b16 %v1880
        %v2479 = vunpack.c.h.b16 %v1880
        %v2480 = vunpack.c.l.b16 %v1881
        %v2481 = vunpack.c.h.b16 %v1881
        %v2482 = vunpack.c.l.b16 %v1882
        %v2483 = vunpack.c.h.b16 %v1882
        %v2484 = vunpack.c.l.b16 %v1883
        %v2485 = vunpack.c.h.b16 %v1883
        %v2486 = vunpack.c.l.b16 %v1884
        %v2487 = vunpack.c.h.b16 %v1884
        %v2488 = vunpack.c.l.b16 %v1885
        %v2489 = vunpack.c.h.b16 %v1885
        %v2490 = vunpack.c.l.b16 %v1886
        %v2491 = vunpack.c.h.b16 %v1886
        %v2492 = vunpack.c.l.b16 %v1887
        %v2493 = vunpack.c.h.b16 %v1887
        %v2494 = vunpack.c.l.b16 %v1888
        %v2495 = vunpack.c.h.b16 %v1888
        %v2496 = vunpack.c.l.b16 %v1889
        %v2497 = vunpack.c.h.b16 %v1889
        %v2498 = vunpack.c.l.b16 %v1890
        %v2499 = vunpack.c.h.b16 %v1890
        %v2500 = vunpack.c.l.b16 %v1891
        %v2501 = vunpack.c.h.b16 %v1891
        %v2502 = vunpack.c.l.b16 %v1892
        %v2503 = vunpack.c.h.b16 %v1892
        %v2504 = vunpack.c.l.b16 %v1893
        %v2505 = vunpack.c.h.b16 %v1893
        %v2506 = vunpack.c.l.b16 %v1894
        %v2507 = vunpack.c.h.b16 %v1894
        %v2508 = vunpack.c.l.b16 %v1895
        %v2509 = vunpack.c.h.b16 %v1895
        %v2510 = vunpack.c.l.b16 %v1896
        %v2511 = vunpack.c.h.b16 %v1896
        %v2512 = vunpack.c.l.b16 %v1897
        %v2513 = vunpack.c.h.b16 %v1897
        %v2514 = vunpack.c.l.b16 %v1898
        %v2515 = vunpack.c.h.b16 %v1898
        %v2516 = vunpack.c.l.b16 %v1899
        %v2517 = vunpack.c.h.b16 %v1899
        %v2518 = vunpack.c.l.b16 %v1900
        %v2519 = vunpack.c.h.b16 %v1900
        %v2520 = vunpack.c.l.b16 %v1901
        %v2521 = vunpack.c.h.b16 %v1901
        %v2522 = vunpack.c.l.b16 %v1902
        %v2523 = vunpack.c.h.b16 %v1902
        %v2524 = vunpack.c.l.b16 %v1903
        %v2525 = vunpack.c.h.b16 %v1903
        %v2526 = vunpack.c.l.b16 %v1904
        %v2527 = vunpack.c.h.b16 %v1904
        %v2528 = vunpack.c.l.b16 %v1905
        %v2529 = vunpack.c.h.b16 %v1905
        %v2530 = vunpack.c.l.b16 %v1906
        %v2531 = vunpack.c.h.b16 %v1906
        %v2532 = vunpack.c.l.b16 %v1907
        %v2533 = vunpack.c.h.b16 %v1907
        %v2534 = vunpack.c.l.b16 %v1908
        %v2535 = vunpack.c.h.b16 %v1908
        %v2536 = vunpack.c.l.b16 %v1909
        %v2537 = vunpack.c.h.b16 %v1909
        %v2538 = vunpack.c.l.b16 %v1910
        %v2539 = vunpack.c.h.b16 %v1910
        %v2540 = vunpack.c.l.b16 %v1911
        %v2541 = vunpack.c.h.b16 %v1911
        %v2542 = vunpack.c.l.b16 %v1912
        %v2543 = vunpack.c.h.b16 %v1912
        %v2544 = vunpack.c.l.b16 %v1913
        %v2545 = vunpack.c.h.b16 %v1913
        %v2546 = vunpack.c.l.b16 %v1914
        %v2547 = vunpack.c.h.b16 %v1914
        %v2548 = vunpack.c.l.b16 %v1915
        %v2549 = vunpack.c.h.b16 %v1915
        %v2550 = vunpack.c.l.b16 %v1916
        %v2551 = vunpack.c.h.b16 %v1916
        %v2552 = vunpack.c.l.b16 %v1917
        %v2553 = vunpack.c.h.b16 %v1917
        %v2554 = vunpack.c.l.b16 %v1918
        %v2555 = vunpack.c.h.b16 %v1918
        %v2556 = vunpack.c.l.b16 %v1919
        %v2557 = vunpack.c.h.b16 %v1919
        %v2558 = vunpack.c.l.b16 %v1920
        %v2559 = vunpack.c.h.b16 %v1920
        %v2560 = vunpack.c.l.b16 %v1921
        %v2561 = vunpack.c.h.b16 %v1921
        %v2562 = vunpack.c.l.b16 %v1922
        %v2563 = vunpack.c.h.b16 %v1922
        %v2564 = vunpack.c.l.b16 %v1923
        %v2565 = vunpack.c.h.b16 %v1923
        %v2566 = vunpack.c.l.b16 %v1924
        %v2567 = vunpack.c.h.b16 %v1924
        %v2568 = vunpack.c.l.b16 %v1925
        %v2569 = vunpack.c.h.b16 %v1925
        %v2570 = vunpack.c.l.b16 %v1926
        %v2571 = vunpack.c.h.b16 %v1926
        %v2572 = vunpack.c.l.b16 %v1927
        %v2573 = vunpack.c.h.b16 %v1927
        %v2574 = vunpack.c.l.b16 %v1928
        %v2575 = vunpack.c.h.b16 %v1928
        %v2576 = vunpack.c.l.b16 %v1929
        %v2577 = vunpack.c.h.b16 %v1929
        %v2578 = vunpack.c.l.b16 %v1930
        %v2579 = vunpack.c.h.b16 %v1930
        %v2580 = vunpack.c.l.b16 %v1931
        %v2581 = vunpack.c.h.b16 %v1931
        %v2582 = vunpack.c.l.b16 %v1932
        %v2583 = vunpack.c.h.b16 %v1932
        %v2584 = vunpack.c.l.b16 %v1933
        %v2585 = vunpack.c.h.b16 %v1933
        %v2586 = vunpack.c.l.b16 %v1934
        %v2587 = vunpack.c.h.b16 %v1934
        %v2588 = vunpack.c.l.b16 %v1935
        %v2589 = vunpack.c.h.b16 %v1935
        %v2590 = vunpack.c.l.b16 %v1936
        %v2591 = vunpack.c.h.b16 %v1936
        %v2592 = vunpack.c.l.b16 %v1937
        %v2593 = vunpack.c.h.b16 %v1937
        %v2594 = vunpack.c.l.b16 %v1938
        %v2595 = vunpack.c.h.b16 %v1938
        %v2596 = vunpack.c.l.b16 %v1939
        %v2597 = vunpack.c.h.b16 %v1939
        %v2598 = vunpack.c.l.b16 %v1940
        %v2599 = vunpack.c.h.b16 %v1940
        %v2600 = vunpack.c.l.b16 %v1941
        %v2601 = vunpack.c.h.b16 %v1941
        %v2602 = vunpack.c.l.b16 %v1942
        %v2603 = vunpack.c.h.b16 %v1942
        %v2604 = vunpack.c.l.b16 %v1943
        %v2605 = vunpack.c.h.b16 %v1943
        %v2606 = vunpack.c.l.b16 %v1944
        %v2607 = vunpack.c.h.b16 %v1944
        %v2608 = vunpack.c.l.b16 %v1945
        %v2609 = vunpack.c.h.b16 %v1945
        %v2610 = vunpack.c.l.b16 %v1946
        %v2611 = vunpack.c.h.b16 %v1946
        %v2612 = vunpack.c.l.b16 %v1947
        %v2613 = vunpack.c.h.b16 %v1947
        %v2614 = vunpack.c.l.b16 %v1948
        %v2615 = vunpack.c.h.b16 %v1948
        %v2616 = vunpack.c.l.b16 %v1949
        %v2617 = vunpack.c.h.b16 %v1949
        %v2618 = vunpack.c.l.b16 %v1950
        %v2619 = vunpack.c.h.b16 %v1950
        %v2620 = vunpack.c.l.b16 %v1951
        %v2621 = vunpack.c.h.b16 %v1951
        %v2622 = vunpack.c.l.b16 %v1952
        %v2623 = vunpack.c.h.b16 %v1952
        %v2624 = vunpack.c.l.b16 %v1953
        %v2625 = vunpack.c.h.b16 %v1953
        %v2626 = vunpack.c.l.b16 %v1954
        %v2627 = vunpack.c.h.b16 %v1954
        %v2628 = vunpack.c.l.b16 %v1955
        %v2629 = vunpack.c.h.b16 %v1955
        %v2630 = vunpack.c.l.b16 %v1956
        %v2631 = vunpack.c.h.b16 %v1956
        %v2632 = vunpack.c.l.b16 %v1957
        %v2633 = vunpack.c.h.b16 %v1957
        %v2634 = vunpack.c.l.b16 %v1958
        %v2635 = vunpack.c.h.b16 %v1958
        %v2636 = vunpack.c.l.b16 %v1959
        %v2637 = vunpack.c.h.b16 %v1959
        %v2638 = vunpack.c.l.b16 %v1960
        %v2639 = vunpack.c.h.b16 %v1960
        %v2640 = vunpack.c.l.b16 %v1961
        %v2641 = vunpack.c.h.b16 %v1961
        %v2642 = vunpack.c.l.b16 %v1962
        %v2643 = vunpack.c.h.b16 %v1962
        %v2644 = vunpack.c.l.b16 %v1963
        %v2645 = vunpack.c.h.b16 %v1963
        %v2646 = vunpack.c.l.b16 %v1964
        %v2647 = vunpack.c.h.b16 %v1964
        %v2648 = vunpack.c.l.b16 %v1965
        %v2649 = vunpack.c.h.b16 %v1965
        %v2650 = vunpack.c.l.b16 %v1966
        %v2651 = vunpack.c.h.b16 %v1966
        %v2652 = vunpack.c.l.b16 %v1967
        %v2653 = vunpack.c.h.b16 %v1967
        %v2654 = vunpack.c.l.b16 %v1968
        %v2655 = vunpack.c.h.b16 %v1968
        %v2656 = vunpack.c.l.b16 %v1969
        %v2657 = vunpack.c.h.b16 %v1969
        %v2658 = vunpack.c.l.b16 %v1970
        %v2659 = vunpack.c.h.b16 %v1970
        %v2660 = vunpack.c.l.b16 %v1971
        %v2661 = vunpack.c.h.b16 %v1971
        %v2662 = vunpack.c.l.b16 %v1972
        %v2663 = vunpack.c.h.b16 %v1972
        %v2664 = vunpack.c.l.b16 %v1973
        %v2665 = vunpack.c.h.b16 %v1973
        %v2666 = vunpack.c.l.b16 %v1974
        %v2667 = vunpack.c.h.b16 %v1974
        %v2668 = vunpack.c.l.b16 %v1975
        %v2669 = vunpack.c.h.b16 %v1975
        %v2670 = vunpack.c.l.b16 %v1976
        %v2671 = vunpack.c.h.b16 %v1976
        %v2672 = vunpack.c.l.b16 %v1977
        %v2673 = vunpack.c.h.b16 %v1977
        %v2674 = vunpack.c.l.b16 %v1978
        %v2675 = vunpack.c.h.b16 %v1978
        %v2676 = vunpack.c.l.b16 %v1979
        %v2677 = vunpack.c.h.b16 %v1979
        %v2678 = vunpack.c.l.b16 %v1980
        %v2679 = vunpack.c.h.b16 %v1980
        %v2680 = vunpack.c.l.b16 %v1981
        %v2681 = vunpack.c.h.b16 %v1981
        %v2682 = vunpack.c.l.b16 %v1982
        %v2683 = vunpack.c.h.b16 %v1982
        %v2684 = vunpack.c.l.b16 %v1983
        %v2685 = vunpack.c.h.b16 %v1983
        %v2686 = vunpack.c.l.b16 %v1984
        %v2687 = vunpack.c.h.b16 %v1984
        %v2688 = vunpack.c.l.b16 %v1985
        %v2689 = vunpack.c.h.b16 %v1985
        %v2690 = vunpack.c.l.b16 %v1986
        %v2691 = vunpack.c.h.b16 %v1986
        %v2692 = vunpack.c.l.b16 %v1987
        %v2693 = vunpack.c.h.b16 %v1987
        %v2694 = vunpack.c.l.b16 %v1988
        %v2695 = vunpack.c.h.b16 %v1988
        %v2696 = vunpack.c.l.b16 %v1989
        %v2697 = vunpack.c.h.b16 %v1989
        %v2698 = vunpack.c.l.b16 %v1990
        %v2699 = vunpack.c.h.b16 %v1990
        %v2700 = vunpack.c.l.b16 %v1991
        %v2701 = vunpack.c.h.b16 %v1991
        %v2702 = vunpack.c.l.b16 %v1992
        %v2703 = vunpack.c.h.b16 %v1992
        %v2704 = vunpack.c.l.b16 %v1993
        %v2705 = vunpack.c.h.b16 %v1993
        %v2706 = vunpack.c.l.b16 %v1994
        %v2707 = vunpack.c.h.b16 %v1994
        %v2708 = vunpack.c.l.b16 %v1995
        %v2709 = vunpack.c.h.b16 %v1995
        %v2710 = vunpack.c.l.b16 %v1996
        %v2711 = vunpack.c.h.b16 %v1996
        %v2712 = vunpack.c.l.b16 %v1997
        %v2713 = vunpack.c.h.b16 %v1997
        %v2714 = vunpack.c.l.b16 %v1998
        %v2715 = vunpack.c.h.b16 %v1998
        %v2716 = vunpack.c.l.b16 %v1999
        %v2717 = vunpack.c.h.b16 %v1999
        %v2718 = vunpack.c.l.b16 %v2000
        %v2719 = vunpack.c.h.b16 %v2000
        %v2720 = vunpack.c.l.b16 %v2001
        %v2721 = vunpack.c.h.b16 %v2001
        %v2722 = vunpack.c.l.b16 %v2002
        %v2723 = vunpack.c.h.b16 %v2002
        %v2724 = vunpack.c.l.b16 %v2003
        %v2725 = vunpack.c.h.b16 %v2003
        %v2726 = vunpack.c.l.b16 %v2004
        %v2727 = vunpack.c.h.b16 %v2004
        %v2728 = vunpack.c.l.b16 %v2005
        %v2729 = vunpack.c.h.b16 %v2005
        %v2730 = vunpack.c.l.b16 %v2006
        %v2731 = vunpack.c.h.b16 %v2006
        %v2732 = vunpack.c.l.b16 %v2007
        %v2733 = vunpack.c.h.b16 %v2007
        %v2734 = vunpack.c.l.b16 %v2008
        %v2735 = vunpack.c.h.b16 %v2008
        %v2736 = vunpack.c.l.b16 %v2009
        %v2737 = vunpack.c.h.b16 %v2009
        %v2738 = vunpack.c.l.b16 %v2010
        %v2739 = vunpack.c.h.b16 %v2010
        %v2740 = vunpack.c.l.b16 %v2011
        %v2741 = vunpack.c.h.b16 %v2011
        %v2742 = vunpack.c.l.b16 %v2012
        %v2743 = vunpack.c.h.b16 %v2012
        %v2744 = vunpack.c.l.b16 %v2013
        %v2745 = vunpack.c.h.b16 %v2013
        %v2746 = vunpack.c.l.b16 %v2014
        %v2747 = vunpack.c.h.b16 %v2014
        %v2748 = vunpack.c.l.b16 %v2015
        %v2749 = vunpack.c.h.b16 %v2015
        %v2750 = vunpack.c.l.b16 %v2016
        %v2751 = vunpack.c.h.b16 %v2016
        %v2752 = vunpack.c.l.b16 %v2017
        %v2753 = vunpack.c.h.b16 %v2017
        %v2754 = vunpack.c.l.b16 %v2018
        %v2755 = vunpack.c.h.b16 %v2018
        %v2756 = vunpack.c.l.b16 %v2019
        %v2757 = vunpack.c.h.b16 %v2019
        %v2758 = vunpack.c.l.b16 %v2020
        %v2759 = vunpack.c.h.b16 %v2020
        %v2760 = vunpack.c.l.b16 %v2021
        %v2761 = vunpack.c.h.b16 %v2021
        %v2762 = vunpack.c.l.b16 %v2022
        %v2763 = vunpack.c.h.b16 %v2022
        %v2764 = vunpack.c.l.b16 %v2023
        %v2765 = vunpack.c.h.b16 %v2023
        %v2766 = vunpack.c.l.b16 %v2024
        %v2767 = vunpack.c.h.b16 %v2024
        %v2768 = vunpack.c.l.b16 %v2025
        %v2769 = vunpack.c.h.b16 %v2025
        %v2770 = vunpack.c.l.b16 %v2026
        %v2771 = vunpack.c.h.b16 %v2026
        %v2772 = vunpack.c.l.b16 %v2027
        %v2773 = vunpack.c.h.b16 %v2027
        %v2774 = vunpack.c.l.b16 %v2028
        %v2775 = vunpack.c.h.b16 %v2028
        %v2776 = vunpack.c.l.b16 %v2029
        %v2777 = vunpack.c.h.b16 %v2029
        %v2778 = vunpack.c.l.b16 %v2030
        %v2779 = vunpack.c.h.b16 %v2030
        %v2780 = vunpack.c.l.b16 %v2031
        %v2781 = vunpack.c.h.b16 %v2031
        %v2782 = vunpack.c.l.b16 %v2032
        %v2783 = vunpack.c.h.b16 %v2032
        %v2784 = vunpack.c.l.b16 %v2033
        %v2785 = vunpack.c.h.b16 %v2033
        %v2786 = vunpack.c.l.b16 %v2034
        %v2787 = vunpack.c.h.b16 %v2034
        %v2788 = vunpack.c.l.b16 %v2035
        %v2789 = vunpack.c.h.b16 %v2035
        %v2790 = vunpack.c.l.b16 %v2036
        %v2791 = vunpack.c.h.b16 %v2036
        %v2792 = vunpack.c.l.b16 %v2037
        %v2793 = vunpack.c.h.b16 %v2037
        %v2794 = vunpack.c.l.b16 %v2038
        %v2795 = vunpack.c.h.b16 %v2038
        %v2796 = vunpack.c.l.b16 %v2039
        %v2797 = vunpack.c.h.b16 %v2039
        %v2798 = vunpack.c.l.b16 %v2040
        %v2799 = vunpack.c.h.b16 %v2040
        %v2800 = vunpack.c.l.b16 %v2041
        %v2801 = vunpack.c.h.b16 %v2041
        %v2802 = vunpack.c.l.b16 %v2042
        %v2803 = vunpack.c.h.b16 %v2042
        %v2804 = vunpack.c.l.b16 %v2043
        %v2805 = vunpack.c.h.b16 %v2043
        %v2806 = vunpack.c.l.b16 %v2044
        %v2807 = vunpack.c.h.b16 %v2044
        %v2808 = vunpack.c.l.b16 %v2045
        %v2809 = vunpack.c.h.b16 %v2045
        %v2810 = vunpack.c.l.b16 %v2046
        %v2811 = vunpack.c.h.b16 %v2046
        %v2812 = vunpack.c.l.b16 %v2047
        %v2813 = vunpack.c.h.b16 %v2047
        %v2814 = vunpack.c.l.b16 %v2048
        %v2815 = vunpack.c.h.b16 %v2048
        %v2816 = vunpack.c.l.b16 %v2049
        %v2817 = vunpack.c.h.b16 %v2049
        %v2818 = vpack.c.b16 %v2314, %v2306
        %v2819 = vpack.c.b16 %v2315, %v2307
        %v2820 = vpack.c.b16 %v2316, %v2308
        %v2821 = vpack.c.b16 %v2317, %v2309
        %v2822 = vpack.c.b16 %v2318, %v2310
        %v2823 = vpack.c.b16 %v2319, %v2311
        %v2824 = vpack.c.b16 %v2320, %v2312
        %v2825 = vpack.c.b16 %v2321, %v2313
        %v2826 = vpack.c.b16 %v2330, %v2322
        %v2827 = vpack.c.b16 %v2331, %v2323
        %v2828 = vpack.c.b16 %v2332, %v2324
        %v2829 = vpack.c.b16 %v2333, %v2325
        %v2830 = vpack.c.b16 %v2334, %v2326
        %v2831 = vpack.c.b16 %v2335, %v2327
        %v2832 = vpack.c.b16 %v2336, %v2328
        %v2833 = vpack.c.b16 %v2337, %v2329
        %v2834 = vpack.c.b16 %v2346, %v2338
        %v2835 = vpack.c.b16 %v2347, %v2339
        %v2836 = vpack.c.b16 %v2348, %v2340
        %v2837 = vpack.c.b16 %v2349, %v2341
        %v2838 = vpack.c.b16 %v2350, %v2342
        %v2839 = vpack.c.b16 %v2351, %v2343
        %v2840 = vpack.c.b16 %v2352, %v2344
        %v2841 = vpack.c.b16 %v2353, %v2345
        %v2842 = vpack.c.b16 %v2362, %v2354
        %v2843 = vpack.c.b16 %v2363, %v2355
        %v2844 = vpack.c.b16 %v2364, %v2356
        %v2845 = vpack.c.b16 %v2365, %v2357
        %v2846 = vpack.c.b16 %v2366, %v2358
        %v2847 = vpack.c.b16 %v2367, %v2359
        %v2848 = vpack.c.b16 %v2368, %v2360
        %v2849 = vpack.c.b16 %v2369, %v2361
        %v2850 = vpack.c.b16 %v2378, %v2370
        %v2851 = vpack.c.b16 %v2379, %v2371
        %v2852 = vpack.c.b16 %v2380, %v2372
        %v2853 = vpack.c.b16 %v2381, %v2373
        %v2854 = vpack.c.b16 %v2382, %v2374
        %v2855 = vpack.c.b16 %v2383, %v2375
        %v2856 = vpack.c.b16 %v2384, %v2376
        %v2857 = vpack.c.b16 %v2385, %v2377
        %v2858 = vpack.c.b16 %v2394, %v2386
        %v2859 = vpack.c.b16 %v2395, %v2387
        %v2860 = vpack.c.b16 %v2396, %v2388
        %v2861 = vpack.c.b16 %v2397, %v2389
        %v2862 = vpack.c.b16 %v2398, %v2390
        %v2863 = vpack.c.b16 %v2399, %v2391
        %v2864 = vpack.c.b16 %v2400, %v2392
        %v2865 = vpack.c.b16 %v2401, %v2393
        %v2866 = vpack.c.b16 %v2410, %v2402
        %v2867 = vpack.c.b16 %v2411, %v2403
        %v2868 = vpack.c.b16 %v2412, %v2404
        %v2869 = vpack.c.b16 %v2413, %v2405
        %v2870 = vpack.c.b16 %v2414, %v2406
        %v2871 = vpack.c.b16 %v2415, %v2407
        %v2872 = vpack.c.b16 %v2416, %v2408
        %v2873 = vpack.c.b16 %v2417, %v2409
        %v2874 = vpack.c.b16 %v2426, %v2418
        %v2875 = vpack.c.b16 %v2427, %v2419
        %v2876 = vpack.c.b16 %v2428, %v2420
        %v2877 = vpack.c.b16 %v2429, %v2421
        %v2878 = vpack.c.b16 %v2430, %v2422
        %v2879 = vpack.c.b16 %v2431, %v2423
        %v2880 = vpack.c.b16 %v2432, %v2424
        %v2881 = vpack.c.b16 %v2433, %v2425
        %v2882 = vpack.c.b16 %v2442, %v2434
        %v2883 = vpack.c.b16 %v2443, %v2435
        %v2884 = vpack.c.b16 %v2444, %v2436
        %v2885 = vpack.c.b16 %v2445, %v2437
        %v2886 = vpack.c.b16 %v2446, %v2438
        %v2887 = vpack.c.b16 %v2447, %v2439
        %v2888 = vpack.c.b16 %v2448, %v2440
        %v2889 = vpack.c.b16 %v2449, %v2441
        %v2890 = vpack.c.b16 %v2458, %v2450
        %v2891 = vpack.c.b16 %v2459, %v2451
        %v2892 = vpack.c.b16 %v2460, %v2452
        %v2893 = vpack.c.b16 %v2461, %v2453
        %v2894 = vpack.c.b16 %v2462, %v2454
        %v2895 = vpack.c.b16 %v2463, %v2455
        %v2896 = vpack.c.b16 %v2464, %v2456
        %v2897 = vpack.c.b16 %v2465, %v2457
        %v2898 = vpack.c.b16 %v2474, %v2466
        %v2899 = vpack.c.b16 %v2475, %v2467
        %v2900 = vpack.c.b16 %v2476, %v2468
        %v2901 = vpack.c.b16 %v2477, %v2469
        %v2902 = vpack.c.b16 %v2478, %v2470
        %v2903 = vpack.c.b16 %v2479, %v2471
        %v2904 = vpack.c.b16 %v2480, %v2472
        %v2905 = vpack.c.b16 %v2481, %v2473
        %v2906 = vpack.c.b16 %v2490, %v2482
        %v2907 = vpack.c.b16 %v2491, %v2483
        %v2908 = vpack.c.b16 %v2492, %v2484
        %v2909 = vpack.c.b16 %v2493, %v2485
        %v2910 = vpack.c.b16 %v2494, %v2486
        %v2911 = vpack.c.b16 %v2495, %v2487
        %v2912 = vpack.c.b16 %v2496, %v2488
        %v2913 = vpack.c.b16 %v2497, %v2489
        %v2914 = vpack.c.b16 %v2506, %v2498
        %v2915 = vpack.c.b16 %v2507, %v2499
        %v2916 = vpack.c.b16 %v2508, %v2500
        %v2917 = vpack.c.b16 %v2509, %v2501
        %v2918 = vpack.c.b16 %v2510, %v2502
        %v2919 = vpack.c.b16 %v2511, %v2503
        %v2920 = vpack.c.b16 %v2512, %v2504
        %v2921 = vpack.c.b16 %v2513, %v2505
        %v2922 = vpack.c.b16 %v2522, %v2514
        %v2923 = vpack.c.b16 %v2523, %v2515
        %v2924 = vpack.c.b16 %v2524, %v2516
        %v2925 = vpack.c.b16 %v2525, %v2517
        %v2926 = vpack.c.b16 %v2526, %v2518
        %v2927 = vpack.c.b16 %v2527, %v2519
        %v2928 = vpack.c.b16 %v2528, %v2520
        %v2929 = vpack.c.b16 %v2529, %v2521
        %v2930 = vpack.c.b16 %v2538, %v2530
        %v2931 = vpack.c.b16 %v2539, %v2531
        %v2932 = vpack.c.b16 %v2540, %v2532
        %v2933 = vpack.c.b16 %v2541, %v2533
        %v2934 = vpack.c.b16 %v2542, %v2534
        %v2935 = vpack.c.b16 %v2543, %v2535
        %v2936 = vpack.c.b16 %v2544, %v2536
        %v2937 = vpack.c.b16 %v2545, %v2537
        %v2938 = vpack.c.b16 %v2554, %v2546
        %v2939 = vpack.c.b16 %v2555, %v2547
        %v2940 = vpack.c.b16 %v2556, %v2548
        %v2941 = vpack.c.b16 %v2557, %v2549
        %v2942 = vpack.c.b16 %v2558, %v2550
        %v2943 = vpack.c.b16 %v2559, %v2551
        %v2944 = vpack.c.b16 %v2560, %v2552
        %v2945 = vpack.c.b16 %v2561, %v2553
        %v2946 = vpack.c.b16 %v2570, %v2562
        %v2947 = vpack.c.b16 %v2571, %v2563
        %v2948 = vpack.c.b16 %v2572, %v2564
        %v2949 = vpack.c.b16 %v2573, %v2565
        %v2950 = vpack.c.b16 %v2574, %v2566
        %v2951 = vpack.c.b16 %v2575, %v2567
        %v2952 = vpack.c.b16 %v2576, %v2568
        %v2953 = vpack.c.b16 %v2577, %v2569
        %v2954 = vpack.c.b16 %v2586, %v2578
        %v2955 = vpack.c.b16 %v2587, %v2579
        %v2956 = vpack.c.b16 %v2588, %v2580
        %v2957 = vpack.c.b16 %v2589, %v2581
        %v2958 = vpack.c.b16 %v2590, %v2582
        %v2959 = vpack.c.b16 %v2591, %v2583
        %v2960 = vpack.c.b16 %v2592, %v2584
        %v2961 = vpack.c.b16 %v2593, %v2585
        %v2962 = vpack.c.b16 %v2602, %v2594
        %v2963 = vpack.c.b16 %v2603, %v2595
        %v2964 = vpack.c.b16 %v2604, %v2596
        %v2965 = vpack.c.b16 %v2605, %v2597
        %v2966 = vpack.c.b16 %v2606, %v2598
        %v2967 = vpack.c.b16 %v2607, %v2599
        %v2968 = vpack.c.b16 %v2608, %v2600
        %v2969 = vpack.c.b16 %v2609, %v2601
        %v2970 = vpack.c.b16 %v2618, %v2610
        %v2971 = vpack.c.b16 %v2619, %v2611
        %v2972 = vpack.c.b16 %v2620, %v2612
        %v2973 = vpack.c.b16 %v2621, %v2613
        %v2974 = vpack.c.b16 %v2622, %v2614
        %v2975 = vpack.c.b16 %v2623, %v2615
        %v2976 = vpack.c.b16 %v2624, %v2616
        %v2977 = vpack.c.b16 %v2625, %v2617
        %v2978 = vpack.c.b16 %v2634, %v2626
        %v2979 = vpack.c.b16 %v2635, %v2627
        %v2980 = vpack.c.b16 %v2636, %v2628
        %v2981 = vpack.c.b16 %v2637, %v2629
        %v2982 = vpack.c.b16 %v2638, %v2630
        %v2983 = vpack.c.b16 %v2639, %v2631
        %v2984 = vpack.c.b16 %v2640, %v2632
        %v2985 = vpack.c.b16 %v2641, %v2633
        %v2986 = vpack.c.b16 %v2650, %v2642
        %v2987 = vpack.c.b16 %v2651, %v2643
        %v2988 = vpack.c.b16 %v2652, %v2644
        %v2989 = vpack.c.b16 %v2653, %v2645
        %v2990 = vpack.c.b16 %v2654, %v2646
        %v2991 = vpack.c.b16 %v2655, %v2647
        %v2992 = vpack.c.b16 %v2656, %v2648
        %v2993 = vpack.c.b16 %v2657, %v2649
        %v2994 = vpack.c.b16 %v2666, %v2658
        %v2995 = vpack.c.b16 %v2667, %v2659
        %v2996 = vpack.c.b16 %v2668, %v2660
        %v2997 = vpack.c.b16 %v2669, %v2661
        %v2998 = vpack.c.b16 %v2670, %v2662
        %v2999 = vpack.c.b16 %v2671, %v2663
        %v3000 = vpack.c.b16 %v2672, %v2664
        %v3001 = vpack.c.b16 %v2673, %v2665
        %v3002 = vpack.c.b16 %v2682, %v2674
        %v3003 = vpack.c.b16 %v2683, %v2675
        %v3004 = vpack.c.b16 %v2684, %v2676
        %v3005 = vpack.c.b16 %v2685, %v2677
        %v3006 = vpack.c.b16 %v2686, %v2678
        %v3007 = vpack.c.b16 %v2687, %v2679
        %v3008 = vpack.c.b16 %v2688, %v2680
        %v3009 = vpack.c.b16 %v2689, %v2681
        %v3010 = vpack.c.b16 %v2698, %v2690
        %v3011 = vpack.c.b16 %v2699, %v2691
        %v3012 = vpack.c.b16 %v2700, %v2692
        %v3013 = vpack.c.b16 %v2701, %v2693
        %v3014 = vpack.c.b16 %v2702, %v2694
        %v3015 = vpack.c.b16 %v2703, %v2695
        %v3016 = vpack.c.b16 %v2704, %v2696
        %v3017 = vpack.c.b16 %v2705, %v2697
        %v3018 = vpack.c.b16 %v2714, %v2706
        %v3019 = vpack.c.b16 %v2715, %v2707
        %v3020 = vpack.c.b16 %v2716, %v2708
        %v3021 = vpack.c.b16 %v2717, %v2709
        %v3022 = vpack.c.b16 %v2718, %v2710
        %v3023 = vpack.c.b16 %v2719, %v2711
        %v3024 = vpack.c.b16 %v2720, %v2712
        %v3025 = vpack.c.b16 %v2721, %v2713
        %v3026 = vpack.c.b16 %v2730, %v2722
        %v3027 = vpack.c.b16 %v2731, %v2723
        %v3028 = vpack.c.b16 %v2732, %v2724
        %v3029 = vpack.c.b16 %v2733, %v2725
        %v3030 = vpack.c.b16 %v2734, %v2726
        %v3031 = vpack.c.b16 %v2735, %v2727
        %v3032 = vpack.c.b16 %v2736, %v2728
        %v3033 = vpack.c.b16 %v2737, %v2729
        %v3034 = vpack.c.b16 %v2746, %v2738
        %v3035 = vpack.c.b16 %v2747, %v2739
        %v3036 = vpack.c.b16 %v2748, %v2740
        %v3037 = vpack.c.b16 %v2749, %v2741
        %v3038 = vpack.c.b16 %v2750, %v2742
        %v3039 = vpack.c.b16 %v2751, %v2743
        %v3040 = vpack.c.b16 %v2752, %v2744
        %v3041 = vpack.c.b16 %v2753, %v2745
        %v3042 = vpack.c.b16 %v2762, %v2754
        %v3043 = vpack.c.b16 %v2763, %v2755
        %v3044 = vpack.c.b16 %v2764, %v2756
        %v3045 = vpack.c.b16 %v2765, %v2757
        %v3046 = vpack.c.b16 %v2766, %v2758
        %v3047 = vpack.c.b16 %v2767, %v2759
        %v3048 = vpack.c.b16 %v2768, %v2760
        %v3049 = vpack.c.b16 %v2769, %v2761
        %v3050 = vpack.c.b16 %v2778, %v2770
        %v3051 = vpack.c.b16 %v2779, %v2771
        %v3052 = vpack.c.b16 %v2780, %v2772
        %v3053 = vpack.c.b16 %v2781, %v2773
        %v3054 = vpack.c.b16 %v2782, %v2774
        %v3055 = vpack.c.b16 %v2783, %v2775
        %v3056 = vpack.c.b16 %v2784, %v2776
        %v3057 = vpack.c.b16 %v2785, %v2777
        %v3058 = vpack.c.b16 %v2794, %v2786
        %v3059 = vpack.c.b16 %v2795, %v2787
        %v3060 = vpack.c.b16 %v2796, %v2788
        %v3061 = vpack.c.b16 %v2797, %v2789
        %v3062 = vpack.c.b16 %v2798, %v2790
        %v3063 = vpack.c.b16 %v2799, %v2791
        %v3064 = vpack.c.b16 %v2800, %v2792
        %v3065 = vpack.c.b16 %v2801, %v2793
        %v3066 = vpack.c.b16 %v2810, %v2802
        %v3067 = vpack.c.b16 %v2811, %v2803
        %v3068 = vpack.c.b16 %v2812, %v2804
        %v3069 = vpack.c.b16 %v2813, %v2805
        %v3070 = vpack.c.b16 %v2814, %v2806
        %v3071 = vpack.c.b16 %v2815, %v2807
        %v3072 = vpack.c.b16 %v2816, %v2808
        %v3073 = vpack.c.b16 %v2817, %v2809
        %3330 = vmatprep.subr.bf16.mxu0 %v2875
        %3331 = vmatpush1.bf16.msra.mxu0 %v2874
        %3332 = vmatprep.subr.bf16.mxu0 %v2867
        %3333 = vmatpush1.bf16.msra.mxu0 %v2866
        %3334 = vmatprep.subr.bf16.mxu0 %v2859
        %3335 = vmatpush1.bf16.msra.mxu0 %v2858
        %3336 = vmatprep.subr.bf16.mxu0 %v2851
        %3337 = vmatpush1.bf16.msra.mxu0 %v2850
        %3338 = vmatprep.subr.bf16.mxu0 %v2843
        %3339 = vmatpush1.bf16.msra.mxu0 %v2842
        %3340 = vmatprep.subr.bf16.mxu0 %v2835
        %3341 = vmatpush1.bf16.msra.mxu0 %v2834
        %3342 = vmatprep.subr.bf16.mxu0 %v2827
        %3343 = vmatpush1.bf16.msra.mxu0 %v2826
        %3344 = vmatprep.subr.bf16.mxu0 %v2819
        %3345 = vmatpush1.bf16.msra.mxu0 %v2818
        %3346 = vmatprep.subr.bf16.mxu0 %v2939
        %3347 = vmatpush2.bf16.msra.mxu0 %v2938
        %3348 = vmatprep.subr.bf16.mxu0 %v2931
        %3349 = vmatpush2.bf16.msra.mxu0 %v2930
        %3350 = vmatprep.subr.bf16.mxu0 %v2923
        %3351 = vmatpush2.bf16.msra.mxu0 %v2922
        %3352 = vmatprep.subr.bf16.mxu0 %v2915
        %3353 = vmatpush2.bf16.msra.mxu0 %v2914
        %3354 = vmatprep.subr.bf16.mxu0 %v2907
        %3355 = vmatpush2.bf16.msra.mxu0 %v2906
        %3356 = vmatprep.subr.bf16.mxu0 %v2899
        %3357 = vmatpush2.bf16.msra.mxu0 %v2898
        %3358 = vmatprep.subr.bf16.mxu0 %v2891
        %3359 = vmatpush2.bf16.msra.mxu0 %v2890
        %3360 = vmatprep.subr.bf16.mxu0 %v2883
        %3361 = vmatpush2.bf16.msra.mxu0 %v2882
        %3362 = vmatprep.mubr.bf16.mxu0 %v1791
        %3363 = vmatmul.mubr.bf16.gmra.mxu0 %v1790
        %v3364 = vpop.f32.mrf.mxu0
        %v3365 = vadd.f32 0.0, %v3364
        %v3366 = vpop.f32.mrf.mxu0
        %v3367 = vadd.f32 0.0, %v3366
        %v3368 = vpop.f32.mrf.mxu0
        %v3369 = vpop.f32.mrf.mxu0
        %3370 = vdwg.mxu0
        %3371 = vmatprep.subr.bf16.mxu0 %v3003
        %3372 = vmatpush1.bf16.msra.mxu0 %v3002
        %3373 = vmatprep.subr.bf16.mxu0 %v2995
        %3374 = vmatpush1.bf16.msra.mxu0 %v2994
        %3375 = vmatprep.subr.bf16.mxu0 %v2987
        %3376 = vmatpush1.bf16.msra.mxu0 %v2986
        %3377 = vmatprep.subr.bf16.mxu0 %v2979
        %3378 = vmatpush1.bf16.msra.mxu0 %v2978
        %3379 = vmatprep.subr.bf16.mxu0 %v2971
        %3380 = vmatpush1.bf16.msra.mxu0 %v2970
        %3381 = vmatprep.subr.bf16.mxu0 %v2963
        %3382 = vmatpush1.bf16.msra.mxu0 %v2962
        %3383 = vmatprep.subr.bf16.mxu0 %v2955
        %3384 = vmatpush1.bf16.msra.mxu0 %v2954
        %3385 = vmatprep.subr.bf16.mxu0 %v2947
        %3386 = vmatpush1.bf16.msra.mxu0 %v2946
        %3387 = vmatprep.subr.bf16.mxu0 %v3067
        %3388 = vmatpush2.bf16.msra.mxu0 %v3066
        %3389 = vmatprep.subr.bf16.mxu0 %v3059
        %3390 = vmatpush2.bf16.msra.mxu0 %v3058
        %3391 = vmatprep.subr.bf16.mxu0 %v3051
        %3392 = vmatpush2.bf16.msra.mxu0 %v3050
        %3393 = vmatprep.subr.bf16.mxu0 %v3043
        %3394 = vmatpush2.bf16.msra.mxu0 %v3042
        %3395 = vmatprep.subr.bf16.mxu0 %v3035
        %3396 = vmatpush2.bf16.msra.mxu0 %v3034
        %3397 = vmatprep.subr.bf16.mxu0 %v3027
        %3398 = vmatpush2.bf16.msra.mxu0 %v3026
        %3399 = vmatprep.subr.bf16.mxu0 %v3019
        %3400 = vmatpush2.bf16.msra.mxu0 %v3018
        %3401 = vmatprep.subr.bf16.mxu0 %v3011
        %3402 = vmatpush2.bf16.msra.mxu0 %v3010
        %3403 = vmatprep.mubr.bf16.mxu0 %v1793
        %3404 = vmatmul.mubr.bf16.gmra.mxu0 %v1792
        %v3405 = vpop.f32.mrf.mxu0
        %v3406 = vadd.f32 %v3365, %v3405
        %v3407 = vpop.f32.mrf.mxu0
        %v3408 = vadd.f32 %v3367, %v3407
        %v3409 = vpop.f32.mrf.mxu0
        %v3410 = vpop.f32.mrf.mxu0
        %3411 = vdwg.mxu0
        %3412 = vmatprep.subr.bf16.mxu0 %v2877
        %3413 = vmatpush1.bf16.msra.mxu0 %v2876
        %3414 = vmatprep.subr.bf16.mxu0 %v2869
        %3415 = vmatpush1.bf16.msra.mxu0 %v2868
        %3416 = vmatprep.subr.bf16.mxu0 %v2861
        %3417 = vmatpush1.bf16.msra.mxu0 %v2860
        %3418 = vmatprep.subr.bf16.mxu0 %v2853
        %3419 = vmatpush1.bf16.msra.mxu0 %v2852
        %3420 = vmatprep.subr.bf16.mxu0 %v2845
        %3421 = vmatpush1.bf16.msra.mxu0 %v2844
        %3422 = vmatprep.subr.bf16.mxu0 %v2837
        %3423 = vmatpush1.bf16.msra.mxu0 %v2836
        %3424 = vmatprep.subr.bf16.mxu0 %v2829
        %3425 = vmatpush1.bf16.msra.mxu0 %v2828
        %3426 = vmatprep.subr.bf16.mxu0 %v2821
        %3427 = vmatpush1.bf16.msra.mxu0 %v2820
        %3428 = vmatprep.subr.bf16.mxu0 %v2941
        %3429 = vmatpush2.bf16.msra.mxu0 %v2940
        %3430 = vmatprep.subr.bf16.mxu0 %v2933
        %3431 = vmatpush2.bf16.msra.mxu0 %v2932
        %3432 = vmatprep.subr.bf16.mxu0 %v2925
        %3433 = vmatpush2.bf16.msra.mxu0 %v2924
        %3434 = vmatprep.subr.bf16.mxu0 %v2917
        %3435 = vmatpush2.bf16.msra.mxu0 %v2916
        %3436 = vmatprep.subr.bf16.mxu0 %v2909
        %3437 = vmatpush2.bf16.msra.mxu0 %v2908
        %3438 = vmatprep.subr.bf16.mxu0 %v2901
        %3439 = vmatpush2.bf16.msra.mxu0 %v2900
        %3440 = vmatprep.subr.bf16.mxu0 %v2893
        %3441 = vmatpush2.bf16.msra.mxu0 %v2892
        %3442 = vmatprep.subr.bf16.mxu0 %v2885
        %3443 = vmatpush2.bf16.msra.mxu0 %v2884
        %3444 = vmatprep.mubr.bf16.mxu0 %v1791
        %3445 = vmatmul.mubr.bf16.gmra.mxu0 %v1790
        %v3446 = vpop.f32.mrf.mxu0
        %v3447 = vadd.f32 0.0, %v3446
        %v3448 = vpop.f32.mrf.mxu0
        %v3449 = vadd.f32 0.0, %v3448
        %v3450 = vpop.f32.mrf.mxu0
        %v3451 = vpop.f32.mrf.mxu0
        %3452 = vdwg.mxu0
        %3453 = vmatprep.subr.bf16.mxu0 %v3005
        %3454 = vmatpush1.bf16.msra.mxu0 %v3004
        %3455 = vmatprep.subr.bf16.mxu0 %v2997
        %3456 = vmatpush1.bf16.msra.mxu0 %v2996
        %3457 = vmatprep.subr.bf16.mxu0 %v2989
        %3458 = vmatpush1.bf16.msra.mxu0 %v2988
        %3459 = vmatprep.subr.bf16.mxu0 %v2981
        %3460 = vmatpush1.bf16.msra.mxu0 %v2980
        %3461 = vmatprep.subr.bf16.mxu0 %v2973
        %3462 = vmatpush1.bf16.msra.mxu0 %v2972
        %3463 = vmatprep.subr.bf16.mxu0 %v2965
        %3464 = vmatpush1.bf16.msra.mxu0 %v2964
        %3465 = vmatprep.subr.bf16.mxu0 %v2957
        %3466 = vmatpush1.bf16.msra.mxu0 %v2956
        %3467 = vmatprep.subr.bf16.mxu0 %v2949
        %3468 = vmatpush1.bf16.msra.mxu0 %v2948
        %3469 = vmatprep.subr.bf16.mxu0 %v3069
        %3470 = vmatpush2.bf16.msra.mxu0 %v3068
        %3471 = vmatprep.subr.bf16.mxu0 %v3061
        %3472 = vmatpush2.bf16.msra.mxu0 %v3060
        %3473 = vmatprep.subr.bf16.mxu0 %v3053
        %3474 = vmatpush2.bf16.msra.mxu0 %v3052
        %3475 = vmatprep.subr.bf16.mxu0 %v3045
        %3476 = vmatpush2.bf16.msra.mxu0 %v3044
        %3477 = vmatprep.subr.bf16.mxu0 %v3037
        %3478 = vmatpush2.bf16.msra.mxu0 %v3036
        %3479 = vmatprep.subr.bf16.mxu0 %v3029
        %3480 = vmatpush2.bf16.msra.mxu0 %v3028
        %3481 = vmatprep.subr.bf16.mxu0 %v3021
        %3482 = vmatpush2.bf16.msra.mxu0 %v3020
        %3483 = vmatprep.subr.bf16.mxu0 %v3013
        %3484 = vmatpush2.bf16.msra.mxu0 %v3012
        %3485 = vmatprep.mubr.bf16.mxu0 %v1793
        %3486 = vmatmul.mubr.bf16.gmra.mxu0 %v1792
        %v3487 = vpop.f32.mrf.mxu0
        %v3488 = vadd.f32 %v3447, %v3487
        %v3489 = vpop.f32.mrf.mxu0
        %v3490 = vadd.f32 %v3449, %v3489
        %v3491 = vpop.f32.mrf.mxu0
        %v3492 = vpop.f32.mrf.mxu0
        %3493 = vdwg.mxu0
        %3494 = vmatprep.subr.bf16.mxu0 %v2879
        %3495 = vmatpush1.bf16.msra.mxu0 %v2878
        %3496 = vmatprep.subr.bf16.mxu0 %v2871
        %3497 = vmatpush1.bf16.msra.mxu0 %v2870
        %3498 = vmatprep.subr.bf16.mxu0 %v2863
        %3499 = vmatpush1.bf16.msra.mxu0 %v2862
        %3500 = vmatprep.subr.bf16.mxu0 %v2855
        %3501 = vmatpush1.bf16.msra.mxu0 %v2854
        %3502 = vmatprep.subr.bf16.mxu0 %v2847
        %3503 = vmatpush1.bf16.msra.mxu0 %v2846
        %3504 = vmatprep.subr.bf16.mxu0 %v2839
        %3505 = vmatpush1.bf16.msra.mxu0 %v2838
        %3506 = vmatprep.subr.bf16.mxu0 %v2831
        %3507 = vmatpush1.bf16.msra.mxu0 %v2830
        %3508 = vmatprep.subr.bf16.mxu0 %v2823
        %3509 = vmatpush1.bf16.msra.mxu0 %v2822
        %3510 = vmatprep.subr.bf16.mxu0 %v2943
        %3511 = vmatpush2.bf16.msra.mxu0 %v2942
        %3512 = vmatprep.subr.bf16.mxu0 %v2935
        %3513 = vmatpush2.bf16.msra.mxu0 %v2934
        %3514 = vmatprep.subr.bf16.mxu0 %v2927
        %3515 = vmatpush2.bf16.msra.mxu0 %v2926
        %3516 = vmatprep.subr.bf16.mxu0 %v2919
        %3517 = vmatpush2.bf16.msra.mxu0 %v2918
        %3518 = vmatprep.subr.bf16.mxu0 %v2911
        %3519 = vmatpush2.bf16.msra.mxu0 %v2910
        %3520 = vmatprep.subr.bf16.mxu0 %v2903
        %3521 = vmatpush2.bf16.msra.mxu0 %v2902
        %3522 = vmatprep.subr.bf16.mxu0 %v2895
        %3523 = vmatpush2.bf16.msra.mxu0 %v2894
        %3524 = vmatprep.subr.bf16.mxu0 %v2887
        %3525 = vmatpush2.bf16.msra.mxu0 %v2886
        %3526 = vmatprep.mubr.bf16.mxu0 %v1791
        %3527 = vmatmul.mubr.bf16.gmra.mxu0 %v1790
        %v3528 = vpop.f32.mrf.mxu0
        %v3529 = vadd.f32 0.0, %v3528
        %v3530 = vpop.f32.mrf.mxu0
        %v3531 = vadd.f32 0.0, %v3530
        %v3532 = vpop.f32.mrf.mxu0
        %v3533 = vpop.f32.mrf.mxu0
        %3534 = vdwg.mxu0
        %3535 = vmatprep.subr.bf16.mxu0 %v3007
        %3536 = vmatpush1.bf16.msra.mxu0 %v3006
        %3537 = vmatprep.subr.bf16.mxu0 %v2999
        %3538 = vmatpush1.bf16.msra.mxu0 %v2998
        %3539 = vmatprep.subr.bf16.mxu0 %v2991
        %3540 = vmatpush1.bf16.msra.mxu0 %v2990
        %3541 = vmatprep.subr.bf16.mxu0 %v2983
        %3542 = vmatpush1.bf16.msra.mxu0 %v2982
        %3543 = vmatprep.subr.bf16.mxu0 %v2975
        %3544 = vmatpush1.bf16.msra.mxu0 %v2974
        %3545 = vmatprep.subr.bf16.mxu0 %v2967
        %3546 = vmatpush1.bf16.msra.mxu0 %v2966
        %3547 = vmatprep.subr.bf16.mxu0 %v2959
        %3548 = vmatpush1.bf16.msra.mxu0 %v2958
        %3549 = vmatprep.subr.bf16.mxu0 %v2951
        %3550 = vmatpush1.bf16.msra.mxu0 %v2950
        %3551 = vmatprep.subr.bf16.mxu0 %v3071
        %3552 = vmatpush2.bf16.msra.mxu0 %v3070
        %3553 = vmatprep.subr.bf16.mxu0 %v3063
        %3554 = vmatpush2.bf16.msra.mxu0 %v3062
        %3555 = vmatprep.subr.bf16.mxu0 %v3055
        %3556 = vmatpush2.bf16.msra.mxu0 %v3054
        %3557 = vmatprep.subr.bf16.mxu0 %v3047
        %3558 = vmatpush2.bf16.msra.mxu0 %v3046
        %3559 = vmatprep.subr.bf16.mxu0 %v3039
        %3560 = vmatpush2.bf16.msra.mxu0 %v3038
        %3561 = vmatprep.subr.bf16.mxu0 %v3031
        %3562 = vmatpush2.bf16.msra.mxu0 %v3030
        %3563 = vmatprep.subr.bf16.mxu0 %v3023
        %3564 = vmatpush2.bf16.msra.mxu0 %v3022
        %3565 = vmatprep.subr.bf16.mxu0 %v3015
        %3566 = vmatpush2.bf16.msra.mxu0 %v3014
        %3567 = vmatprep.mubr.bf16.mxu0 %v1793
        %3568 = vmatmul.mubr.bf16.gmra.mxu0 %v1792
        %v3569 = vpop.f32.mrf.mxu0
        %v3570 = vadd.f32 %v3529, %v3569
        %v3571 = vpop.f32.mrf.mxu0
        %v3572 = vadd.f32 %v3531, %v3571
        %v3573 = vpop.f32.mrf.mxu0
        %v3574 = vpop.f32.mrf.mxu0
        %3575 = vdwg.mxu0
        %3576 = vmatprep.subr.bf16.mxu0 %v2881
        %3577 = vmatpush1.bf16.msra.mxu0 %v2880
        %3578 = vmatprep.subr.bf16.mxu0 %v2873
        %3579 = vmatpush1.bf16.msra.mxu0 %v2872
        %3580 = vmatprep.subr.bf16.mxu0 %v2865
        %3581 = vmatpush1.bf16.msra.mxu0 %v2864
        %3582 = vmatprep.subr.bf16.mxu0 %v2857
        %3583 = vmatpush1.bf16.msra.mxu0 %v2856
        %3584 = vmatprep.subr.bf16.mxu0 %v2849
        %3585 = vmatpush1.bf16.msra.mxu0 %v2848
        %3586 = vmatprep.subr.bf16.mxu0 %v2841
        %3587 = vmatpush1.bf16.msra.mxu0 %v2840
        %3588 = vmatprep.subr.bf16.mxu0 %v2833
        %3589 = vmatpush1.bf16.msra.mxu0 %v2832
        %3590 = vmatprep.subr.bf16.mxu0 %v2825
        %3591 = vmatpush1.bf16.msra.mxu0 %v2824
        %3592 = vmatprep.subr.bf16.mxu0 %v2945
        %3593 = vmatpush2.bf16.msra.mxu0 %v2944
        %3594 = vmatprep.subr.bf16.mxu0 %v2937
        %3595 = vmatpush2.bf16.msra.mxu0 %v2936
        %3596 = vmatprep.subr.bf16.mxu0 %v2929
        %3597 = vmatpush2.bf16.msra.mxu0 %v2928
        %3598 = vmatprep.subr.bf16.mxu0 %v2921
        %3599 = vmatpush2.bf16.msra.mxu0 %v2920
        %3600 = vmatprep.subr.bf16.mxu0 %v2913
        %3601 = vmatpush2.bf16.msra.mxu0 %v2912
        %3602 = vmatprep.subr.bf16.mxu0 %v2905
        %3603 = vmatpush2.bf16.msra.mxu0 %v2904
        %3604 = vmatprep.subr.bf16.mxu0 %v2897
        %3605 = vmatpush2.bf16.msra.mxu0 %v2896
        %3606 = vmatprep.subr.bf16.mxu0 %v2889
        %3607 = vmatpush2.bf16.msra.mxu0 %v2888
        %3608 = vmatprep.mubr.bf16.mxu0 %v1791
        %3609 = vmatmul.mubr.bf16.gmra.mxu0 %v1790
        %v3610 = vpop.f32.mrf.mxu0
        %v3611 = vadd.f32 0.0, %v3610
        %v3612 = vpop.f32.mrf.mxu0
        %v3613 = vadd.f32 0.0, %v3612
        %v3614 = vpop.f32.mrf.mxu0
        %v3615 = vpop.f32.mrf.mxu0
        %3616 = vdwg.mxu0
        %3617 = vmatprep.subr.bf16.mxu0 %v3009
        %3618 = vmatpush1.bf16.msra.mxu0 %v3008
        %3619 = vmatprep.subr.bf16.mxu0 %v3001
        %3620 = vmatpush1.bf16.msra.mxu0 %v3000
        %3621 = vmatprep.subr.bf16.mxu0 %v2993
        %3622 = vmatpush1.bf16.msra.mxu0 %v2992
        %3623 = vmatprep.subr.bf16.mxu0 %v2985
        %3624 = vmatpush1.bf16.msra.mxu0 %v2984
        %3625 = vmatprep.subr.bf16.mxu0 %v2977
        %3626 = vmatpush1.bf16.msra.mxu0 %v2976
        %3627 = vmatprep.subr.bf16.mxu0 %v2969
        %3628 = vmatpush1.bf16.msra.mxu0 %v2968
        %3629 = vmatprep.subr.bf16.mxu0 %v2961
        %3630 = vmatpush1.bf16.msra.mxu0 %v2960
        %3631 = vmatprep.subr.bf16.mxu0 %v2953
        %3632 = vmatpush1.bf16.msra.mxu0 %v2952
        %3633 = vmatprep.subr.bf16.mxu0 %v3073
        %3634 = vmatpush2.bf16.msra.mxu0 %v3072
        %3635 = vmatprep.subr.bf16.mxu0 %v3065
        %3636 = vmatpush2.bf16.msra.mxu0 %v3064
        %3637 = vmatprep.subr.bf16.mxu0 %v3057
        %3638 = vmatpush2.bf16.msra.mxu0 %v3056
        %3639 = vmatprep.subr.bf16.mxu0 %v3049
        %3640 = vmatpush2.bf16.msra.mxu0 %v3048
        %3641 = vmatprep.subr.bf16.mxu0 %v3041
        %3642 = vmatpush2.bf16.msra.mxu0 %v3040
        %3643 = vmatprep.subr.bf16.mxu0 %v3033
        %3644 = vmatpush2.bf16.msra.mxu0 %v3032
        %3645 = vmatprep.subr.bf16.mxu0 %v3025
        %3646 = vmatpush2.bf16.msra.mxu0 %v3024
        %3647 = vmatprep.subr.bf16.mxu0 %v3017
        %3648 = vmatpush2.bf16.msra.mxu0 %v3016
        %3649 = vmatprep.mubr.bf16.mxu0 %v1793
        %3650 = vmatmul.mubr.bf16.gmra.mxu0 %v1792
        %v3651 = vpop.f32.mrf.mxu0
        %v3652 = vadd.f32 %v3611, %v3651
        %v3653 = vpop.f32.mrf.mxu0
        %v3654 = vadd.f32 %v3613, %v3653
        %v3655 = vpop.f32.mrf.mxu0
        %v3656 = vpop.f32.mrf.mxu0
        %3657 = vdwg.mxu0
        %v3658 = vld [vmem:[%s6 + $0xe] sm:$0xff]
        %v3659 = vld [vmem:[%s6 + $0x16] sm:$0xff]
        %v3660 = vrot.slane %v3406, 4
        %v3661 = vadd.f32 %v3406, %v3660
        %v3662 = vrot.slane %v3661, 2
        %v3663 = vadd.f32 %v3661, %v3662
        %v3664 = vrot.slane %v3663, 1
        %v3665 = vadd.f32 %v3663, %v3664
        %v3666 = vrot.slane %v3408, 4
        %v3667 = vadd.f32 %v3408, %v3666
        %v3668 = vrot.slane %v3667, 2
        %v3669 = vadd.f32 %v3667, %v3668
        %v3670 = vrot.slane %v3669, 1
        %v3671 = vadd.f32 %v3669, %v3670
        %v3672 = vrot.slane %v3488, 4
        %v3673 = vadd.f32 %v3488, %v3672
        %v3674 = vrot.slane %v3673, 2
        %v3675 = vadd.f32 %v3673, %v3674
        %v3676 = vrot.slane %v3675, 1
        %v3677 = vadd.f32 %v3675, %v3676
        %v3678 = vrot.slane %v3490, 4
        %v3679 = vadd.f32 %v3490, %v3678
        %v3680 = vrot.slane %v3679, 2
        %v3681 = vadd.f32 %v3679, %v3680
        %v3682 = vrot.slane %v3681, 1
        %v3683 = vadd.f32 %v3681, %v3682
        %v3684 = vrot.slane %v3570, 4
        %v3685 = vadd.f32 %v3570, %v3684
        %v3686 = vrot.slane %v3685, 2
        %v3687 = vadd.f32 %v3685, %v3686
        %v3688 = vrot.slane %v3687, 1
        %v3689 = vadd.f32 %v3687, %v3688
        %v3690 = vrot.slane %v3572, 4
        %v3691 = vadd.f32 %v3572, %v3690
        %v3692 = vrot.slane %v3691, 2
        %v3693 = vadd.f32 %v3691, %v3692
        %v3694 = vrot.slane %v3693, 1
        %v3695 = vadd.f32 %v3693, %v3694
        %v3696 = vrot.slane %v3652, 4
        %v3697 = vadd.f32 %v3652, %v3696
        %v3698 = vrot.slane %v3697, 2
        %v3699 = vadd.f32 %v3697, %v3698
        %v3700 = vrot.slane %v3699, 1
        %v3701 = vadd.f32 %v3699, %v3700
        %v3702 = vrot.slane %v3654, 4
        %v3703 = vadd.f32 %v3654, %v3702
        %v3704 = vrot.slane %v3703, 2
        %v3705 = vadd.f32 %v3703, %v3704
        %v3706 = vrot.slane %v3705, 1
        %v3707 = vadd.f32 %v3705, %v3706
        %v3708 = vmul.f32 %v3665, %v1019
        %v3709 = vmul.f32 %v3671, %v1019
        %v3710 = vmul.f32 %v3677, %v1019
        %v3711 = vmul.f32 %v3683, %v1019
        %v3712 = vmul.f32 %v3689, %v1019
        %v3713 = vmul.f32 %v3695, %v1019
        %v3714 = vmul.f32 %v3701, %v1019
        %v3715 = vmul.f32 %v3707, %v1019
        %v3716 = vmul.f32 %v3406, %v3406
        %v3717 = vmul.f32 %v3408, %v3408
        %v3718 = vmul.f32 %v3488, %v3488
        %v3719 = vmul.f32 %v3490, %v3490
        %v3720 = vmul.f32 %v3570, %v3570
        %v3721 = vmul.f32 %v3572, %v3572
        %v3722 = vmul.f32 %v3652, %v3652
        %v3723 = vmul.f32 %v3654, %v3654
        %v3724 = vrot.slane %v3716, 4
        %v3725 = vadd.f32 %v3716, %v3724
        %v3726 = vrot.slane %v3725, 2
        %v3727 = vadd.f32 %v3725, %v3726
        %v3728 = vrot.slane %v3727, 1
        %v3729 = vadd.f32 %v3727, %v3728
        %v3730 = vrot.slane %v3717, 4
        %v3731 = vadd.f32 %v3717, %v3730
        %v3732 = vrot.slane %v3731, 2
        %v3733 = vadd.f32 %v3731, %v3732
        %v3734 = vrot.slane %v3733, 1
        %v3735 = vadd.f32 %v3733, %v3734
        %v3736 = vrot.slane %v3718, 4
        %v3737 = vadd.f32 %v3718, %v3736
        %v3738 = vrot.slane %v3737, 2
        %v3739 = vadd.f32 %v3737, %v3738
        %v3740 = vrot.slane %v3739, 1
        %v3741 = vadd.f32 %v3739, %v3740
        %v3742 = vrot.slane %v3719, 4
        %v3743 = vadd.f32 %v3719, %v3742
        %v3744 = vrot.slane %v3743, 2
        %v3745 = vadd.f32 %v3743, %v3744
        %v3746 = vrot.slane %v3745, 1
        %v3747 = vadd.f32 %v3745, %v3746
        %v3748 = vrot.slane %v3720, 4
        %v3749 = vadd.f32 %v3720, %v3748
        %v3750 = vrot.slane %v3749, 2
        %v3751 = vadd.f32 %v3749, %v3750
        %v3752 = vrot.slane %v3751, 1
        %v3753 = vadd.f32 %v3751, %v3752
        %v3754 = vrot.slane %v3721, 4
        %v3755 = vadd.f32 %v3721, %v3754
        %v3756 = vrot.slane %v3755, 2
        %v3757 = vadd.f32 %v3755, %v3756
        %v3758 = vrot.slane %v3757, 1
        %v3759 = vadd.f32 %v3757, %v3758
        %v3760 = vrot.slane %v3722, 4
        %v3761 = vadd.f32 %v3722, %v3760
        %v3762 = vrot.slane %v3761, 2
        %v3763 = vadd.f32 %v3761, %v3762
        %v3764 = vrot.slane %v3763, 1
        %v3765 = vadd.f32 %v3763, %v3764
        %v3766 = vrot.slane %v3723, 4
        %v3767 = vadd.f32 %v3723, %v3766
        %v3768 = vrot.slane %v3767, 2
        %v3769 = vadd.f32 %v3767, %v3768
        %v3770 = vrot.slane %v3769, 1
        %v3771 = vadd.f32 %v3769, %v3770
        %v3772 = vmul.f32 %v3729, %v1019
        %v3773 = vmul.f32 %v3735, %v1019
        %v3774 = vmul.f32 %v3741, %v1019
        %v3775 = vmul.f32 %v3747, %v1019
        %v3776 = vmul.f32 %v3753, %v1019
        %v3777 = vmul.f32 %v3759, %v1019
        %v3778 = vmul.f32 %v3765, %v1019
        %v3779 = vmul.f32 %v3771, %v1019
        %v3780 = vmul.f32 %v3708, %v3708
        %v3781 = vmul.f32 %v3709, %v3709
        %v3782 = vmul.f32 %v3710, %v3710
        %v3783 = vmul.f32 %v3711, %v3711
        %v3784 = vmul.f32 %v3712, %v3712
        %v3785 = vmul.f32 %v3713, %v3713
        %v3786 = vmul.f32 %v3714, %v3714
        %v3787 = vmul.f32 %v3715, %v3715
        %v3788 = vsub.f32 %v3772, %v3780
        %v3789 = vsub.f32 %v3773, %v3781
        %v3790 = vsub.f32 %v3774, %v3782
        %v3791 = vsub.f32 %v3775, %v3783
        %v3792 = vsub.f32 %v3776, %v3784
        %v3793 = vsub.f32 %v3777, %v3785
        %v3794 = vsub.f32 %v3778, %v3786
        %v3795 = vsub.f32 %v3779, %v3787
        %v3796 = vadd.f32 %v3788, 0.8
        %v3797 = vadd.f32 %v3789, 0.8
        %v3798 = vadd.f32 %v3790, 0.8
        %v3799 = vadd.f32 %v3791, 0.8
        %v3800 = vadd.f32 %v3792, 0.8
        %v3801 = vadd.f32 %v3793, 0.8
        %v3802 = vadd.f32 %v3794, 0.8
        %v3803 = vadd.f32 %v3795, 0.8
        %v3804 = vrsqrt.pop %v3796
        %v3805 = vrsqrt.pop %v3797
        %v3806 = vrsqrt.pop %v3798
        %v3807 = vrsqrt.pop %v3799
        %v3808 = vrsqrt.pop %v3800
        %v3809 = vrsqrt.pop %v3801
        %v3810 = vrsqrt.pop %v3802
        %v3811 = vrsqrt.pop %v3803
        %v3820 = vcombine.low %v3804, %v3805
        %v3821 = vcombine.low %v3806, %v3807
        %v3822 = vcombine.low %v3808, %v3809
        %v3823 = vcombine.low %v3810, %v3811
        %v3825 = vunpack.c.l.s4 1966171168
        %v3826 = vunpack.c.0.s8 %v3825
        %v3827 = vlaneseq
        %v3828 = vshrl.u32 %v3827, 7
        %v3829 = vsub.s32 %v3826, %v3828
        %v3830 = vrot.slane %v3820, %v3829
        %v3832 = vunpack.c.l.s4 1966171168
        %v3833 = vunpack.c.0.s8 %v3832
        %v3834 = vlaneseq
        %v3835 = vshrl.u32 %v3834, 7
        %v3836 = vsub.s32 %v3833, %v3835
        %v3837 = vrot.slane %v3821, %v3836
        %v3839 = vunpack.c.l.s4 1966171168
        %v3840 = vunpack.c.0.s8 %v3839
        %v3841 = vlaneseq
        %v3842 = vshrl.u32 %v3841, 7
        %v3843 = vsub.s32 %v3840, %v3842
        %v3844 = vrot.slane %v3822, %v3843
        %v3846 = vunpack.c.l.s4 1966171168
        %v3847 = vunpack.c.0.s8 %v3846
        %v3848 = vlaneseq
        %v3849 = vshrl.u32 %v3848, 7
        %v3850 = vsub.s32 %v3847, %v3849
        %v3851 = vrot.slane %v3823, %v3850
        %v3852 = vcombine.low %v3830, %v3837
        %v3853 = vcombine.low %v3844, %v3851
        %v3855 = vunpack.c.l.s4 1966171168
        %v3856 = vunpack.c.0.s8 %v3855
        %v3857 = vlaneseq
        %v3858 = vshrl.u32 %v3857, 7
        %v3859 = vsub.s32 %v3856, %v3858
        %v3860 = vrot.slane %v3852, %v3859
        %v3862 = vunpack.c.l.s4 1966171168
        %v3863 = vunpack.c.0.s8 %v3862
        %v3864 = vlaneseq
        %v3865 = vshrl.u32 %v3864, 7
        %v3866 = vsub.s32 %v3863, %v3865
        %v3867 = vrot.slane %v3853, %v3866
        %v3868 = vcombine.low %v3860, %v3867
        %v3870 = vmul.f32 %v3658, %v3868
        %v3872 = vlaneseq
        %v3873 = vshrl.u32 %v3872, 7
        %v3874 = vsub.s32 0, %v3873
        %v3875 = vrot.slane %v3870, %v3874
        %v3876 = vlaneseq
        %v3877 = vshrl.u32 %v3876, 7
        %v3878 = vsub.s32 1, %v3877
        %v3879 = vrot.slane %v3870, %v3878
        %v3880 = vlaneseq
        %v3881 = vshrl.u32 %v3880, 7
        %v3882 = vsub.s32 2, %v3881
        %v3883 = vrot.slane %v3870, %v3882
        %v3884 = vlaneseq
        %v3885 = vshrl.u32 %v3884, 7
        %v3886 = vsub.s32 3, %v3885
        %v3887 = vrot.slane %v3870, %v3886
        %v3888 = vlaneseq
        %v3889 = vshrl.u32 %v3888, 7
        %v3890 = vsub.s32 4, %v3889
        %v3891 = vrot.slane %v3870, %v3890
        %v3892 = vlaneseq
        %v3893 = vshrl.u32 %v3892, 7
        %v3894 = vsub.s32 5, %v3893
        %v3895 = vrot.slane %v3870, %v3894
        %v3896 = vlaneseq
        %v3897 = vshrl.u32 %v3896, 7
        %v3898 = vsub.s32 6, %v3897
        %v3899 = vrot.slane %v3870, %v3898
        %v3900 = vlaneseq
        %v3901 = vshrl.u32 %v3900, 7
        %v3902 = vsub.s32 7, %v3901
        %v3903 = vrot.slane %v3870, %v3902
        %v3912 = vmul.f32 %v3708, %v3875
        %v3913 = vmul.f32 %v3709, %v3879
        %v3914 = vmul.f32 %v3710, %v3883
        %v3915 = vmul.f32 %v3711, %v3887
        %v3916 = vmul.f32 %v3712, %v3891
        %v3917 = vmul.f32 %v3713, %v3895
        %v3918 = vmul.f32 %v3714, %v3899
        %v3919 = vmul.f32 %v3715, %v3903
        %v3928 = vcombine.low %v3912, %v3913
        %v3929 = vcombine.low %v3914, %v3915
        %v3930 = vcombine.low %v3916, %v3917
        %v3931 = vcombine.low %v3918, %v3919
        %v3933 = vunpack.c.l.s4 1966171168
        %v3934 = vunpack.c.0.s8 %v3933
        %v3935 = vlaneseq
        %v3936 = vshrl.u32 %v3935, 7
        %v3937 = vsub.s32 %v3934, %v3936
        %v3938 = vrot.slane %v3928, %v3937
        %v3940 = vunpack.c.l.s4 1966171168
        %v3941 = vunpack.c.0.s8 %v3940
        %v3942 = vlaneseq
        %v3943 = vshrl.u32 %v3942, 7
        %v3944 = vsub.s32 %v3941, %v3943
        %v3945 = vrot.slane %v3929, %v3944
        %v3947 = vunpack.c.l.s4 1966171168
        %v3948 = vunpack.c.0.s8 %v3947
        %v3949 = vlaneseq
        %v3950 = vshrl.u32 %v3949, 7
        %v3951 = vsub.s32 %v3948, %v3950
        %v3952 = vrot.slane %v3930, %v3951
        %v3954 = vunpack.c.l.s4 1966171168
        %v3955 = vunpack.c.0.s8 %v3954
        %v3956 = vlaneseq
        %v3957 = vshrl.u32 %v3956, 7
        %v3958 = vsub.s32 %v3955, %v3957
        %v3959 = vrot.slane %v3931, %v3958
        %v3960 = vcombine.low %v3938, %v3945
        %v3961 = vcombine.low %v3952, %v3959
        %v3963 = vunpack.c.l.s4 1966171168
        %v3964 = vunpack.c.0.s8 %v3963
        %v3965 = vlaneseq
        %v3966 = vshrl.u32 %v3965, 7
        %v3967 = vsub.s32 %v3964, %v3966
        %v3968 = vrot.slane %v3960, %v3967
        %v3970 = vunpack.c.l.s4 1966171168
        %v3971 = vunpack.c.0.s8 %v3970
        %v3972 = vlaneseq
        %v3973 = vshrl.u32 %v3972, 7
        %v3974 = vsub.s32 %v3971, %v3973
        %v3975 = vrot.slane %v3961, %v3974
        %v3976 = vcombine.low %v3968, %v3975
        %v3978 = vsub.f32 %v3659, %v3976
        %v3979 = vmul.f32 %v3406, %v3875
        %v3980 = vmul.f32 %v3408, %v3879
        %v3981 = vmul.f32 %v3488, %v3883
        %v3982 = vmul.f32 %v3490, %v3887
        %v3983 = vmul.f32 %v3570, %v3891
        %v3984 = vmul.f32 %v3572, %v3895
        %v3985 = vmul.f32 %v3652, %v3899
        %v3986 = vmul.f32 %v3654, %v3903
        %v3988 = vlaneseq
        %v3989 = vshrl.u32 %v3988, 7
        %v3990 = vsub.s32 0, %v3989
        %v3991 = vrot.slane %v3978, %v3990
        %v3992 = vlaneseq
        %v3993 = vshrl.u32 %v3992, 7
        %v3994 = vsub.s32 1, %v3993
        %v3995 = vrot.slane %v3978, %v3994
        %v3996 = vlaneseq
        %v3997 = vshrl.u32 %v3996, 7
        %v3998 = vsub.s32 2, %v3997
        %v3999 = vrot.slane %v3978, %v3998
        %v4000 = vlaneseq
        %v4001 = vshrl.u32 %v4000, 7
        %v4002 = vsub.s32 3, %v4001
        %v4003 = vrot.slane %v3978, %v4002
        %v4004 = vlaneseq
        %v4005 = vshrl.u32 %v4004, 7
        %v4006 = vsub.s32 4, %v4005
        %v4007 = vrot.slane %v3978, %v4006
        %v4008 = vlaneseq
        %v4009 = vshrl.u32 %v4008, 7
        %v4010 = vsub.s32 5, %v4009
        %v4011 = vrot.slane %v3978, %v4010
        %v4012 = vlaneseq
        %v4013 = vshrl.u32 %v4012, 7
        %v4014 = vsub.s32 6, %v4013
        %v4015 = vrot.slane %v3978, %v4014
        %v4016 = vlaneseq
        %v4017 = vshrl.u32 %v4016, 7
        %v4018 = vsub.s32 7, %v4017
        %v4019 = vrot.slane %v3978, %v4018
        %v4028 = vadd.f32 %v3979, %v3991
        %v4029 = vadd.f32 %v3980, %v3995
        %v4030 = vadd.f32 %v3981, %v3999
        %v4031 = vadd.f32 %v3982, %v4003
        %v4032 = vadd.f32 %v3983, %v4007
        %v4033 = vadd.f32 %v3984, %v4011
        %v4034 = vadd.f32 %v3985, %v4015
        %v4035 = vadd.f32 %v3986, %v4019
        %vm4036 = vcmp.gt.f32.partialorder %v4028, 0.0
        %vm4037 = vcmp.gt.f32.partialorder %v4029, 0.0
        %vm4038 = vcmp.gt.f32.partialorder %v4030, 0.0
        %vm4039 = vcmp.gt.f32.partialorder %v4031, 0.0
        %vm4040 = vcmp.gt.f32.partialorder %v4032, 0.0
        %vm4041 = vcmp.gt.f32.partialorder %v4033, 0.0
        %vm4042 = vcmp.gt.f32.partialorder %v4034, 0.0
        %vm4043 = vcmp.gt.f32.partialorder %v4035, 0.0
        %v4044 = vmul.f32 %v4028, 0.2
        %v4045 = vmul.f32 %v4029, 0.2
        %v4046 = vmul.f32 %v4030, 0.2
        %v4047 = vmul.f32 %v4031, 0.2
        %v4048 = vmul.f32 %v4032, 0.2
        %v4049 = vmul.f32 %v4033, 0.2
        %v4050 = vmul.f32 %v4034, 0.2
        %v4051 = vmul.f32 %v4035, 0.2
        %v4052 = vsel %vm4036, %v4028, %v4044
        %v4053 = vsel %vm4037, %v4029, %v4045
        %v4054 = vsel %vm4038, %v4030, %v4046
        %v4055 = vsel %vm4039, %v4031, %v4047
        %v4056 = vsel %vm4040, %v4032, %v4048
        %v4057 = vsel %vm4041, %v4033, %v4049
        %v4058 = vsel %vm4042, %v4034, %v4050
        %v4059 = vsel %vm4043, %v4035, %v4051
        %v4060 = vpack.c.bf16 %v4052, %v4052
        %v4061 = vpack.c.bf16 %v4053, %v4053
        %v4062 = vpack.c.bf16 %v4054, %v4054
        %v4063 = vpack.c.bf16 %v4055, %v4055
        %v4064 = vpack.c.bf16 %v4056, %v4056
        %v4065 = vpack.c.bf16 %v4057, %v4057
        %v4066 = vpack.c.bf16 %v4058, %v4058
        %v4067 = vpack.c.bf16 %v4059, %v4059
        %v4068 = vld [vmem:[#allocation10] sm:$0xff]
        %v4069 = vld [vmem:[#allocation10 + $0x8] sm:$0xff]
        %v4070 = vld [vmem:[#allocation10 + $0x10] sm:$0xff]
        %v4071 = vld [vmem:[#allocation10 + $0x18] sm:$0xff]
        %v4072 = vld [vmem:[#allocation10 + $0x20] sm:$0xff]
        %v4073 = vld [vmem:[#allocation10 + $0x28] sm:$0xff]
        %v4074 = vld [vmem:[#allocation10 + $0x30] sm:$0xff]
        %v4075 = vld [vmem:[#allocation10 + $0x38] sm:$0xff]
        %v4076 = vld [vmem:[#allocation10 + $0x40] sm:$0xff]
        %v4077 = vld [vmem:[#allocation10 + $0x48] sm:$0xff]
        %v4078 = vld [vmem:[#allocation10 + $0x50] sm:$0xff]
        %v4079 = vld [vmem:[#allocation10 + $0x58] sm:$0xff]
        %v4080 = vld [vmem:[#allocation10 + $0x60] sm:$0xff]
        %v4081 = vld [vmem:[#allocation10 + $0x68] sm:$0xff]
        %v4082 = vld [vmem:[#allocation10 + $0x70] sm:$0xff]
        %v4083 = vld [vmem:[#allocation10 + $0x78] sm:$0xff]
        %v4084 = vld [vmem:[#allocation10 + $0x80] sm:$0xff]
        %v4085 = vld [vmem:[#allocation10 + $0x88] sm:$0xff]
        %v4086 = vld [vmem:[#allocation10 + $0x90] sm:$0xff]
        %v4087 = vld [vmem:[#allocation10 + $0x98] sm:$0xff]
        %v4088 = vld [vmem:[#allocation10 + $0xa0] sm:$0xff]
        %v4089 = vld [vmem:[#allocation10 + $0xa8] sm:$0xff]
        %v4090 = vld [vmem:[#allocation10 + $0xb0] sm:$0xff]
        %v4091 = vld [vmem:[#allocation10 + $0xb8] sm:$0xff]
        %v4092 = vld [vmem:[#allocation10 + $0xc0] sm:$0xff]
        %v4093 = vld [vmem:[#allocation10 + $0xc8] sm:$0xff]
        %v4094 = vld [vmem:[#allocation10 + $0xd0] sm:$0xff]
        %v4095 = vld [vmem:[#allocation10 + $0xd8] sm:$0xff]
        %v4096 = vld [vmem:[#allocation10 + $0xe0] sm:$0xff]
        %v4097 = vld [vmem:[#allocation10 + $0xe8] sm:$0xff]
        %v4098 = vld [vmem:[#allocation10 + $0xf0] sm:$0xff]
        %v4099 = vld [vmem:[#allocation10 + $0xf8] sm:$0xff]
        %v4100 = vld [vmem:[#allocation10 + $0x100] sm:$0xff]
        %v4101 = vld [vmem:[#allocation10 + $0x108] sm:$0xff]
        %v4102 = vld [vmem:[#allocation10 + $0x110] sm:$0xff]
        %v4103 = vld [vmem:[#allocation10 + $0x118] sm:$0xff]
        %v4104 = vld [vmem:[#allocation10 + $0x120] sm:$0xff]
        %v4105 = vld [vmem:[#allocation10 + $0x128] sm:$0xff]
        %v4106 = vld [vmem:[#allocation10 + $0x130] sm:$0xff]
        %v4107 = vld [vmem:[#allocation10 + $0x138] sm:$0xff]
        %v4108 = vld [vmem:[#allocation10 + $0x140] sm:$0xff]
        %v4109 = vld [vmem:[#allocation10 + $0x148] sm:$0xff]
        %v4110 = vld [vmem:[#allocation10 + $0x150] sm:$0xff]
        %v4111 = vld [vmem:[#allocation10 + $0x158] sm:$0xff]
        %v4112 = vld [vmem:[#allocation10 + $0x160] sm:$0xff]
        %v4113 = vld [vmem:[#allocation10 + $0x168] sm:$0xff]
        %v4114 = vld [vmem:[#allocation10 + $0x170] sm:$0xff]
        %v4115 = vld [vmem:[#allocation10 + $0x178] sm:$0xff]
        %v4116 = vld [vmem:[#allocation10 + $0x180] sm:$0xff]
        %v4117 = vld [vmem:[#allocation10 + $0x188] sm:$0xff]
        %v4118 = vld [vmem:[#allocation10 + $0x190] sm:$0xff]
        %v4119 = vld [vmem:[#allocation10 + $0x198] sm:$0xff]
        %v4120 = vld [vmem:[#allocation10 + $0x1a0] sm:$0xff]
        %v4121 = vld [vmem:[#allocation10 + $0x1a8] sm:$0xff]
        %v4122 = vld [vmem:[#allocation10 + $0x1b0] sm:$0xff]
        %v4123 = vld [vmem:[#allocation10 + $0x1b8] sm:$0xff]
        %v4124 = vld [vmem:[#allocation10 + $0x1c0] sm:$0xff]
        %v4125 = vld [vmem:[#allocation10 + $0x1c8] sm:$0xff]
        %v4126 = vld [vmem:[#allocation10 + $0x1d0] sm:$0xff]
        %v4127 = vld [vmem:[#allocation10 + $0x1d8] sm:$0xff]
        %v4128 = vld [vmem:[#allocation10 + $0x1e0] sm:$0xff]
        %v4129 = vld [vmem:[#allocation10 + $0x1e8] sm:$0xff]
        %v4130 = vld [vmem:[#allocation10 + $0x1f0] sm:$0xff]
        %v4131 = vld [vmem:[#allocation10 + $0x1f8] sm:$0xff]
        %v4132 = vld [vmem:[#allocation10 + $0x200] sm:$0xff]
        %v4133 = vld [vmem:[#allocation10 + $0x208] sm:$0xff]
        %v4134 = vld [vmem:[#allocation10 + $0x210] sm:$0xff]
        %v4135 = vld [vmem:[#allocation10 + $0x218] sm:$0xff]
        %v4136 = vld [vmem:[#allocation10 + $0x220] sm:$0xff]
        %v4137 = vld [vmem:[#allocation10 + $0x228] sm:$0xff]
        %v4138 = vld [vmem:[#allocation10 + $0x230] sm:$0xff]
        %v4139 = vld [vmem:[#allocation10 + $0x238] sm:$0xff]
        %v4140 = vld [vmem:[#allocation10 + $0x240] sm:$0xff]
        %v4141 = vld [vmem:[#allocation10 + $0x248] sm:$0xff]
        %v4142 = vld [vmem:[#allocation10 + $0x250] sm:$0xff]
        %v4143 = vld [vmem:[#allocation10 + $0x258] sm:$0xff]
        %v4144 = vld [vmem:[#allocation10 + $0x260] sm:$0xff]
        %v4145 = vld [vmem:[#allocation10 + $0x268] sm:$0xff]
        %v4146 = vld [vmem:[#allocation10 + $0x270] sm:$0xff]
        %v4147 = vld [vmem:[#allocation10 + $0x278] sm:$0xff]
        %v4148 = vld [vmem:[#allocation10 + $0x280] sm:$0xff]
        %v4149 = vld [vmem:[#allocation10 + $0x288] sm:$0xff]
        %v4150 = vld [vmem:[#allocation10 + $0x290] sm:$0xff]
        %v4151 = vld [vmem:[#allocation10 + $0x298] sm:$0xff]
        %v4152 = vld [vmem:[#allocation10 + $0x2a0] sm:$0xff]
        %v4153 = vld [vmem:[#allocation10 + $0x2a8] sm:$0xff]
        %v4154 = vld [vmem:[#allocation10 + $0x2b0] sm:$0xff]
        %v4155 = vld [vmem:[#allocation10 + $0x2b8] sm:$0xff]
        %v4156 = vld [vmem:[#allocation10 + $0x2c0] sm:$0xff]
        %v4157 = vld [vmem:[#allocation10 + $0x2c8] sm:$0xff]
        %v4158 = vld [vmem:[#allocation10 + $0x2d0] sm:$0xff]
        %v4159 = vld [vmem:[#allocation10 + $0x2d8] sm:$0xff]
        %v4160 = vld [vmem:[#allocation10 + $0x2e0] sm:$0xff]
        %v4161 = vld [vmem:[#allocation10 + $0x2e8] sm:$0xff]
        %v4162 = vld [vmem:[#allocation10 + $0x2f0] sm:$0xff]
        %v4163 = vld [vmem:[#allocation10 + $0x2f8] sm:$0xff]
        %v4164 = vld [vmem:[#allocation10 + $0x300] sm:$0xff]
        %v4165 = vld [vmem:[#allocation10 + $0x308] sm:$0xff]
        %v4166 = vld [vmem:[#allocation10 + $0x310] sm:$0xff]
        %v4167 = vld [vmem:[#allocation10 + $0x318] sm:$0xff]
        %v4168 = vld [vmem:[#allocation10 + $0x320] sm:$0xff]
        %v4169 = vld [vmem:[#allocation10 + $0x328] sm:$0xff]
        %v4170 = vld [vmem:[#allocation10 + $0x330] sm:$0xff]
        %v4171 = vld [vmem:[#allocation10 + $0x338] sm:$0xff]
        %v4172 = vld [vmem:[#allocation10 + $0x340] sm:$0xff]
        %v4173 = vld [vmem:[#allocation10 + $0x348] sm:$0xff]
        %v4174 = vld [vmem:[#allocation10 + $0x350] sm:$0xff]
        %v4175 = vld [vmem:[#allocation10 + $0x358] sm:$0xff]
        %v4176 = vld [vmem:[#allocation10 + $0x360] sm:$0xff]
        %v4177 = vld [vmem:[#allocation10 + $0x368] sm:$0xff]
        %v4178 = vld [vmem:[#allocation10 + $0x370] sm:$0xff]
        %v4179 = vld [vmem:[#allocation10 + $0x378] sm:$0xff]
        %v4180 = vld [vmem:[#allocation10 + $0x380] sm:$0xff]
        %v4181 = vld [vmem:[#allocation10 + $0x388] sm:$0xff]
        %v4182 = vld [vmem:[#allocation10 + $0x390] sm:$0xff]
        %v4183 = vld [vmem:[#allocation10 + $0x398] sm:$0xff]
        %v4184 = vld [vmem:[#allocation10 + $0x3a0] sm:$0xff]
        %v4185 = vld [vmem:[#allocation10 + $0x3a8] sm:$0xff]
        %v4186 = vld [vmem:[#allocation10 + $0x3b0] sm:$0xff]
        %v4187 = vld [vmem:[#allocation10 + $0x3b8] sm:$0xff]
        %v4188 = vld [vmem:[#allocation10 + $0x3c0] sm:$0xff]
        %v4189 = vld [vmem:[#allocation10 + $0x3c8] sm:$0xff]
        %v4190 = vld [vmem:[#allocation10 + $0x3d0] sm:$0xff]
        %v4191 = vld [vmem:[#allocation10 + $0x3d8] sm:$0xff]
        %v4192 = vld [vmem:[#allocation10 + $0x3e0] sm:$0xff]
        %v4193 = vld [vmem:[#allocation10 + $0x3e8] sm:$0xff]
        %v4194 = vld [vmem:[#allocation10 + $0x3f0] sm:$0xff]
        %v4195 = vld [vmem:[#allocation10 + $0x3f8] sm:$0xff]
        %v4196 = vld [vmem:[#allocation10 + $0x400] sm:$0xff]
        %v4197 = vld [vmem:[#allocation10 + $0x408] sm:$0xff]
        %v4198 = vld [vmem:[#allocation10 + $0x410] sm:$0xff]
        %v4199 = vld [vmem:[#allocation10 + $0x418] sm:$0xff]
        %v4200 = vld [vmem:[#allocation10 + $0x420] sm:$0xff]
        %v4201 = vld [vmem:[#allocation10 + $0x428] sm:$0xff]
        %v4202 = vld [vmem:[#allocation10 + $0x430] sm:$0xff]
        %v4203 = vld [vmem:[#allocation10 + $0x438] sm:$0xff]
        %v4204 = vld [vmem:[#allocation10 + $0x440] sm:$0xff]
        %v4205 = vld [vmem:[#allocation10 + $0x448] sm:$0xff]
        %v4206 = vld [vmem:[#allocation10 + $0x450] sm:$0xff]
        %v4207 = vld [vmem:[#allocation10 + $0x458] sm:$0xff]
        %v4208 = vld [vmem:[#allocation10 + $0x460] sm:$0xff]
        %v4209 = vld [vmem:[#allocation10 + $0x468] sm:$0xff]
        %v4210 = vld [vmem:[#allocation10 + $0x470] sm:$0xff]
        %v4211 = vld [vmem:[#allocation10 + $0x478] sm:$0xff]
        %v4212 = vld [vmem:[#allocation10 + $0x480] sm:$0xff]
        %v4213 = vld [vmem:[#allocation10 + $0x488] sm:$0xff]
        %v4214 = vld [vmem:[#allocation10 + $0x490] sm:$0xff]
        %v4215 = vld [vmem:[#allocation10 + $0x498] sm:$0xff]
        %v4216 = vld [vmem:[#allocation10 + $0x4a0] sm:$0xff]
        %v4217 = vld [vmem:[#allocation10 + $0x4a8] sm:$0xff]
        %v4218 = vld [vmem:[#allocation10 + $0x4b0] sm:$0xff]
        %v4219 = vld [vmem:[#allocation10 + $0x4b8] sm:$0xff]
        %v4220 = vld [vmem:[#allocation10 + $0x4c0] sm:$0xff]
        %v4221 = vld [vmem:[#allocation10 + $0x4c8] sm:$0xff]
        %v4222 = vld [vmem:[#allocation10 + $0x4d0] sm:$0xff]
        %v4223 = vld [vmem:[#allocation10 + $0x4d8] sm:$0xff]
        %v4224 = vld [vmem:[#allocation10 + $0x4e0] sm:$0xff]
        %v4225 = vld [vmem:[#allocation10 + $0x4e8] sm:$0xff]
        %v4226 = vld [vmem:[#allocation10 + $0x4f0] sm:$0xff]
        %v4227 = vld [vmem:[#allocation10 + $0x4f8] sm:$0xff]
        %v4228 = vld [vmem:[#allocation10 + $0x500] sm:$0xff]
        %v4229 = vld [vmem:[#allocation10 + $0x508] sm:$0xff]
        %v4230 = vld [vmem:[#allocation10 + $0x510] sm:$0xff]
        %v4231 = vld [vmem:[#allocation10 + $0x518] sm:$0xff]
        %v4232 = vld [vmem:[#allocation10 + $0x520] sm:$0xff]
        %v4233 = vld [vmem:[#allocation10 + $0x528] sm:$0xff]
        %v4234 = vld [vmem:[#allocation10 + $0x530] sm:$0xff]
        %v4235 = vld [vmem:[#allocation10 + $0x538] sm:$0xff]
        %v4236 = vld [vmem:[#allocation10 + $0x540] sm:$0xff]
        %v4237 = vld [vmem:[#allocation10 + $0x548] sm:$0xff]
        %v4238 = vld [vmem:[#allocation10 + $0x550] sm:$0xff]
        %v4239 = vld [vmem:[#allocation10 + $0x558] sm:$0xff]
        %v4240 = vld [vmem:[#allocation10 + $0x560] sm:$0xff]
        %v4241 = vld [vmem:[#allocation10 + $0x568] sm:$0xff]
        %v4242 = vld [vmem:[#allocation10 + $0x570] sm:$0xff]
        %v4243 = vld [vmem:[#allocation10 + $0x578] sm:$0xff]
        %v4244 = vld [vmem:[#allocation10 + $0x580] sm:$0xff]
        %v4245 = vld [vmem:[#allocation10 + $0x588] sm:$0xff]
        %v4246 = vld [vmem:[#allocation10 + $0x590] sm:$0xff]
        %v4247 = vld [vmem:[#allocation10 + $0x598] sm:$0xff]
        %v4248 = vld [vmem:[#allocation10 + $0x5a0] sm:$0xff]
        %v4249 = vld [vmem:[#allocation10 + $0x5a8] sm:$0xff]
        %v4250 = vld [vmem:[#allocation10 + $0x5b0] sm:$0xff]
        %v4251 = vld [vmem:[#allocation10 + $0x5b8] sm:$0xff]
        %v4252 = vld [vmem:[#allocation10 + $0x5c0] sm:$0xff]
        %v4253 = vld [vmem:[#allocation10 + $0x5c8] sm:$0xff]
        %v4254 = vld [vmem:[#allocation10 + $0x5d0] sm:$0xff]
        %v4255 = vld [vmem:[#allocation10 + $0x5d8] sm:$0xff]
        %v4256 = vld [vmem:[#allocation10 + $0x5e0] sm:$0xff]
        %v4257 = vld [vmem:[#allocation10 + $0x5e8] sm:$0xff]
        %v4258 = vld [vmem:[#allocation10 + $0x5f0] sm:$0xff]
        %v4259 = vld [vmem:[#allocation10 + $0x5f8] sm:$0xff]
        %v4260 = vld [vmem:[#allocation10 + $0x600] sm:$0xff]
        %v4261 = vld [vmem:[#allocation10 + $0x608] sm:$0xff]
        %v4262 = vld [vmem:[#allocation10 + $0x610] sm:$0xff]
        %v4263 = vld [vmem:[#allocation10 + $0x618] sm:$0xff]
        %v4264 = vld [vmem:[#allocation10 + $0x620] sm:$0xff]
        %v4265 = vld [vmem:[#allocation10 + $0x628] sm:$0xff]
        %v4266 = vld [vmem:[#allocation10 + $0x630] sm:$0xff]
        %v4267 = vld [vmem:[#allocation10 + $0x638] sm:$0xff]
        %v4268 = vld [vmem:[#allocation10 + $0x640] sm:$0xff]
        %v4269 = vld [vmem:[#allocation10 + $0x648] sm:$0xff]
        %v4270 = vld [vmem:[#allocation10 + $0x650] sm:$0xff]
        %v4271 = vld [vmem:[#allocation10 + $0x658] sm:$0xff]
        %v4272 = vld [vmem:[#allocation10 + $0x660] sm:$0xff]
        %v4273 = vld [vmem:[#allocation10 + $0x668] sm:$0xff]
        %v4274 = vld [vmem:[#allocation10 + $0x670] sm:$0xff]
        %v4275 = vld [vmem:[#allocation10 + $0x678] sm:$0xff]
        %v4276 = vld [vmem:[#allocation10 + $0x680] sm:$0xff]
        %v4277 = vld [vmem:[#allocation10 + $0x688] sm:$0xff]
        %v4278 = vld [vmem:[#allocation10 + $0x690] sm:$0xff]
        %v4279 = vld [vmem:[#allocation10 + $0x698] sm:$0xff]
        %v4280 = vld [vmem:[#allocation10 + $0x6a0] sm:$0xff]
        %v4281 = vld [vmem:[#allocation10 + $0x6a8] sm:$0xff]
        %v4282 = vld [vmem:[#allocation10 + $0x6b0] sm:$0xff]
        %v4283 = vld [vmem:[#allocation10 + $0x6b8] sm:$0xff]
        %v4284 = vld [vmem:[#allocation10 + $0x6c0] sm:$0xff]
        %v4285 = vld [vmem:[#allocation10 + $0x6c8] sm:$0xff]
        %v4286 = vld [vmem:[#allocation10 + $0x6d0] sm:$0xff]
        %v4287 = vld [vmem:[#allocation10 + $0x6d8] sm:$0xff]
        %v4288 = vld [vmem:[#allocation10 + $0x6e0] sm:$0xff]
        %v4289 = vld [vmem:[#allocation10 + $0x6e8] sm:$0xff]
        %v4290 = vld [vmem:[#allocation10 + $0x6f0] sm:$0xff]
        %v4291 = vld [vmem:[#allocation10 + $0x6f8] sm:$0xff]
        %v4292 = vld [vmem:[#allocation10 + $0x700] sm:$0xff]
        %v4293 = vld [vmem:[#allocation10 + $0x708] sm:$0xff]
        %v4294 = vld [vmem:[#allocation10 + $0x710] sm:$0xff]
        %v4295 = vld [vmem:[#allocation10 + $0x718] sm:$0xff]
        %v4296 = vld [vmem:[#allocation10 + $0x720] sm:$0xff]
        %v4297 = vld [vmem:[#allocation10 + $0x728] sm:$0xff]
        %v4298 = vld [vmem:[#allocation10 + $0x730] sm:$0xff]
        %v4299 = vld [vmem:[#allocation10 + $0x738] sm:$0xff]
        %v4300 = vld [vmem:[#allocation10 + $0x740] sm:$0xff]
        %v4301 = vld [vmem:[#allocation10 + $0x748] sm:$0xff]
        %v4302 = vld [vmem:[#allocation10 + $0x750] sm:$0xff]
        %v4303 = vld [vmem:[#allocation10 + $0x758] sm:$0xff]
        %v4304 = vld [vmem:[#allocation10 + $0x760] sm:$0xff]
        %v4305 = vld [vmem:[#allocation10 + $0x768] sm:$0xff]
        %v4306 = vld [vmem:[#allocation10 + $0x770] sm:$0xff]
        %v4307 = vld [vmem:[#allocation10 + $0x778] sm:$0xff]
        %v4308 = vld [vmem:[#allocation10 + $0x780] sm:$0xff]
        %v4309 = vld [vmem:[#allocation10 + $0x788] sm:$0xff]
        %v4310 = vld [vmem:[#allocation10 + $0x790] sm:$0xff]
        %v4311 = vld [vmem:[#allocation10 + $0x798] sm:$0xff]
        %v4312 = vld [vmem:[#allocation10 + $0x7a0] sm:$0xff]
        %v4313 = vld [vmem:[#allocation10 + $0x7a8] sm:$0xff]
        %v4314 = vld [vmem:[#allocation10 + $0x7b0] sm:$0xff]
        %v4315 = vld [vmem:[#allocation10 + $0x7b8] sm:$0xff]
        %v4316 = vld [vmem:[#allocation10 + $0x7c0] sm:$0xff]
        %v4317 = vld [vmem:[#allocation10 + $0x7c8] sm:$0xff]
        %v4318 = vld [vmem:[#allocation10 + $0x7d0] sm:$0xff]
        %v4319 = vld [vmem:[#allocation10 + $0x7d8] sm:$0xff]
        %v4320 = vld [vmem:[#allocation10 + $0x7e0] sm:$0xff]
        %v4321 = vld [vmem:[#allocation10 + $0x7e8] sm:$0xff]
        %v4322 = vld [vmem:[#allocation10 + $0x7f0] sm:$0xff]
        %v4323 = vld [vmem:[#allocation10 + $0x7f8] sm:$0xff]
        %v4324 = vld [vmem:[%s6 + $0x1e] sm:$0xf]
        %v4326 = vlaneseq
        %v4327 = vshrl.u32 %v4326, 7
        %v4328 = vsub.s32 0, %v4327
        %v4329 = vrot.slane %v4324, %v4328
        %v4330 = vlaneseq
        %v4331 = vshrl.u32 %v4330, 7
        %v4332 = vsub.s32 1, %v4331
        %v4333 = vrot.slane %v4324, %v4332
        %v4334 = vlaneseq
        %v4335 = vshrl.u32 %v4334, 7
        %v4336 = vsub.s32 2, %v4335
        %v4337 = vrot.slane %v4324, %v4336
        %v4338 = vlaneseq
        %v4339 = vshrl.u32 %v4338, 7
        %v4340 = vsub.s32 3, %v4339
        %v4341 = vrot.slane %v4324, %v4340
        %v4602 = vunpack.c.l.b16 %v4068
        %v4603 = vunpack.c.h.b16 %v4068
        %v4604 = vunpack.c.l.b16 %v4069
        %v4605 = vunpack.c.h.b16 %v4069
        %v4606 = vunpack.c.l.b16 %v4070
        %v4607 = vunpack.c.h.b16 %v4070
        %v4608 = vunpack.c.l.b16 %v4071
        %v4609 = vunpack.c.h.b16 %v4071
        %v4610 = vunpack.c.l.b16 %v4072
        %v4611 = vunpack.c.h.b16 %v4072
        %v4612 = vunpack.c.l.b16 %v4073
        %v4613 = vunpack.c.h.b16 %v4073
        %v4614 = vunpack.c.l.b16 %v4074
        %v4615 = vunpack.c.h.b16 %v4074
        %v4616 = vunpack.c.l.b16 %v4075
        %v4617 = vunpack.c.h.b16 %v4075
        %v4618 = vunpack.c.l.b16 %v4076
        %v4619 = vunpack.c.h.b16 %v4076
        %v4620 = vunpack.c.l.b16 %v4077
        %v4621 = vunpack.c.h.b16 %v4077
        %v4622 = vunpack.c.l.b16 %v4078
        %v4623 = vunpack.c.h.b16 %v4078
        %v4624 = vunpack.c.l.b16 %v4079
        %v4625 = vunpack.c.h.b16 %v4079
        %v4626 = vunpack.c.l.b16 %v4080
        %v4627 = vunpack.c.h.b16 %v4080
        %v4628 = vunpack.c.l.b16 %v4081
        %v4629 = vunpack.c.h.b16 %v4081
        %v4630 = vunpack.c.l.b16 %v4082
        %v4631 = vunpack.c.h.b16 %v4082
        %v4632 = vunpack.c.l.b16 %v4083
        %v4633 = vunpack.c.h.b16 %v4083
        %v4634 = vunpack.c.l.b16 %v4084
        %v4635 = vunpack.c.h.b16 %v4084
        %v4636 = vunpack.c.l.b16 %v4085
        %v4637 = vunpack.c.h.b16 %v4085
        %v4638 = vunpack.c.l.b16 %v4086
        %v4639 = vunpack.c.h.b16 %v4086
        %v4640 = vunpack.c.l.b16 %v4087
        %v4641 = vunpack.c.h.b16 %v4087
        %v4642 = vunpack.c.l.b16 %v4088
        %v4643 = vunpack.c.h.b16 %v4088
        %v4644 = vunpack.c.l.b16 %v4089
        %v4645 = vunpack.c.h.b16 %v4089
        %v4646 = vunpack.c.l.b16 %v4090
        %v4647 = vunpack.c.h.b16 %v4090
        %v4648 = vunpack.c.l.b16 %v4091
        %v4649 = vunpack.c.h.b16 %v4091
        %v4650 = vunpack.c.l.b16 %v4092
        %v4651 = vunpack.c.h.b16 %v4092
        %v4652 = vunpack.c.l.b16 %v4093
        %v4653 = vunpack.c.h.b16 %v4093
        %v4654 = vunpack.c.l.b16 %v4094
        %v4655 = vunpack.c.h.b16 %v4094
        %v4656 = vunpack.c.l.b16 %v4095
        %v4657 = vunpack.c.h.b16 %v4095
        %v4658 = vunpack.c.l.b16 %v4096
        %v4659 = vunpack.c.h.b16 %v4096
        %v4660 = vunpack.c.l.b16 %v4097
        %v4661 = vunpack.c.h.b16 %v4097
        %v4662 = vunpack.c.l.b16 %v4098
        %v4663 = vunpack.c.h.b16 %v4098
        %v4664 = vunpack.c.l.b16 %v4099
        %v4665 = vunpack.c.h.b16 %v4099
        %v4666 = vunpack.c.l.b16 %v4100
        %v4667 = vunpack.c.h.b16 %v4100
        %v4668 = vunpack.c.l.b16 %v4101
        %v4669 = vunpack.c.h.b16 %v4101
        %v4670 = vunpack.c.l.b16 %v4102
        %v4671 = vunpack.c.h.b16 %v4102
        %v4672 = vunpack.c.l.b16 %v4103
        %v4673 = vunpack.c.h.b16 %v4103
        %v4674 = vunpack.c.l.b16 %v4104
        %v4675 = vunpack.c.h.b16 %v4104
        %v4676 = vunpack.c.l.b16 %v4105
        %v4677 = vunpack.c.h.b16 %v4105
        %v4678 = vunpack.c.l.b16 %v4106
        %v4679 = vunpack.c.h.b16 %v4106
        %v4680 = vunpack.c.l.b16 %v4107
        %v4681 = vunpack.c.h.b16 %v4107
        %v4682 = vunpack.c.l.b16 %v4108
        %v4683 = vunpack.c.h.b16 %v4108
        %v4684 = vunpack.c.l.b16 %v4109
        %v4685 = vunpack.c.h.b16 %v4109
        %v4686 = vunpack.c.l.b16 %v4110
        %v4687 = vunpack.c.h.b16 %v4110
        %v4688 = vunpack.c.l.b16 %v4111
        %v4689 = vunpack.c.h.b16 %v4111
        %v4690 = vunpack.c.l.b16 %v4112
        %v4691 = vunpack.c.h.b16 %v4112
        %v4692 = vunpack.c.l.b16 %v4113
        %v4693 = vunpack.c.h.b16 %v4113
        %v4694 = vunpack.c.l.b16 %v4114
        %v4695 = vunpack.c.h.b16 %v4114
        %v4696 = vunpack.c.l.b16 %v4115
        %v4697 = vunpack.c.h.b16 %v4115
        %v4698 = vunpack.c.l.b16 %v4116
        %v4699 = vunpack.c.h.b16 %v4116
        %v4700 = vunpack.c.l.b16 %v4117
        %v4701 = vunpack.c.h.b16 %v4117
        %v4702 = vunpack.c.l.b16 %v4118
        %v4703 = vunpack.c.h.b16 %v4118
        %v4704 = vunpack.c.l.b16 %v4119
        %v4705 = vunpack.c.h.b16 %v4119
        %v4706 = vunpack.c.l.b16 %v4120
        %v4707 = vunpack.c.h.b16 %v4120
        %v4708 = vunpack.c.l.b16 %v4121
        %v4709 = vunpack.c.h.b16 %v4121
        %v4710 = vunpack.c.l.b16 %v4122
        %v4711 = vunpack.c.h.b16 %v4122
        %v4712 = vunpack.c.l.b16 %v4123
        %v4713 = vunpack.c.h.b16 %v4123
        %v4714 = vunpack.c.l.b16 %v4124
        %v4715 = vunpack.c.h.b16 %v4124
        %v4716 = vunpack.c.l.b16 %v4125
        %v4717 = vunpack.c.h.b16 %v4125
        %v4718 = vunpack.c.l.b16 %v4126
        %v4719 = vunpack.c.h.b16 %v4126
        %v4720 = vunpack.c.l.b16 %v4127
        %v4721 = vunpack.c.h.b16 %v4127
        %v4722 = vunpack.c.l.b16 %v4128
        %v4723 = vunpack.c.h.b16 %v4128
        %v4724 = vunpack.c.l.b16 %v4129
        %v4725 = vunpack.c.h.b16 %v4129
        %v4726 = vunpack.c.l.b16 %v4130
        %v4727 = vunpack.c.h.b16 %v4130
        %v4728 = vunpack.c.l.b16 %v4131
        %v4729 = vunpack.c.h.b16 %v4131
        %v4730 = vunpack.c.l.b16 %v4132
        %v4731 = vunpack.c.h.b16 %v4132
        %v4732 = vunpack.c.l.b16 %v4133
        %v4733 = vunpack.c.h.b16 %v4133
        %v4734 = vunpack.c.l.b16 %v4134
        %v4735 = vunpack.c.h.b16 %v4134
        %v4736 = vunpack.c.l.b16 %v4135
        %v4737 = vunpack.c.h.b16 %v4135
        %v4738 = vunpack.c.l.b16 %v4136
        %v4739 = vunpack.c.h.b16 %v4136
        %v4740 = vunpack.c.l.b16 %v4137
        %v4741 = vunpack.c.h.b16 %v4137
        %v4742 = vunpack.c.l.b16 %v4138
        %v4743 = vunpack.c.h.b16 %v4138
        %v4744 = vunpack.c.l.b16 %v4139
        %v4745 = vunpack.c.h.b16 %v4139
        %v4746 = vunpack.c.l.b16 %v4140
        %v4747 = vunpack.c.h.b16 %v4140
        %v4748 = vunpack.c.l.b16 %v4141
        %v4749 = vunpack.c.h.b16 %v4141
        %v4750 = vunpack.c.l.b16 %v4142
        %v4751 = vunpack.c.h.b16 %v4142
        %v4752 = vunpack.c.l.b16 %v4143
        %v4753 = vunpack.c.h.b16 %v4143
        %v4754 = vunpack.c.l.b16 %v4144
        %v4755 = vunpack.c.h.b16 %v4144
        %v4756 = vunpack.c.l.b16 %v4145
        %v4757 = vunpack.c.h.b16 %v4145
        %v4758 = vunpack.c.l.b16 %v4146
        %v4759 = vunpack.c.h.b16 %v4146
        %v4760 = vunpack.c.l.b16 %v4147
        %v4761 = vunpack.c.h.b16 %v4147
        %v4762 = vunpack.c.l.b16 %v4148
        %v4763 = vunpack.c.h.b16 %v4148
        %v4764 = vunpack.c.l.b16 %v4149
        %v4765 = vunpack.c.h.b16 %v4149
        %v4766 = vunpack.c.l.b16 %v4150
        %v4767 = vunpack.c.h.b16 %v4150
        %v4768 = vunpack.c.l.b16 %v4151
        %v4769 = vunpack.c.h.b16 %v4151
        %v4770 = vunpack.c.l.b16 %v4152
        %v4771 = vunpack.c.h.b16 %v4152
        %v4772 = vunpack.c.l.b16 %v4153
        %v4773 = vunpack.c.h.b16 %v4153
        %v4774 = vunpack.c.l.b16 %v4154
        %v4775 = vunpack.c.h.b16 %v4154
        %v4776 = vunpack.c.l.b16 %v4155
        %v4777 = vunpack.c.h.b16 %v4155
        %v4778 = vunpack.c.l.b16 %v4156
        %v4779 = vunpack.c.h.b16 %v4156
        %v4780 = vunpack.c.l.b16 %v4157
        %v4781 = vunpack.c.h.b16 %v4157
        %v4782 = vunpack.c.l.b16 %v4158
        %v4783 = vunpack.c.h.b16 %v4158
        %v4784 = vunpack.c.l.b16 %v4159
        %v4785 = vunpack.c.h.b16 %v4159
        %v4786 = vunpack.c.l.b16 %v4160
        %v4787 = vunpack.c.h.b16 %v4160
        %v4788 = vunpack.c.l.b16 %v4161
        %v4789 = vunpack.c.h.b16 %v4161
        %v4790 = vunpack.c.l.b16 %v4162
        %v4791 = vunpack.c.h.b16 %v4162
        %v4792 = vunpack.c.l.b16 %v4163
        %v4793 = vunpack.c.h.b16 %v4163
        %v4794 = vunpack.c.l.b16 %v4164
        %v4795 = vunpack.c.h.b16 %v4164
        %v4796 = vunpack.c.l.b16 %v4165
        %v4797 = vunpack.c.h.b16 %v4165
        %v4798 = vunpack.c.l.b16 %v4166
        %v4799 = vunpack.c.h.b16 %v4166
        %v4800 = vunpack.c.l.b16 %v4167
        %v4801 = vunpack.c.h.b16 %v4167
        %v4802 = vunpack.c.l.b16 %v4168
        %v4803 = vunpack.c.h.b16 %v4168
        %v4804 = vunpack.c.l.b16 %v4169
        %v4805 = vunpack.c.h.b16 %v4169
        %v4806 = vunpack.c.l.b16 %v4170
        %v4807 = vunpack.c.h.b16 %v4170
        %v4808 = vunpack.c.l.b16 %v4171
        %v4809 = vunpack.c.h.b16 %v4171
        %v4810 = vunpack.c.l.b16 %v4172
        %v4811 = vunpack.c.h.b16 %v4172
        %v4812 = vunpack.c.l.b16 %v4173
        %v4813 = vunpack.c.h.b16 %v4173
        %v4814 = vunpack.c.l.b16 %v4174
        %v4815 = vunpack.c.h.b16 %v4174
        %v4816 = vunpack.c.l.b16 %v4175
        %v4817 = vunpack.c.h.b16 %v4175
        %v4818 = vunpack.c.l.b16 %v4176
        %v4819 = vunpack.c.h.b16 %v4176
        %v4820 = vunpack.c.l.b16 %v4177
        %v4821 = vunpack.c.h.b16 %v4177
        %v4822 = vunpack.c.l.b16 %v4178
        %v4823 = vunpack.c.h.b16 %v4178
        %v4824 = vunpack.c.l.b16 %v4179
        %v4825 = vunpack.c.h.b16 %v4179
        %v4826 = vunpack.c.l.b16 %v4180
        %v4827 = vunpack.c.h.b16 %v4180
        %v4828 = vunpack.c.l.b16 %v4181
        %v4829 = vunpack.c.h.b16 %v4181
        %v4830 = vunpack.c.l.b16 %v4182
        %v4831 = vunpack.c.h.b16 %v4182
        %v4832 = vunpack.c.l.b16 %v4183
        %v4833 = vunpack.c.h.b16 %v4183
        %v4834 = vunpack.c.l.b16 %v4184
        %v4835 = vunpack.c.h.b16 %v4184
        %v4836 = vunpack.c.l.b16 %v4185
        %v4837 = vunpack.c.h.b16 %v4185
        %v4838 = vunpack.c.l.b16 %v4186
        %v4839 = vunpack.c.h.b16 %v4186
        %v4840 = vunpack.c.l.b16 %v4187
        %v4841 = vunpack.c.h.b16 %v4187
        %v4842 = vunpack.c.l.b16 %v4188
        %v4843 = vunpack.c.h.b16 %v4188
        %v4844 = vunpack.c.l.b16 %v4189
        %v4845 = vunpack.c.h.b16 %v4189
        %v4846 = vunpack.c.l.b16 %v4190
        %v4847 = vunpack.c.h.b16 %v4190
        %v4848 = vunpack.c.l.b16 %v4191
        %v4849 = vunpack.c.h.b16 %v4191
        %v4850 = vunpack.c.l.b16 %v4192
        %v4851 = vunpack.c.h.b16 %v4192
        %v4852 = vunpack.c.l.b16 %v4193
        %v4853 = vunpack.c.h.b16 %v4193
        %v4854 = vunpack.c.l.b16 %v4194
        %v4855 = vunpack.c.h.b16 %v4194
        %v4856 = vunpack.c.l.b16 %v4195
        %v4857 = vunpack.c.h.b16 %v4195
        %v4858 = vunpack.c.l.b16 %v4196
        %v4859 = vunpack.c.h.b16 %v4196
        %v4860 = vunpack.c.l.b16 %v4197
        %v4861 = vunpack.c.h.b16 %v4197
        %v4862 = vunpack.c.l.b16 %v4198
        %v4863 = vunpack.c.h.b16 %v4198
        %v4864 = vunpack.c.l.b16 %v4199
        %v4865 = vunpack.c.h.b16 %v4199
        %v4866 = vunpack.c.l.b16 %v4200
        %v4867 = vunpack.c.h.b16 %v4200
        %v4868 = vunpack.c.l.b16 %v4201
        %v4869 = vunpack.c.h.b16 %v4201
        %v4870 = vunpack.c.l.b16 %v4202
        %v4871 = vunpack.c.h.b16 %v4202
        %v4872 = vunpack.c.l.b16 %v4203
        %v4873 = vunpack.c.h.b16 %v4203
        %v4874 = vunpack.c.l.b16 %v4204
        %v4875 = vunpack.c.h.b16 %v4204
        %v4876 = vunpack.c.l.b16 %v4205
        %v4877 = vunpack.c.h.b16 %v4205
        %v4878 = vunpack.c.l.b16 %v4206
        %v4879 = vunpack.c.h.b16 %v4206
        %v4880 = vunpack.c.l.b16 %v4207
        %v4881 = vunpack.c.h.b16 %v4207
        %v4882 = vunpack.c.l.b16 %v4208
        %v4883 = vunpack.c.h.b16 %v4208
        %v4884 = vunpack.c.l.b16 %v4209
        %v4885 = vunpack.c.h.b16 %v4209
        %v4886 = vunpack.c.l.b16 %v4210
        %v4887 = vunpack.c.h.b16 %v4210
        %v4888 = vunpack.c.l.b16 %v4211
        %v4889 = vunpack.c.h.b16 %v4211
        %v4890 = vunpack.c.l.b16 %v4212
        %v4891 = vunpack.c.h.b16 %v4212
        %v4892 = vunpack.c.l.b16 %v4213
        %v4893 = vunpack.c.h.b16 %v4213
        %v4894 = vunpack.c.l.b16 %v4214
        %v4895 = vunpack.c.h.b16 %v4214
        %v4896 = vunpack.c.l.b16 %v4215
        %v4897 = vunpack.c.h.b16 %v4215
        %v4898 = vunpack.c.l.b16 %v4216
        %v4899 = vunpack.c.h.b16 %v4216
        %v4900 = vunpack.c.l.b16 %v4217
        %v4901 = vunpack.c.h.b16 %v4217
        %v4902 = vunpack.c.l.b16 %v4218
        %v4903 = vunpack.c.h.b16 %v4218
        %v4904 = vunpack.c.l.b16 %v4219
        %v4905 = vunpack.c.h.b16 %v4219
        %v4906 = vunpack.c.l.b16 %v4220
        %v4907 = vunpack.c.h.b16 %v4220
        %v4908 = vunpack.c.l.b16 %v4221
        %v4909 = vunpack.c.h.b16 %v4221
        %v4910 = vunpack.c.l.b16 %v4222
        %v4911 = vunpack.c.h.b16 %v4222
        %v4912 = vunpack.c.l.b16 %v4223
        %v4913 = vunpack.c.h.b16 %v4223
        %v4914 = vunpack.c.l.b16 %v4224
        %v4915 = vunpack.c.h.b16 %v4224
        %v4916 = vunpack.c.l.b16 %v4225
        %v4917 = vunpack.c.h.b16 %v4225
        %v4918 = vunpack.c.l.b16 %v4226
        %v4919 = vunpack.c.h.b16 %v4226
        %v4920 = vunpack.c.l.b16 %v4227
        %v4921 = vunpack.c.h.b16 %v4227
        %v4922 = vunpack.c.l.b16 %v4228
        %v4923 = vunpack.c.h.b16 %v4228
        %v4924 = vunpack.c.l.b16 %v4229
        %v4925 = vunpack.c.h.b16 %v4229
        %v4926 = vunpack.c.l.b16 %v4230
        %v4927 = vunpack.c.h.b16 %v4230
        %v4928 = vunpack.c.l.b16 %v4231
        %v4929 = vunpack.c.h.b16 %v4231
        %v4930 = vunpack.c.l.b16 %v4232
        %v4931 = vunpack.c.h.b16 %v4232
        %v4932 = vunpack.c.l.b16 %v4233
        %v4933 = vunpack.c.h.b16 %v4233
        %v4934 = vunpack.c.l.b16 %v4234
        %v4935 = vunpack.c.h.b16 %v4234
        %v4936 = vunpack.c.l.b16 %v4235
        %v4937 = vunpack.c.h.b16 %v4235
        %v4938 = vunpack.c.l.b16 %v4236
        %v4939 = vunpack.c.h.b16 %v4236
        %v4940 = vunpack.c.l.b16 %v4237
        %v4941 = vunpack.c.h.b16 %v4237
        %v4942 = vunpack.c.l.b16 %v4238
        %v4943 = vunpack.c.h.b16 %v4238
        %v4944 = vunpack.c.l.b16 %v4239
        %v4945 = vunpack.c.h.b16 %v4239
        %v4946 = vunpack.c.l.b16 %v4240
        %v4947 = vunpack.c.h.b16 %v4240
        %v4948 = vunpack.c.l.b16 %v4241
        %v4949 = vunpack.c.h.b16 %v4241
        %v4950 = vunpack.c.l.b16 %v4242
        %v4951 = vunpack.c.h.b16 %v4242
        %v4952 = vunpack.c.l.b16 %v4243
        %v4953 = vunpack.c.h.b16 %v4243
        %v4954 = vunpack.c.l.b16 %v4244
        %v4955 = vunpack.c.h.b16 %v4244
        %v4956 = vunpack.c.l.b16 %v4245
        %v4957 = vunpack.c.h.b16 %v4245
        %v4958 = vunpack.c.l.b16 %v4246
        %v4959 = vunpack.c.h.b16 %v4246
        %v4960 = vunpack.c.l.b16 %v4247
        %v4961 = vunpack.c.h.b16 %v4247
        %v4962 = vunpack.c.l.b16 %v4248
        %v4963 = vunpack.c.h.b16 %v4248
        %v4964 = vunpack.c.l.b16 %v4249
        %v4965 = vunpack.c.h.b16 %v4249
        %v4966 = vunpack.c.l.b16 %v4250
        %v4967 = vunpack.c.h.b16 %v4250
        %v4968 = vunpack.c.l.b16 %v4251
        %v4969 = vunpack.c.h.b16 %v4251
        %v4970 = vunpack.c.l.b16 %v4252
        %v4971 = vunpack.c.h.b16 %v4252
        %v4972 = vunpack.c.l.b16 %v4253
        %v4973 = vunpack.c.h.b16 %v4253
        %v4974 = vunpack.c.l.b16 %v4254
        %v4975 = vunpack.c.h.b16 %v4254
        %v4976 = vunpack.c.l.b16 %v4255
        %v4977 = vunpack.c.h.b16 %v4255
        %v4978 = vunpack.c.l.b16 %v4256
        %v4979 = vunpack.c.h.b16 %v4256
        %v4980 = vunpack.c.l.b16 %v4257
        %v4981 = vunpack.c.h.b16 %v4257
        %v4982 = vunpack.c.l.b16 %v4258
        %v4983 = vunpack.c.h.b16 %v4258
        %v4984 = vunpack.c.l.b16 %v4259
        %v4985 = vunpack.c.h.b16 %v4259
        %v4986 = vunpack.c.l.b16 %v4260
        %v4987 = vunpack.c.h.b16 %v4260
        %v4988 = vunpack.c.l.b16 %v4261
        %v4989 = vunpack.c.h.b16 %v4261
        %v4990 = vunpack.c.l.b16 %v4262
        %v4991 = vunpack.c.h.b16 %v4262
        %v4992 = vunpack.c.l.b16 %v4263
        %v4993 = vunpack.c.h.b16 %v4263
        %v4994 = vunpack.c.l.b16 %v4264
        %v4995 = vunpack.c.h.b16 %v4264
        %v4996 = vunpack.c.l.b16 %v4265
        %v4997 = vunpack.c.h.b16 %v4265
        %v4998 = vunpack.c.l.b16 %v4266
        %v4999 = vunpack.c.h.b16 %v4266
        %v5000 = vunpack.c.l.b16 %v4267
        %v5001 = vunpack.c.h.b16 %v4267
        %v5002 = vunpack.c.l.b16 %v4268
        %v5003 = vunpack.c.h.b16 %v4268
        %v5004 = vunpack.c.l.b16 %v4269
        %v5005 = vunpack.c.h.b16 %v4269
        %v5006 = vunpack.c.l.b16 %v4270
        %v5007 = vunpack.c.h.b16 %v4270
        %v5008 = vunpack.c.l.b16 %v4271
        %v5009 = vunpack.c.h.b16 %v4271
        %v5010 = vunpack.c.l.b16 %v4272
        %v5011 = vunpack.c.h.b16 %v4272
        %v5012 = vunpack.c.l.b16 %v4273
        %v5013 = vunpack.c.h.b16 %v4273
        %v5014 = vunpack.c.l.b16 %v4274
        %v5015 = vunpack.c.h.b16 %v4274
        %v5016 = vunpack.c.l.b16 %v4275
        %v5017 = vunpack.c.h.b16 %v4275
        %v5018 = vunpack.c.l.b16 %v4276
        %v5019 = vunpack.c.h.b16 %v4276
        %v5020 = vunpack.c.l.b16 %v4277
        %v5021 = vunpack.c.h.b16 %v4277
        %v5022 = vunpack.c.l.b16 %v4278
        %v5023 = vunpack.c.h.b16 %v4278
        %v5024 = vunpack.c.l.b16 %v4279
        %v5025 = vunpack.c.h.b16 %v4279
        %v5026 = vunpack.c.l.b16 %v4280
        %v5027 = vunpack.c.h.b16 %v4280
        %v5028 = vunpack.c.l.b16 %v4281
        %v5029 = vunpack.c.h.b16 %v4281
        %v5030 = vunpack.c.l.b16 %v4282
        %v5031 = vunpack.c.h.b16 %v4282
        %v5032 = vunpack.c.l.b16 %v4283
        %v5033 = vunpack.c.h.b16 %v4283
        %v5034 = vunpack.c.l.b16 %v4284
        %v5035 = vunpack.c.h.b16 %v4284
        %v5036 = vunpack.c.l.b16 %v4285
        %v5037 = vunpack.c.h.b16 %v4285
        %v5038 = vunpack.c.l.b16 %v4286
        %v5039 = vunpack.c.h.b16 %v4286
        %v5040 = vunpack.c.l.b16 %v4287
        %v5041 = vunpack.c.h.b16 %v4287
        %v5042 = vunpack.c.l.b16 %v4288
        %v5043 = vunpack.c.h.b16 %v4288
        %v5044 = vunpack.c.l.b16 %v4289
        %v5045 = vunpack.c.h.b16 %v4289
        %v5046 = vunpack.c.l.b16 %v4290
        %v5047 = vunpack.c.h.b16 %v4290
        %v5048 = vunpack.c.l.b16 %v4291
        %v5049 = vunpack.c.h.b16 %v4291
        %v5050 = vunpack.c.l.b16 %v4292
        %v5051 = vunpack.c.h.b16 %v4292
        %v5052 = vunpack.c.l.b16 %v4293
        %v5053 = vunpack.c.h.b16 %v4293
        %v5054 = vunpack.c.l.b16 %v4294
        %v5055 = vunpack.c.h.b16 %v4294
        %v5056 = vunpack.c.l.b16 %v4295
        %v5057 = vunpack.c.h.b16 %v4295
        %v5058 = vunpack.c.l.b16 %v4296
        %v5059 = vunpack.c.h.b16 %v4296
        %v5060 = vunpack.c.l.b16 %v4297
        %v5061 = vunpack.c.h.b16 %v4297
        %v5062 = vunpack.c.l.b16 %v4298
        %v5063 = vunpack.c.h.b16 %v4298
        %v5064 = vunpack.c.l.b16 %v4299
        %v5065 = vunpack.c.h.b16 %v4299
        %v5066 = vunpack.c.l.b16 %v4300
        %v5067 = vunpack.c.h.b16 %v4300
        %v5068 = vunpack.c.l.b16 %v4301
        %v5069 = vunpack.c.h.b16 %v4301
        %v5070 = vunpack.c.l.b16 %v4302
        %v5071 = vunpack.c.h.b16 %v4302
        %v5072 = vunpack.c.l.b16 %v4303
        %v5073 = vunpack.c.h.b16 %v4303
        %v5074 = vunpack.c.l.b16 %v4304
        %v5075 = vunpack.c.h.b16 %v4304
        %v5076 = vunpack.c.l.b16 %v4305
        %v5077 = vunpack.c.h.b16 %v4305
        %v5078 = vunpack.c.l.b16 %v4306
        %v5079 = vunpack.c.h.b16 %v4306
        %v5080 = vunpack.c.l.b16 %v4307
        %v5081 = vunpack.c.h.b16 %v4307
        %v5082 = vunpack.c.l.b16 %v4308
        %v5083 = vunpack.c.h.b16 %v4308
        %v5084 = vunpack.c.l.b16 %v4309
        %v5085 = vunpack.c.h.b16 %v4309
        %v5086 = vunpack.c.l.b16 %v4310
        %v5087 = vunpack.c.h.b16 %v4310
        %v5088 = vunpack.c.l.b16 %v4311
        %v5089 = vunpack.c.h.b16 %v4311
        %v5090 = vunpack.c.l.b16 %v4312
        %v5091 = vunpack.c.h.b16 %v4312
        %v5092 = vunpack.c.l.b16 %v4313
        %v5093 = vunpack.c.h.b16 %v4313
        %v5094 = vunpack.c.l.b16 %v4314
        %v5095 = vunpack.c.h.b16 %v4314
        %v5096 = vunpack.c.l.b16 %v4315
        %v5097 = vunpack.c.h.b16 %v4315
        %v5098 = vunpack.c.l.b16 %v4316
        %v5099 = vunpack.c.h.b16 %v4316
        %v5100 = vunpack.c.l.b16 %v4317
        %v5101 = vunpack.c.h.b16 %v4317
        %v5102 = vunpack.c.l.b16 %v4318
        %v5103 = vunpack.c.h.b16 %v4318
        %v5104 = vunpack.c.l.b16 %v4319
        %v5105 = vunpack.c.h.b16 %v4319
        %v5106 = vunpack.c.l.b16 %v4320
        %v5107 = vunpack.c.h.b16 %v4320
        %v5108 = vunpack.c.l.b16 %v4321
        %v5109 = vunpack.c.h.b16 %v4321
        %v5110 = vunpack.c.l.b16 %v4322
        %v5111 = vunpack.c.h.b16 %v4322
        %v5112 = vunpack.c.l.b16 %v4323
        %v5113 = vunpack.c.h.b16 %v4323
        %v5114 = vpack.c.b16 %v4606, %v4602
        %v5115 = vpack.c.b16 %v4607, %v4603
        %v5116 = vpack.c.b16 %v4608, %v4604
        %v5117 = vpack.c.b16 %v4609, %v4605
        %v5118 = vpack.c.b16 %v4614, %v4610
        %v5119 = vpack.c.b16 %v4615, %v4611
        %v5120 = vpack.c.b16 %v4616, %v4612
        %v5121 = vpack.c.b16 %v4617, %v4613
        %v5122 = vpack.c.b16 %v4622, %v4618
        %v5123 = vpack.c.b16 %v4623, %v4619
        %v5124 = vpack.c.b16 %v4624, %v4620
        %v5125 = vpack.c.b16 %v4625, %v4621
        %v5126 = vpack.c.b16 %v4630, %v4626
        %v5127 = vpack.c.b16 %v4631, %v4627
        %v5128 = vpack.c.b16 %v4632, %v4628
        %v5129 = vpack.c.b16 %v4633, %v4629
        %v5130 = vpack.c.b16 %v4638, %v4634
        %v5131 = vpack.c.b16 %v4639, %v4635
        %v5132 = vpack.c.b16 %v4640, %v4636
        %v5133 = vpack.c.b16 %v4641, %v4637
        %v5134 = vpack.c.b16 %v4646, %v4642
        %v5135 = vpack.c.b16 %v4647, %v4643
        %v5136 = vpack.c.b16 %v4648, %v4644
        %v5137 = vpack.c.b16 %v4649, %v4645
        %v5138 = vpack.c.b16 %v4654, %v4650
        %v5139 = vpack.c.b16 %v4655, %v4651
        %v5140 = vpack.c.b16 %v4656, %v4652
        %v5141 = vpack.c.b16 %v4657, %v4653
        %v5142 = vpack.c.b16 %v4662, %v4658
        %v5143 = vpack.c.b16 %v4663, %v4659
        %v5144 = vpack.c.b16 %v4664, %v4660
        %v5145 = vpack.c.b16 %v4665, %v4661
        %v5146 = vpack.c.b16 %v4670, %v4666
        %v5147 = vpack.c.b16 %v4671, %v4667
        %v5148 = vpack.c.b16 %v4672, %v4668
        %v5149 = vpack.c.b16 %v4673, %v4669
        %v5150 = vpack.c.b16 %v4678, %v4674
        %v5151 = vpack.c.b16 %v4679, %v4675
        %v5152 = vpack.c.b16 %v4680, %v4676
        %v5153 = vpack.c.b16 %v4681, %v4677
        %v5154 = vpack.c.b16 %v4686, %v4682
        %v5155 = vpack.c.b16 %v4687, %v4683
        %v5156 = vpack.c.b16 %v4688, %v4684
        %v5157 = vpack.c.b16 %v4689, %v4685
        %v5158 = vpack.c.b16 %v4694, %v4690
        %v5159 = vpack.c.b16 %v4695, %v4691
        %v5160 = vpack.c.b16 %v4696, %v4692
        %v5161 = vpack.c.b16 %v4697, %v4693
        %v5162 = vpack.c.b16 %v4702, %v4698
        %v5163 = vpack.c.b16 %v4703, %v4699
        %v5164 = vpack.c.b16 %v4704, %v4700
        %v5165 = vpack.c.b16 %v4705, %v4701
        %v5166 = vpack.c.b16 %v4710, %v4706
        %v5167 = vpack.c.b16 %v4711, %v4707
        %v5168 = vpack.c.b16 %v4712, %v4708
        %v5169 = vpack.c.b16 %v4713, %v4709
        %v5170 = vpack.c.b16 %v4718, %v4714
        %v5171 = vpack.c.b16 %v4719, %v4715
        %v5172 = vpack.c.b16 %v4720, %v4716
        %v5173 = vpack.c.b16 %v4721, %v4717
        %v5174 = vpack.c.b16 %v4726, %v4722
        %v5175 = vpack.c.b16 %v4727, %v4723
        %v5176 = vpack.c.b16 %v4728, %v4724
        %v5177 = vpack.c.b16 %v4729, %v4725
        %v5178 = vpack.c.b16 %v4734, %v4730
        %v5179 = vpack.c.b16 %v4735, %v4731
        %v5180 = vpack.c.b16 %v4736, %v4732
        %v5181 = vpack.c.b16 %v4737, %v4733
        %v5182 = vpack.c.b16 %v4742, %v4738
        %v5183 = vpack.c.b16 %v4743, %v4739
        %v5184 = vpack.c.b16 %v4744, %v4740
        %v5185 = vpack.c.b16 %v4745, %v4741
        %v5186 = vpack.c.b16 %v4750, %v4746
        %v5187 = vpack.c.b16 %v4751, %v4747
        %v5188 = vpack.c.b16 %v4752, %v4748
        %v5189 = vpack.c.b16 %v4753, %v4749
        %v5190 = vpack.c.b16 %v4758, %v4754
        %v5191 = vpack.c.b16 %v4759, %v4755
        %v5192 = vpack.c.b16 %v4760, %v4756
        %v5193 = vpack.c.b16 %v4761, %v4757
        %v5194 = vpack.c.b16 %v4766, %v4762
        %v5195 = vpack.c.b16 %v4767, %v4763
        %v5196 = vpack.c.b16 %v4768, %v4764
        %v5197 = vpack.c.b16 %v4769, %v4765
        %v5198 = vpack.c.b16 %v4774, %v4770
        %v5199 = vpack.c.b16 %v4775, %v4771
        %v5200 = vpack.c.b16 %v4776, %v4772
        %v5201 = vpack.c.b16 %v4777, %v4773
        %v5202 = vpack.c.b16 %v4782, %v4778
        %v5203 = vpack.c.b16 %v4783, %v4779
        %v5204 = vpack.c.b16 %v4784, %v4780
        %v5205 = vpack.c.b16 %v4785, %v4781
        %v5206 = vpack.c.b16 %v4790, %v4786
        %v5207 = vpack.c.b16 %v4791, %v4787
        %v5208 = vpack.c.b16 %v4792, %v4788
        %v5209 = vpack.c.b16 %v4793, %v4789
        %v5210 = vpack.c.b16 %v4798, %v4794
        %v5211 = vpack.c.b16 %v4799, %v4795
        %v5212 = vpack.c.b16 %v4800, %v4796
        %v5213 = vpack.c.b16 %v4801, %v4797
        %v5214 = vpack.c.b16 %v4806, %v4802
        %v5215 = vpack.c.b16 %v4807, %v4803
        %v5216 = vpack.c.b16 %v4808, %v4804
        %v5217 = vpack.c.b16 %v4809, %v4805
        %v5218 = vpack.c.b16 %v4814, %v4810
        %v5219 = vpack.c.b16 %v4815, %v4811
        %v5220 = vpack.c.b16 %v4816, %v4812
        %v5221 = vpack.c.b16 %v4817, %v4813
        %v5222 = vpack.c.b16 %v4822, %v4818
        %v5223 = vpack.c.b16 %v4823, %v4819
        %v5224 = vpack.c.b16 %v4824, %v4820
        %v5225 = vpack.c.b16 %v4825, %v4821
        %v5226 = vpack.c.b16 %v4830, %v4826
        %v5227 = vpack.c.b16 %v4831, %v4827
        %v5228 = vpack.c.b16 %v4832, %v4828
        %v5229 = vpack.c.b16 %v4833, %v4829
        %v5230 = vpack.c.b16 %v4838, %v4834
        %v5231 = vpack.c.b16 %v4839, %v4835
        %v5232 = vpack.c.b16 %v4840, %v4836
        %v5233 = vpack.c.b16 %v4841, %v4837
        %v5234 = vpack.c.b16 %v4846, %v4842
        %v5235 = vpack.c.b16 %v4847, %v4843
        %v5236 = vpack.c.b16 %v4848, %v4844
        %v5237 = vpack.c.b16 %v4849, %v4845
        %v5238 = vpack.c.b16 %v4854, %v4850
        %v5239 = vpack.c.b16 %v4855, %v4851
        %v5240 = vpack.c.b16 %v4856, %v4852
        %v5241 = vpack.c.b16 %v4857, %v4853
        %v5242 = vpack.c.b16 %v4862, %v4858
        %v5243 = vpack.c.b16 %v4863, %v4859
        %v5244 = vpack.c.b16 %v4864, %v4860
        %v5245 = vpack.c.b16 %v4865, %v4861
        %v5246 = vpack.c.b16 %v4870, %v4866
        %v5247 = vpack.c.b16 %v4871, %v4867
        %v5248 = vpack.c.b16 %v4872, %v4868
        %v5249 = vpack.c.b16 %v4873, %v4869
        %v5250 = vpack.c.b16 %v4878, %v4874
        %v5251 = vpack.c.b16 %v4879, %v4875
        %v5252 = vpack.c.b16 %v4880, %v4876
        %v5253 = vpack.c.b16 %v4881, %v4877
        %v5254 = vpack.c.b16 %v4886, %v4882
        %v5255 = vpack.c.b16 %v4887, %v4883
        %v5256 = vpack.c.b16 %v4888, %v4884
        %v5257 = vpack.c.b16 %v4889, %v4885
        %v5258 = vpack.c.b16 %v4894, %v4890
        %v5259 = vpack.c.b16 %v4895, %v4891
        %v5260 = vpack.c.b16 %v4896, %v4892
        %v5261 = vpack.c.b16 %v4897, %v4893
        %v5262 = vpack.c.b16 %v4902, %v4898
        %v5263 = vpack.c.b16 %v4903, %v4899
        %v5264 = vpack.c.b16 %v4904, %v4900
        %v5265 = vpack.c.b16 %v4905, %v4901
        %v5266 = vpack.c.b16 %v4910, %v4906
        %v5267 = vpack.c.b16 %v4911, %v4907
        %v5268 = vpack.c.b16 %v4912, %v4908
        %v5269 = vpack.c.b16 %v4913, %v4909
        %v5270 = vpack.c.b16 %v4918, %v4914
        %v5271 = vpack.c.b16 %v4919, %v4915
        %v5272 = vpack.c.b16 %v4920, %v4916
        %v5273 = vpack.c.b16 %v4921, %v4917
        %v5274 = vpack.c.b16 %v4926, %v4922
        %v5275 = vpack.c.b16 %v4927, %v4923
        %v5276 = vpack.c.b16 %v4928, %v4924
        %v5277 = vpack.c.b16 %v4929, %v4925
        %v5278 = vpack.c.b16 %v4934, %v4930
        %v5279 = vpack.c.b16 %v4935, %v4931
        %v5280 = vpack.c.b16 %v4936, %v4932
        %v5281 = vpack.c.b16 %v4937, %v4933
        %v5282 = vpack.c.b16 %v4942, %v4938
        %v5283 = vpack.c.b16 %v4943, %v4939
        %v5284 = vpack.c.b16 %v4944, %v4940
        %v5285 = vpack.c.b16 %v4945, %v4941
        %v5286 = vpack.c.b16 %v4950, %v4946
        %v5287 = vpack.c.b16 %v4951, %v4947
        %v5288 = vpack.c.b16 %v4952, %v4948
        %v5289 = vpack.c.b16 %v4953, %v4949
        %v5290 = vpack.c.b16 %v4958, %v4954
        %v5291 = vpack.c.b16 %v4959, %v4955
        %v5292 = vpack.c.b16 %v4960, %v4956
        %v5293 = vpack.c.b16 %v4961, %v4957
        %v5294 = vpack.c.b16 %v4966, %v4962
        %v5295 = vpack.c.b16 %v4967, %v4963
        %v5296 = vpack.c.b16 %v4968, %v4964
        %v5297 = vpack.c.b16 %v4969, %v4965
        %v5298 = vpack.c.b16 %v4974, %v4970
        %v5299 = vpack.c.b16 %v4975, %v4971
        %v5300 = vpack.c.b16 %v4976, %v4972
        %v5301 = vpack.c.b16 %v4977, %v4973
        %v5302 = vpack.c.b16 %v4982, %v4978
        %v5303 = vpack.c.b16 %v4983, %v4979
        %v5304 = vpack.c.b16 %v4984, %v4980
        %v5305 = vpack.c.b16 %v4985, %v4981
        %v5306 = vpack.c.b16 %v4990, %v4986
        %v5307 = vpack.c.b16 %v4991, %v4987
        %v5308 = vpack.c.b16 %v4992, %v4988
        %v5309 = vpack.c.b16 %v4993, %v4989
        %v5310 = vpack.c.b16 %v4998, %v4994
        %v5311 = vpack.c.b16 %v4999, %v4995
        %v5312 = vpack.c.b16 %v5000, %v4996
        %v5313 = vpack.c.b16 %v5001, %v4997
        %v5314 = vpack.c.b16 %v5006, %v5002
        %v5315 = vpack.c.b16 %v5007, %v5003
        %v5316 = vpack.c.b16 %v5008, %v5004
        %v5317 = vpack.c.b16 %v5009, %v5005
        %v5318 = vpack.c.b16 %v5014, %v5010
        %v5319 = vpack.c.b16 %v5015, %v5011
        %v5320 = vpack.c.b16 %v5016, %v5012
        %v5321 = vpack.c.b16 %v5017, %v5013
        %v5322 = vpack.c.b16 %v5022, %v5018
        %v5323 = vpack.c.b16 %v5023, %v5019
        %v5324 = vpack.c.b16 %v5024, %v5020
        %v5325 = vpack.c.b16 %v5025, %v5021
        %v5326 = vpack.c.b16 %v5030, %v5026
        %v5327 = vpack.c.b16 %v5031, %v5027
        %v5328 = vpack.c.b16 %v5032, %v5028
        %v5329 = vpack.c.b16 %v5033, %v5029
        %v5330 = vpack.c.b16 %v5038, %v5034
        %v5331 = vpack.c.b16 %v5039, %v5035
        %v5332 = vpack.c.b16 %v5040, %v5036
        %v5333 = vpack.c.b16 %v5041, %v5037
        %v5334 = vpack.c.b16 %v5046, %v5042
        %v5335 = vpack.c.b16 %v5047, %v5043
        %v5336 = vpack.c.b16 %v5048, %v5044
        %v5337 = vpack.c.b16 %v5049, %v5045
        %v5338 = vpack.c.b16 %v5054, %v5050
        %v5339 = vpack.c.b16 %v5055, %v5051
        %v5340 = vpack.c.b16 %v5056, %v5052
        %v5341 = vpack.c.b16 %v5057, %v5053
        %v5342 = vpack.c.b16 %v5062, %v5058
        %v5343 = vpack.c.b16 %v5063, %v5059
        %v5344 = vpack.c.b16 %v5064, %v5060
        %v5345 = vpack.c.b16 %v5065, %v5061
        %v5346 = vpack.c.b16 %v5070, %v5066
        %v5347 = vpack.c.b16 %v5071, %v5067
        %v5348 = vpack.c.b16 %v5072, %v5068
        %v5349 = vpack.c.b16 %v5073, %v5069
        %v5350 = vpack.c.b16 %v5078, %v5074
        %v5351 = vpack.c.b16 %v5079, %v5075
        %v5352 = vpack.c.b16 %v5080, %v5076
        %v5353 = vpack.c.b16 %v5081, %v5077
        %v5354 = vpack.c.b16 %v5086, %v5082
        %v5355 = vpack.c.b16 %v5087, %v5083
        %v5356 = vpack.c.b16 %v5088, %v5084
        %v5357 = vpack.c.b16 %v5089, %v5085
        %v5358 = vpack.c.b16 %v5094, %v5090
        %v5359 = vpack.c.b16 %v5095, %v5091
        %v5360 = vpack.c.b16 %v5096, %v5092
        %v5361 = vpack.c.b16 %v5097, %v5093
        %v5362 = vpack.c.b16 %v5102, %v5098
        %v5363 = vpack.c.b16 %v5103, %v5099
        %v5364 = vpack.c.b16 %v5104, %v5100
        %v5365 = vpack.c.b16 %v5105, %v5101
        %v5366 = vpack.c.b16 %v5110, %v5106
        %v5367 = vpack.c.b16 %v5111, %v5107
        %v5368 = vpack.c.b16 %v5112, %v5108
        %v5369 = vpack.c.b16 %v5113, %v5109
        %5626 = vmatprep.subr.bf16.mxu0 %v5143
        %5627 = vmatpush1.bf16.msra.mxu0 %v5142
        %5628 = vmatprep.subr.bf16.mxu0 %v5139
        %5629 = vmatpush1.bf16.msra.mxu0 %v5138
        %5630 = vmatprep.subr.bf16.mxu0 %v5135
        %5631 = vmatpush1.bf16.msra.mxu0 %v5134
        %5632 = vmatprep.subr.bf16.mxu0 %v5131
        %5633 = vmatpush1.bf16.msra.mxu0 %v5130
        %5634 = vmatprep.subr.bf16.mxu0 %v5127
        %5635 = vmatpush1.bf16.msra.mxu0 %v5126
        %5636 = vmatprep.subr.bf16.mxu0 %v5123
        %5637 = vmatpush1.bf16.msra.mxu0 %v5122
        %5638 = vmatprep.subr.bf16.mxu0 %v5119
        %5639 = vmatpush1.bf16.msra.mxu0 %v5118
        %5640 = vmatprep.subr.bf16.mxu0 %v5115
        %5641 = vmatpush1.bf16.msra.mxu0 %v5114
        %5642 = vmatprep.subr.bf16.mxu0 %v5175
        %5643 = vmatpush2.bf16.msra.mxu0 %v5174
        %5644 = vmatprep.subr.bf16.mxu0 %v5171
        %5645 = vmatpush2.bf16.msra.mxu0 %v5170
        %5646 = vmatprep.subr.bf16.mxu0 %v5167
        %5647 = vmatpush2.bf16.msra.mxu0 %v5166
        %5648 = vmatprep.subr.bf16.mxu0 %v5163
        %5649 = vmatpush2.bf16.msra.mxu0 %v5162
        %5650 = vmatprep.subr.bf16.mxu0 %v5159
        %5651 = vmatpush2.bf16.msra.mxu0 %v5158
        %5652 = vmatprep.subr.bf16.mxu0 %v5155
        %5653 = vmatpush2.bf16.msra.mxu0 %v5154
        %5654 = vmatprep.subr.bf16.mxu0 %v5151
        %5655 = vmatpush2.bf16.msra.mxu0 %v5150
        %5656 = vmatprep.subr.bf16.mxu0 %v5147
        %5657 = vmatpush2.bf16.msra.mxu0 %v5146
        %5658 = vmatprep.mubr.bf16.mxu0 %v4061
        %5659 = vmatmul.mubr.bf16.gmra.mxu0 %v4060
        %v5660 = vpop.f32.mrf.mxu0
        %v5661 = vadd.f32 %v4329, %v5660
        %v5662 = vpop.f32.mrf.mxu0
        %v5663 = vadd.f32 %v4333, %v5662
        %v5664 = vpop.f32.mrf.mxu0
        %v5665 = vpop.f32.mrf.mxu0
        %5666 = vdwg.mxu0
        %5667 = vmatprep.subr.bf16.mxu0 %v5207
        %5668 = vmatpush1.bf16.msra.mxu0 %v5206
        %5669 = vmatprep.subr.bf16.mxu0 %v5203
        %5670 = vmatpush1.bf16.msra.mxu0 %v5202
        %5671 = vmatprep.subr.bf16.mxu0 %v5199
        %5672 = vmatpush1.bf16.msra.mxu0 %v5198
        %5673 = vmatprep.subr.bf16.mxu0 %v5195
        %5674 = vmatpush1.bf16.msra.mxu0 %v5194
        %5675 = vmatprep.subr.bf16.mxu0 %v5191
        %5676 = vmatpush1.bf16.msra.mxu0 %v5190
        %5677 = vmatprep.subr.bf16.mxu0 %v5187
        %5678 = vmatpush1.bf16.msra.mxu0 %v5186
        %5679 = vmatprep.subr.bf16.mxu0 %v5183
        %5680 = vmatpush1.bf16.msra.mxu0 %v5182
        %5681 = vmatprep.subr.bf16.mxu0 %v5179
        %5682 = vmatpush1.bf16.msra.mxu0 %v5178
        %5683 = vmatprep.subr.bf16.mxu0 %v5239
        %5684 = vmatpush2.bf16.msra.mxu0 %v5238
        %5685 = vmatprep.subr.bf16.mxu0 %v5235
        %5686 = vmatpush2.bf16.msra.mxu0 %v5234
        %5687 = vmatprep.subr.bf16.mxu0 %v5231
        %5688 = vmatpush2.bf16.msra.mxu0 %v5230
        %5689 = vmatprep.subr.bf16.mxu0 %v5227
        %5690 = vmatpush2.bf16.msra.mxu0 %v5226
        %5691 = vmatprep.subr.bf16.mxu0 %v5223
        %5692 = vmatpush2.bf16.msra.mxu0 %v5222
        %5693 = vmatprep.subr.bf16.mxu0 %v5219
        %5694 = vmatpush2.bf16.msra.mxu0 %v5218
        %5695 = vmatprep.subr.bf16.mxu0 %v5215
        %5696 = vmatpush2.bf16.msra.mxu0 %v5214
        %5697 = vmatprep.subr.bf16.mxu0 %v5211
        %5698 = vmatpush2.bf16.msra.mxu0 %v5210
        %5699 = vmatprep.mubr.bf16.mxu0 %v4063
        %5700 = vmatmul.mubr.bf16.gmra.mxu0 %v4062
        %v5701 = vpop.f32.mrf.mxu0
        %v5702 = vadd.f32 %v5661, %v5701
        %v5703 = vpop.f32.mrf.mxu0
        %v5704 = vadd.f32 %v5663, %v5703
        %v5705 = vpop.f32.mrf.mxu0
        %v5706 = vpop.f32.mrf.mxu0
        %5707 = vdwg.mxu0
        %5708 = vmatprep.subr.bf16.mxu0 %v5271
        %5709 = vmatpush1.bf16.msra.mxu0 %v5270
        %5710 = vmatprep.subr.bf16.mxu0 %v5267
        %5711 = vmatpush1.bf16.msra.mxu0 %v5266
        %5712 = vmatprep.subr.bf16.mxu0 %v5263
        %5713 = vmatpush1.bf16.msra.mxu0 %v5262
        %5714 = vmatprep.subr.bf16.mxu0 %v5259
        %5715 = vmatpush1.bf16.msra.mxu0 %v5258
        %5716 = vmatprep.subr.bf16.mxu0 %v5255
        %5717 = vmatpush1.bf16.msra.mxu0 %v5254
        %5718 = vmatprep.subr.bf16.mxu0 %v5251
        %5719 = vmatpush1.bf16.msra.mxu0 %v5250
        %5720 = vmatprep.subr.bf16.mxu0 %v5247
        %5721 = vmatpush1.bf16.msra.mxu0 %v5246
        %5722 = vmatprep.subr.bf16.mxu0 %v5243
        %5723 = vmatpush1.bf16.msra.mxu0 %v5242
        %5724 = vmatprep.subr.bf16.mxu0 %v5303
        %5725 = vmatpush2.bf16.msra.mxu0 %v5302
        %5726 = vmatprep.subr.bf16.mxu0 %v5299
        %5727 = vmatpush2.bf16.msra.mxu0 %v5298
        %5728 = vmatprep.subr.bf16.mxu0 %v5295
        %5729 = vmatpush2.bf16.msra.mxu0 %v5294
        %5730 = vmatprep.subr.bf16.mxu0 %v5291
        %5731 = vmatpush2.bf16.msra.mxu0 %v5290
        %5732 = vmatprep.subr.bf16.mxu0 %v5287
        %5733 = vmatpush2.bf16.msra.mxu0 %v5286
        %5734 = vmatprep.subr.bf16.mxu0 %v5283
        %5735 = vmatpush2.bf16.msra.mxu0 %v5282
        %5736 = vmatprep.subr.bf16.mxu0 %v5279
        %5737 = vmatpush2.bf16.msra.mxu0 %v5278
        %5738 = vmatprep.subr.bf16.mxu0 %v5275
        %5739 = vmatpush2.bf16.msra.mxu0 %v5274
        %5740 = vmatprep.mubr.bf16.mxu0 %v4065
        %5741 = vmatmul.mubr.bf16.gmra.mxu0 %v4064
        %v5742 = vpop.f32.mrf.mxu0
        %v5743 = vadd.f32 %v5702, %v5742
        %v5744 = vpop.f32.mrf.mxu0
        %v5745 = vadd.f32 %v5704, %v5744
        %v5746 = vpop.f32.mrf.mxu0
        %v5747 = vpop.f32.mrf.mxu0
        %5748 = vdwg.mxu0
        %5749 = vmatprep.subr.bf16.mxu0 %v5335
        %5750 = vmatpush1.bf16.msra.mxu0 %v5334
        %5751 = vmatprep.subr.bf16.mxu0 %v5331
        %5752 = vmatpush1.bf16.msra.mxu0 %v5330
        %5753 = vmatprep.subr.bf16.mxu0 %v5327
        %5754 = vmatpush1.bf16.msra.mxu0 %v5326
        %5755 = vmatprep.subr.bf16.mxu0 %v5323
        %5756 = vmatpush1.bf16.msra.mxu0 %v5322
        %5757 = vmatprep.subr.bf16.mxu0 %v5319
        %5758 = vmatpush1.bf16.msra.mxu0 %v5318
        %5759 = vmatprep.subr.bf16.mxu0 %v5315
        %5760 = vmatpush1.bf16.msra.mxu0 %v5314
        %5761 = vmatprep.subr.bf16.mxu0 %v5311
        %5762 = vmatpush1.bf16.msra.mxu0 %v5310
        %5763 = vmatprep.subr.bf16.mxu0 %v5307
        %5764 = vmatpush1.bf16.msra.mxu0 %v5306
        %5765 = vmatprep.subr.bf16.mxu0 %v5367
        %5766 = vmatpush2.bf16.msra.mxu0 %v5366
        %5767 = vmatprep.subr.bf16.mxu0 %v5363
        %5768 = vmatpush2.bf16.msra.mxu0 %v5362
        %5769 = vmatprep.subr.bf16.mxu0 %v5359
        %5770 = vmatpush2.bf16.msra.mxu0 %v5358
        %5771 = vmatprep.subr.bf16.mxu0 %v5355
        %5772 = vmatpush2.bf16.msra.mxu0 %v5354
        %5773 = vmatprep.subr.bf16.mxu0 %v5351
        %5774 = vmatpush2.bf16.msra.mxu0 %v5350
        %5775 = vmatprep.subr.bf16.mxu0 %v5347
        %5776 = vmatpush2.bf16.msra.mxu0 %v5346
        %5777 = vmatprep.subr.bf16.mxu0 %v5343
        %5778 = vmatpush2.bf16.msra.mxu0 %v5342
        %5779 = vmatprep.subr.bf16.mxu0 %v5339
        %5780 = vmatpush2.bf16.msra.mxu0 %v5338
        %5781 = vmatprep.mubr.bf16.mxu0 %v4067
        %5782 = vmatmul.mubr.bf16.gmra.mxu0 %v4066
        %v5783 = vpop.f32.mrf.mxu0
        %v5784 = vadd.f32 %v5743, %v5783
        %v5785 = vpop.f32.mrf.mxu0
        %v5786 = vadd.f32 %v5745, %v5785
        %v5787 = vpop.f32.mrf.mxu0
        %v5788 = vpop.f32.mrf.mxu0
        %5789 = vdwg.mxu0
        %5790 = vmatprep.subr.bf16.mxu0 %v5145
        %5791 = vmatpush1.bf16.msra.mxu0 %v5144
        %5792 = vmatprep.subr.bf16.mxu0 %v5141
        %5793 = vmatpush1.bf16.msra.mxu0 %v5140
        %5794 = vmatprep.subr.bf16.mxu0 %v5137
        %5795 = vmatpush1.bf16.msra.mxu0 %v5136
        %5796 = vmatprep.subr.bf16.mxu0 %v5133
        %5797 = vmatpush1.bf16.msra.mxu0 %v5132
        %5798 = vmatprep.subr.bf16.mxu0 %v5129
        %5799 = vmatpush1.bf16.msra.mxu0 %v5128
        %5800 = vmatprep.subr.bf16.mxu0 %v5125
        %5801 = vmatpush1.bf16.msra.mxu0 %v5124
        %5802 = vmatprep.subr.bf16.mxu0 %v5121
        %5803 = vmatpush1.bf16.msra.mxu0 %v5120
        %5804 = vmatprep.subr.bf16.mxu0 %v5117
        %5805 = vmatpush1.bf16.msra.mxu0 %v5116
        %5806 = vmatprep.subr.bf16.mxu0 %v5177
        %5807 = vmatpush2.bf16.msra.mxu0 %v5176
        %5808 = vmatprep.subr.bf16.mxu0 %v5173
        %5809 = vmatpush2.bf16.msra.mxu0 %v5172
        %5810 = vmatprep.subr.bf16.mxu0 %v5169
        %5811 = vmatpush2.bf16.msra.mxu0 %v5168
        %5812 = vmatprep.subr.bf16.mxu0 %v5165
        %5813 = vmatpush2.bf16.msra.mxu0 %v5164
        %5814 = vmatprep.subr.bf16.mxu0 %v5161
        %5815 = vmatpush2.bf16.msra.mxu0 %v5160
        %5816 = vmatprep.subr.bf16.mxu0 %v5157
        %5817 = vmatpush2.bf16.msra.mxu0 %v5156
        %5818 = vmatprep.subr.bf16.mxu0 %v5153
        %5819 = vmatpush2.bf16.msra.mxu0 %v5152
        %5820 = vmatprep.subr.bf16.mxu0 %v5149
        %5821 = vmatpush2.bf16.msra.mxu0 %v5148
        %5822 = vmatprep.mubr.bf16.mxu0 %v4061
        %5823 = vmatmul.mubr.bf16.gmra.mxu0 %v4060
        %v5824 = vpop.f32.mrf.mxu0
        %v5825 = vadd.f32 %v4337, %v5824
        %v5826 = vpop.f32.mrf.mxu0
        %v5827 = vadd.f32 %v4341, %v5826
        %v5828 = vpop.f32.mrf.mxu0
        %v5829 = vpop.f32.mrf.mxu0
        %5830 = vdwg.mxu0
        %5831 = vmatprep.subr.bf16.mxu0 %v5209
        %5832 = vmatpush1.bf16.msra.mxu0 %v5208
        %5833 = vmatprep.subr.bf16.mxu0 %v5205
        %5834 = vmatpush1.bf16.msra.mxu0 %v5204
        %5835 = vmatprep.subr.bf16.mxu0 %v5201
        %5836 = vmatpush1.bf16.msra.mxu0 %v5200
        %5837 = vmatprep.subr.bf16.mxu0 %v5197
        %5838 = vmatpush1.bf16.msra.mxu0 %v5196
        %5839 = vmatprep.subr.bf16.mxu0 %v5193
        %5840 = vmatpush1.bf16.msra.mxu0 %v5192
        %5841 = vmatprep.subr.bf16.mxu0 %v5189
        %5842 = vmatpush1.bf16.msra.mxu0 %v5188
        %5843 = vmatprep.subr.bf16.mxu0 %v5185
        %5844 = vmatpush1.bf16.msra.mxu0 %v5184
        %5845 = vmatprep.subr.bf16.mxu0 %v5181
        %5846 = vmatpush1.bf16.msra.mxu0 %v5180
        %5847 = vmatprep.subr.bf16.mxu0 %v5241
        %5848 = vmatpush2.bf16.msra.mxu0 %v5240
        %5849 = vmatprep.subr.bf16.mxu0 %v5237
        %5850 = vmatpush2.bf16.msra.mxu0 %v5236
        %5851 = vmatprep.subr.bf16.mxu0 %v5233
        %5852 = vmatpush2.bf16.msra.mxu0 %v5232
        %5853 = vmatprep.subr.bf16.mxu0 %v5229
        %5854 = vmatpush2.bf16.msra.mxu0 %v5228
        %5855 = vmatprep.subr.bf16.mxu0 %v5225
        %5856 = vmatpush2.bf16.msra.mxu0 %v5224
        %5857 = vmatprep.subr.bf16.mxu0 %v5221
        %5858 = vmatpush2.bf16.msra.mxu0 %v5220
        %5859 = vmatprep.subr.bf16.mxu0 %v5217
        %5860 = vmatpush2.bf16.msra.mxu0 %v5216
        %5861 = vmatprep.subr.bf16.mxu0 %v5213
        %5862 = vmatpush2.bf16.msra.mxu0 %v5212
        %5863 = vmatprep.mubr.bf16.mxu0 %v4063
        %5864 = vmatmul.mubr.bf16.gmra.mxu0 %v4062
        %v5865 = vpop.f32.mrf.mxu0
        %v5866 = vadd.f32 %v5825, %v5865
        %v5867 = vpop.f32.mrf.mxu0
        %v5868 = vadd.f32 %v5827, %v5867
        %v5869 = vpop.f32.mrf.mxu0
        %v5870 = vpop.f32.mrf.mxu0
        %5871 = vdwg.mxu0
        %5872 = vmatprep.subr.bf16.mxu0 %v5273
        %5873 = vmatpush1.bf16.msra.mxu0 %v5272
        %5874 = vmatprep.subr.bf16.mxu0 %v5269
        %5875 = vmatpush1.bf16.msra.mxu0 %v5268
        %5876 = vmatprep.subr.bf16.mxu0 %v5265
        %5877 = vmatpush1.bf16.msra.mxu0 %v5264
        %5878 = vmatprep.subr.bf16.mxu0 %v5261
        %5879 = vmatpush1.bf16.msra.mxu0 %v5260
        %5880 = vmatprep.subr.bf16.mxu0 %v5257
        %5881 = vmatpush1.bf16.msra.mxu0 %v5256
        %5882 = vmatprep.subr.bf16.mxu0 %v5253
        %5883 = vmatpush1.bf16.msra.mxu0 %v5252
        %5884 = vmatprep.subr.bf16.mxu0 %v5249
        %5885 = vmatpush1.bf16.msra.mxu0 %v5248
        %5886 = vmatprep.subr.bf16.mxu0 %v5245
        %5887 = vmatpush1.bf16.msra.mxu0 %v5244
        %5888 = vmatprep.subr.bf16.mxu0 %v5305
        %5889 = vmatpush2.bf16.msra.mxu0 %v5304
        %5890 = vmatprep.subr.bf16.mxu0 %v5301
        %5891 = vmatpush2.bf16.msra.mxu0 %v5300
        %5892 = vmatprep.subr.bf16.mxu0 %v5297
        %5893 = vmatpush2.bf16.msra.mxu0 %v5296
        %5894 = vmatprep.subr.bf16.mxu0 %v5293
        %5895 = vmatpush2.bf16.msra.mxu0 %v5292
        %5896 = vmatprep.subr.bf16.mxu0 %v5289
        %5897 = vmatpush2.bf16.msra.mxu0 %v5288
        %5898 = vmatprep.subr.bf16.mxu0 %v5285
        %5899 = vmatpush2.bf16.msra.mxu0 %v5284
        %5900 = vmatprep.subr.bf16.mxu0 %v5281
        %5901 = vmatpush2.bf16.msra.mxu0 %v5280
        %5902 = vmatprep.subr.bf16.mxu0 %v5277
        %5903 = vmatpush2.bf16.msra.mxu0 %v5276
        %5904 = vmatprep.mubr.bf16.mxu0 %v4065
        %5905 = vmatmul.mubr.bf16.gmra.mxu0 %v4064
        %v5906 = vpop.f32.mrf.mxu0
        %v5907 = vadd.f32 %v5866, %v5906
        %v5908 = vpop.f32.mrf.mxu0
        %v5909 = vadd.f32 %v5868, %v5908
        %v5910 = vpop.f32.mrf.mxu0
        %v5911 = vpop.f32.mrf.mxu0
        %5912 = vdwg.mxu0
        %5913 = vmatprep.subr.bf16.mxu0 %v5337
        %5914 = vmatpush1.bf16.msra.mxu0 %v5336
        %5915 = vmatprep.subr.bf16.mxu0 %v5333
        %5916 = vmatpush1.bf16.msra.mxu0 %v5332
        %5917 = vmatprep.subr.bf16.mxu0 %v5329
        %5918 = vmatpush1.bf16.msra.mxu0 %v5328
        %5919 = vmatprep.subr.bf16.mxu0 %v5325
        %5920 = vmatpush1.bf16.msra.mxu0 %v5324
        %5921 = vmatprep.subr.bf16.mxu0 %v5321
        %5922 = vmatpush1.bf16.msra.mxu0 %v5320
        %5923 = vmatprep.subr.bf16.mxu0 %v5317
        %5924 = vmatpush1.bf16.msra.mxu0 %v5316
        %5925 = vmatprep.subr.bf16.mxu0 %v5313
        %5926 = vmatpush1.bf16.msra.mxu0 %v5312
        %5927 = vmatprep.subr.bf16.mxu0 %v5309
        %5928 = vmatpush1.bf16.msra.mxu0 %v5308
        %5929 = vmatprep.subr.bf16.mxu0 %v5369
        %5930 = vmatpush2.bf16.msra.mxu0 %v5368
        %5931 = vmatprep.subr.bf16.mxu0 %v5365
        %5932 = vmatpush2.bf16.msra.mxu0 %v5364
        %5933 = vmatprep.subr.bf16.mxu0 %v5361
        %5934 = vmatpush2.bf16.msra.mxu0 %v5360
        %5935 = vmatprep.subr.bf16.mxu0 %v5357
        %5936 = vmatpush2.bf16.msra.mxu0 %v5356
        %5937 = vmatprep.subr.bf16.mxu0 %v5353
        %5938 = vmatpush2.bf16.msra.mxu0 %v5352
        %5939 = vmatprep.subr.bf16.mxu0 %v5349
        %5940 = vmatpush2.bf16.msra.mxu0 %v5348
        %5941 = vmatprep.subr.bf16.mxu0 %v5345
        %5942 = vmatpush2.bf16.msra.mxu0 %v5344
        %5943 = vmatprep.subr.bf16.mxu0 %v5341
        %5944 = vmatpush2.bf16.msra.mxu0 %v5340
        %5945 = vmatprep.mubr.bf16.mxu0 %v4067
        %5946 = vmatmul.mubr.bf16.gmra.mxu0 %v4066
        %v5947 = vpop.f32.mrf.mxu0
        %v5948 = vadd.f32 %v5907, %v5947
        %v5949 = vpop.f32.mrf.mxu0
        %v5950 = vadd.f32 %v5909, %v5949
        %v5951 = vpop.f32.mrf.mxu0
        %v5952 = vpop.f32.mrf.mxu0
        %5953 = vdwg.mxu0
        %vm5954 = vcmp.gt.f32.partialorder %v5784, 0.0
        %vm5955 = vcmp.gt.f32.partialorder %v5786, 0.0
        %vm5956 = vcmp.gt.f32.partialorder %v5948, 0.0
        %vm5957 = vcmp.gt.f32.partialorder %v5950, 0.0
        %v5958 = vmul.f32 %v5784, 0.2
        %v5959 = vmul.f32 %v5786, 0.2
        %v5960 = vmul.f32 %v5948, 0.2
        %v5961 = vmul.f32 %v5950, 0.2
        %v5962 = vsel %vm5954, %v5784, %v5958
        %v5963 = vsel %vm5955, %v5786, %v5959
        %v5964 = vsel %vm5956, %v5948, %v5960
        %v5965 = vsel %vm5957, %v5950, %v5961
        %5966 = vst [vmem:[%s344] sm:$0xff] %v5962
        %5967 = vst [vmem:[%s344 + $0x8] sm:$0xff] %v5963
        %5968 = vst [vmem:[%s344 + $0x10] sm:$0xff] %v5964
        %5969 = vst [vmem:[%s344 + $0x18] sm:$0xff] %v5965
        %s5970 = sand.u32 %s184, 1
        %s5971 = scalar_lea.sflag [#allocation4], %s5970
        %s5972 = sand.u32 %s184, 1
        %s5973 = smul.addr %s5972, 32
        %s5974 = scalar_lea.vmem [#allocation11], %s5973
        // Predicated region
        $region69: #{wgan_generator_forward.1} parent=47 // pred_check
          %p5975 = pneg %p194
        $region70: #{wgan_generator_forward.1} parent=47 // pred_check_branch
          %5977 = sbr.rel (%p5975) target = $region72
        $region71: #{wgan_generator_forward.1} parent=47 // pred_region
          %s5979 = ssub.s32 512, 512
          %5980 = vsyncadd %s5971, %s5979
          %s5981 = smul.addr %s24, 4
          %s5982 = smul.addr %s5981, 128
          %s5983 = scalar_lea.hbm %s7, %s5982
          %s5985 = sshll.u32 %s5974, 4
          %s5986 = int_to_ptr.vmem [resolvable:$true] %s5985
          %5988 = dma.vmem_to_hbm [thread:$0]  %s5986, 512, %s5983, %s5971
        $region72: #{wgan_generator_forward.1} parent=47 // pred_fallthru
          _
      $region48: #{wgan_generator_forward.1} parent=5 // pred_fallthru
        _
      %p5989 = scmp.le.s32.totalorder 2, %s19
      // Predicated region
      $region73: #{wgan_generator_forward.1} parent=5 // pred_check
        %p5990 = pneg %p5989
      $region74: #{wgan_generator_forward.1} parent=5 // pred_check_branch
        %5992 = sbr.rel (%p5990) target = $region76
      $region75: #{wgan_generator_forward.1} parent=5 // pred_region
        %s5993 = ssub.s32 %s19, 2
        // Predicated region
        $region77: #{wgan_generator_forward.1} parent=75 // pred_check
          %p5994 = pneg %p200
        $region78: #{wgan_generator_forward.1} parent=75 // pred_check_branch
          %5996 = sbr.rel (%p5994) target = $region80
        $region79: #{wgan_generator_forward.1} parent=75 // pred_region
          %s5997 = sand.u32 %s185, 1
          %s5998 = scalar_lea.sflag [#allocation4], %s5997
          %s5999 = sand.u32 %s185, 1
          %s6000 = smul.addr %s5999, 32
          %s6001 = scalar_lea.vmem [#allocation11], %s6000
          %6002 = dma.done %s5998, 512
        $region80: #{wgan_generator_forward.1} parent=75 // pred_fallthru
          _
      $region76: #{wgan_generator_forward.1} parent=5 // pred_fallthru
        _
    $region6: #{wgan_generator_forward.1} parent=1 // loop_footer
      %s23 = sadd.s32 1, %s19
    $region7: #{wgan_generator_forward.1} parent=1 // loop_footer_branch
      %18 = sbr.rel target = $region3
    $region8: #{wgan_generator_forward.1} parent=1 // loop_exit
      _
    %6003 = vsyncpa [#allocation3], 1
    %s6004 = scalar_lea.sflag [#allocation3], 1
    %6005 = vsyncpa %s6004, 1
    %6006 = vsyncpa [#allocation6], 1
    %6007 = vsyncpa [#allocation9], 1
    %6008 = vsyncpa [#allocation4], 1
    %s6009 = scalar_lea.sflag [#allocation4], 1
    %6010 = vsyncpa %s6009, 1

</llo_original>
